<compile_context>
chip_gen: v5e
topology: v5e:2x2
jax: 0.10.0
libtpu: 0.0.40
codegen_flags: <defaults>
</compile_context>

<pallas_src>
import functools

import jax
import jax.numpy as jnp
import numpy as np
from jax import lax
from jax.experimental import pallas as pl
from jax.experimental.pallas import tpu as pltpu


# ---------------------------------------------------------------------------
# im2col via strided slices (XLA side, one cheap fusion; no gather).
# Rows ordered (c, kh, kw) -> matches the (O, C, kh, kw) PyTorch weight
# flatten; columns ordered (ho, wo) row-major.
# ---------------------------------------------------------------------------
def _extract_patches(x, k, s):
    B, C, H, W = x.shape
    Ho = (H - k) // s + 1
    Wo = (W - k) // s + 1
    slabs = []
    for kh in range(k):
        for kw in range(k):
            sl = lax.slice(
                x,
                (0, 0, kh, kw),
                (B, C, kh + (Ho - 1) * s + 1, kw + (Wo - 1) * s + 1),
                (1, 1, s, s),
            )  # (B, C, Ho, Wo)
            slabs.append(sl)
    p = jnp.stack(slabs, axis=2)                      # (B, C, k*k, Ho, Wo)
    return p.reshape(B, C * k * k, Ho * Wo), Ho, Wo   # contiguous (free) reshape


# ---------------------------------------------------------------------------
# Kernel A: fused conv1 (policy+value output channels stacked -> O=8)
#   out[b] = relu( W(8,144) @ patches[b](144, 1444) + bias )
# Lane dim of the output is the 1444-wide spatial extent (lane-dense stores),
# and the NCHW flatten feeding conv2's im2col is a free reshape outside.
# ---------------------------------------------------------------------------
def _conv1_kernel(p_ref, w_ref, b_ref, o_ref):
    y = jnp.dot(w_ref[...], p_ref[0], preferred_element_type=jnp.float32)
    o_ref[0] = jnp.maximum(y + b_ref[...], 0.0)


def conv_stage1(patches, w, b):
    B, K, N = patches.shape
    O = w.shape[0]
    return pl.pallas_call(
        _conv1_kernel,
        out_shape=jax.ShapeDtypeStruct((B, O, N), jnp.float32),
        grid=(B,),
        in_specs=[
            pl.BlockSpec((1, K, N), lambda i: (i, 0, 0)),
            pl.BlockSpec((O, K), lambda i: (0, 0)),
            pl.BlockSpec((O, 1), lambda i: (0, 0)),
        ],
        out_specs=pl.BlockSpec((1, O, N), lambda i: (i, 0, 0)),
        compiler_params=pltpu.CompilerParams(dimension_semantics=("parallel",)),
    )(patches, w, b)


# ---------------------------------------------------------------------------
# Kernel B: fused conv2 + fc1 + fc2 for BOTH heads, one sample per grid step.
#   * conv2 patches carry all 8 conv1 channels; policy conv2 reads rows
#     [:144] (conv1 channels 0..3), value conv2 reads rows [144:].
#   * fc1 uses the pack-time permuted weight Wr (81, 16*256):
#         g = c2(16,81) @ Wr            -> g[c, c*256+j] holds the partial
#         hidden[j] = sum_c g[c, c*256+j]  (16 lane-aligned slices + adds)
#     which is exactly torch's  relu(flatten(c2) @ W1.T)  without any
#     in-kernel flatten/relayout.
#   * logits and value are written to disjoint lane ranges of one (1,1,A+1)
#     output block.
# All weight blocks use constant index_maps -> DMA'd once, resident across
# the batch grid.
# ---------------------------------------------------------------------------
def _tail_kernel(p2_ref, w2p_ref, w2v_ref, b2p_ref, b2v_ref,
                 wrp_ref, wrv_ref, b1p_ref, b1v_ref,
                 w2pfc_ref, b2pfc_ref, w2vfc_ref, b2vfc_ref,
                 out_ref, *, split, n_c2, hidden, adim):
    p2 = p2_ref[0]                                            # (288, 81)

    c2p = jnp.maximum(
        jnp.dot(w2p_ref[...], p2[:split], preferred_element_type=jnp.float32)
        + b2p_ref[...], 0.0)                                  # (16, 81)
    c2v = jnp.maximum(
        jnp.dot(w2v_ref[...], p2[split:], preferred_element_type=jnp.float32)
        + b2v_ref[...], 0.0)                                  # (16, 81)

    def fc1(c2, wr_ref, b1_ref):
        g = jnp.dot(c2, wr_ref[...], preferred_element_type=jnp.float32)  # (16, 16*256)
        h = g[0:1, 0:hidden]
        for c in range(1, n_c2):                              # static unroll
            h = h + g[c:c + 1, c * hidden:(c + 1) * hidden]   # lane-aligned slices
        return jnp.maximum(h + b1_ref[...], 0.0)              # (1, 256)

    hp = fc1(c2p, wrp_ref, b1p_ref)
    hv = fc1(c2v, wrv_ref, b1v_ref)

    out_ref[0, :, 0:adim] = (
        jnp.dot(hp, w2pfc_ref[...], preferred_element_type=jnp.float32)
        + b2pfc_ref[...])
    out_ref[0, :, adim:adim + 1] = (
        jnp.dot(hv, w2vfc_ref[...], preferred_element_type=jnp.float32)
        + b2vfc_ref[...])


def conv2_fc_tail(p2, params):
    B, K2, N = p2.shape                       # (B, 288, 81)
    w2p = params["conv2_pw"]
    n_c2, split = w2p.shape                   # 16, 144
    hidden = params["fc1_pb"].shape[1]        # 256
    adim = params["fc2_pb"].shape[1]          # action_dim

    kern = functools.partial(_tail_kernel, split=split, n_c2=n_c2,
                             hidden=hidden, adim=adim)

    def const(shp):
        return pl.BlockSpec(shp, lambda i: (0,) * len(shp))

    out = pl.pallas_call(
        kern,
        out_shape=jax.ShapeDtypeStruct((B, 1, adim + 1), jnp.float32),
        grid=(B,),
        in_specs=[
            pl.BlockSpec((1, K2, N), lambda i: (i, 0, 0)),
            const(w2p.shape), const(params["conv2_vw"].shape),
            const(params["conv2_pb"].shape), const(params["conv2_vb"].shape),
            const(params["fc1_pwr"].shape), const(params["fc1_vwr"].shape),
            const(params["fc1_pb"].shape), const(params["fc1_vb"].shape),
            const(params["fc2_pw"].shape), const(params["fc2_pb"].shape),
            const(params["fc2_vw"].shape), const(params["fc2_vb"].shape),
        ],
        out_specs=pl.BlockSpec((1, 1, adim + 1), lambda i: (i, 0, 0)),
        compiler_params=pltpu.CompilerParams(dimension_semantics=("parallel",)),
    )(p2, w2p, params["conv2_vw"], params["conv2_pb"], params["conv2_vb"],
      params["fc1_pwr"], params["fc1_vwr"], params["fc1_pb"], params["fc1_vb"],
      params["fc2_pw"], params["fc2_pb"], params["fc2_vw"], params["fc2_vb"])

    out = out.reshape(B, adim + 1)
    return out[:, :adim], out[:, adim:]


# ---------------------------------------------------------------------------
# Parameters: PyTorch-layout draws (N(0,0.1) weights, zero biases), packed
# ONCE into kernel-friendly layouts (pre-transposed / pre-permuted).
# ---------------------------------------------------------------------------
def init_torch_params(key, stack_frame, action_dim):
    size = 9 * 9 * 16
    keys = jax.random.split(key, 8)
    nrm = lambda k, s: 0.1 * jax.random.normal(k, s, dtype=jnp.float32)
    zeros = lambda n: jnp.zeros((n,), jnp.float32)
    return {
        "policy_conv1_w": nrm(keys[0], (4, stack_frame, 6, 6)), "policy_conv1_b": zeros(4),
        "value_conv1_w":  nrm(keys[1], (4, stack_frame, 6, 6)), "value_conv1_b":  zeros(4),
        "policy_conv2_w": nrm(keys[2], (16, 4, 6, 6)),          "policy_conv2_b": zeros(16),
        "value_conv2_w":  nrm(keys[3], (16, 4, 6, 6)),          "value_conv2_b":  zeros(16),
        "policy_fc1_w":   nrm(keys[4], (256, size)),            "policy_fc1_b":   zeros(256),
        "value_fc1_w":    nrm(keys[5], (256, size)),            "value_fc1_b":    zeros(256),
        "policy_fc2_w":   nrm(keys[6], (action_dim, 256)),      "policy_fc2_b":   zeros(action_dim),
        "value_fc2_w":    nrm(keys[7], (1, 256)),               "value_fc2_b":    zeros(1),
    }


def pack_params(tp):
    action_dim = tp["policy_fc2_w"].shape[0]
    hidden = tp["policy_fc1_b"].shape[0]          # 256
    n_c2 = tp["policy_conv2_w"].shape[0]          # 16
    spatial = tp["policy_fc1_w"].shape[1] // n_c2  # 81

    # (256,1296) -> (81, 16*256):  Wr[p, c*256+j] = W[j, c*81+p]
    def fc1_reorg(w):
        return (w.reshape(hidden, n_c2, spatial)
                 .transpose(2, 1, 0)
                 .reshape(spatial, n_c2 * hidden))

    return {
        # conv1: heads fused along output channels, weight flattened to (8, C*36)
        "conv1_w": jnp.concatenate(
            [tp["policy_conv1_w"].reshape(4, -1), tp["value_conv1_w"].reshape(4, -1)], axis=0),
        "conv1_b": jnp.concatenate(
            [tp["policy_conv1_b"], tp["value_conv1_b"]]).reshape(8, 1),
        # conv2: per head, weight flattened to (16, 4*36)
        "conv2_pw": tp["policy_conv2_w"].reshape(n_c2, -1),
        "conv2_vw": tp["value_conv2_w"].reshape(n_c2, -1),
        "conv2_pb": tp["policy_conv2_b"].reshape(n_c2, 1),
        "conv2_vb": tp["value_conv2_b"].reshape(n_c2, 1),
        # fc1: permuted so the flatten is folded into the weight
        "fc1_pwr": fc1_reorg(tp["policy_fc1_w"]),
        "fc1_pb":  tp["policy_fc1_b"].reshape(1, hidden),
        "fc1_vwr": fc1_reorg(tp["value_fc1_w"]),
        "fc1_vb":  tp["value_fc1_b"].reshape(1, hidden),
        # fc2: pre-transposed to (K, N)
        "fc2_pw": tp["policy_fc2_w"].T, "fc2_pb": tp["policy_fc2_b"].reshape(1, action_dim),
        "fc2_vw": tp["value_fc2_w"].T,  "fc2_vb": tp["value_fc2_b"].reshape(1, 1),
    }


# ---------------------------------------------------------------------------
# Forward pass (matches Network.forward) -- 2 pallas_calls total.
# ---------------------------------------------------------------------------
def network_forward(params, x):
    B = x.shape[0]

    # conv1 (both heads fused, 8 output channels)
    p1, h1, w1 = _extract_patches(x, k=6, s=2)                  # (B, 144, 1444)
    c1 = conv_stage1(p1, params["conv1_w"], params["conv1_b"])  # (B, 8, 1444)
    c1 = c1.reshape(B, 8, h1, w1)                               # free reshape (NCHW)

    # conv2 + fc1 + fc2 fused; im2col for conv2 is a tiny XLA slice fusion
    p2, _, _ = _extract_patches(c1, k=6, s=4)                   # (B, 288, 81)
    logits, values = conv2_fc_tail(p2, params)
    return logits, values


# ---------------------------------------------------------------------------
# Pure-JAX reference (PyTorch semantics) for a correctness spot-check.
# ---------------------------------------------------------------------------
def _reference_forward(tp, x):
    hi = lax.Precision.HIGHEST

    def conv(z, w, b, s):
        y = lax.conv_general_dilated(z, w, (s, s), "VALID",
                                     dimension_numbers=("NCHW", "OIHW", "NCHW"),
                                     precision=hi)
        return jax.nn.relu(y + b.reshape(1, -1, 1, 1))

    B = x.shape[0]
    l = conv(x, tp["policy_conv1_w"], tp["policy_conv1_b"], 2)
    l = conv(l, tp["policy_conv2_w"], tp["policy_conv2_b"], 4).reshape(B, -1)
    l = jax.nn.relu(jnp.dot(l, tp["policy_fc1_w"].T, precision=hi) + tp["policy_fc1_b"])
    logits = jnp.dot(l, tp["policy_fc2_w"].T, precision=hi) + tp["policy_fc2_b"]
    v = conv(x, tp["value_conv1_w"], tp["value_conv1_b"], 2)
    v = conv(v, tp["value_conv2_w"], tp["value_conv2_b"], 4).reshape(B, -1)
    v = jax.nn.relu(jnp.dot(v, tp["value_fc1_w"].T, precision=hi) + tp["value_fc1_b"])
    values = jnp.dot(v, tp["value_fc2_w"].T, precision=hi) + tp["value_fc2_b"]
    return logits, values


# TODO(synk): choose_action / loss_function (Categorical sampling, log_prob) are
# host-side training logic, not part of the forward hot path; not ported.

if __name__ == "__main__":
    stack_frame = 4
    action_dim = 4
    batch = 2
    # 80x80 input: conv1(k=6,s=2) -> 38x38, conv2(k=6,s=4) -> 9x9 == 16*9*9 = self.size
    key = jax.random.PRNGKey(0)
    k_param, k_input = jax.random.split(key)

    torch_params = init_torch_params(k_param, stack_frame, action_dim)
    params = pack_params(torch_params)
    x = jax.random.normal(k_input, (batch, stack_frame, 80, 80), dtype=jnp.float32)

    logits, values = jax.jit(network_forward)(params, x)
    jax.block_until_ready((logits, values))

    assert logits.shape == (batch, action_dim), logits.shape
    assert values.shape == (batch, 1), values.shape

    ref_logits, ref_values = jax.jit(_reference_forward)(torch_params, x)
    np.testing.assert_allclose(np.asarray(logits), np.asarray(ref_logits), rtol=2e-3, atol=2e-3)
    np.testing.assert_allclose(np.asarray(values), np.asarray(ref_values), rtol=2e-3, atol=2e-3)

    print("KERNEL_OK")
</pallas_src>

<mosaic_0001>
module attributes {stable_mosaic.version = 11 : i64} {
  func.func @_conv1_kernel(%arg0: i32, %arg1: memref<1x144x1444xf32, #tpu.memory_space<vmem>>, %arg2: memref<8x144xf32, #tpu.memory_space<vmem>>, %arg3: memref<8x1xf32, #tpu.memory_space<vmem>>, %arg4: memref<1x8x1444xf32, #tpu.memory_space<vmem>>) attributes {dimension_semantics = [#tpu.dimension_semantics<parallel>], iteration_bounds = array<i64: 2>, scalar_prefetch = 0 : i64, scratch_operands = 0 : i64, tpu.core_type = #tpu.core_type<tc>, window_params = [{transform_indices = @transform_0, window_bounds = array<i64: 1, 144, 1444>}, {pipeline_mode = #tpu.pipeline_mode<synchronous>, transform_indices = @transform_1, window_bounds = array<i64: 8, 144>}, {pipeline_mode = #tpu.pipeline_mode<synchronous>, transform_indices = @transform_2, window_bounds = array<i64: 8, 1>}, {transform_indices = @transform_3, window_bounds = array<i64: 1, 8, 1444>}]} {
    %c0 = arith.constant 0 : index
    %c0_0 = arith.constant 0 : index
    %0 = vector.load %arg2[%c0, %c0_0] : memref<8x144xf32, #tpu.memory_space<vmem>>, vector<8x144xf32>
    %c0_1 = arith.constant 0 : index
    %c0_2 = arith.constant 0 : index
    %c0_3 = arith.constant 0 : index
    %1 = vector.load %arg1[%c0_1, %c0_2, %c0_3] : memref<1x144x1444xf32, #tpu.memory_space<vmem>>, vector<1x144x1444xf32>
    %2 = vector.shape_cast %1 : vector<1x144x1444xf32> to vector<144x1444xf32>
    %cst = arith.constant dense<0.000000e+00> : vector<8x1444xf32>
    %3 = tpu.matmul %0, %2, %cst {dimension_numbers = #tpu.dot_dimension_numbers<[1], [0], [0], [1], [0, 0, 1, 1], [], []>} : vector<8x144xf32>, vector<144x1444xf32>, vector<8x1444xf32> -> vector<8x1444xf32>
    %c0_4 = arith.constant 0 : index
    %c0_5 = arith.constant 0 : index
    %4 = vector.load %arg3[%c0_4, %c0_5] : memref<8x1xf32, #tpu.memory_space<vmem>>, vector<8x1xf32>
    %5 = vector.broadcast %4 : vector<8x1xf32> to vector<8x1444xf32>
    %6 = arith.addf %3, %5 : vector<8x1444xf32>
    %cst_6 = arith.constant 0.000000e+00 : f32
    %7 = vector.broadcast %cst_6 : f32 to vector<8x1444xf32>
    %8 = arith.maximumf %6, %7 : vector<8x1444xf32>
    %c0_7 = arith.constant 0 : index
    %c0_8 = arith.constant 0 : index
    %c0_9 = arith.constant 0 : index
    %9 = vector.load %arg4[%c0_7, %c0_8, %c0_9] : memref<1x8x1444xf32, #tpu.memory_space<vmem>>, vector<1x8x1444xf32>
    %10 = vector.shape_cast %9 : vector<1x8x1444xf32> to vector<8x1444xf32>
    %11 = vector.shape_cast %8 : vector<8x1444xf32> to vector<1x8x1444xf32>
    tpu.vector_store %arg4[%c0_7, %c0_8, %c0_9], %11 {strides = array<i32>} : memref<1x8x1444xf32, #tpu.memory_space<vmem>>, vector<1x8x1444xf32>,
    return
  }
  func.func @transform_0(%arg0: i32) -> (i32, i32, i32) {
    %c0_i32 = arith.constant 0 : i32
    %c0_i32_0 = arith.constant 0 : i32
    %c0_i32_1 = arith.constant 0 : i32
    return %arg0, %c0_i32, %c0_i32_0 : i32, i32, i32
  }
  func.func @transform_1(%arg0: i32) -> (i32, i32) {
    %c0_i32 = arith.constant 0 : i32
    %c0_i32_0 = arith.constant 0 : i32
    %c0_i32_1 = arith.constant 0 : i32
    return %c0_i32, %c0_i32_0 : i32, i32
  }
  func.func @transform_2(%arg0: i32) -> (i32, i32) {
    %c0_i32 = arith.constant 0 : i32
    %c0_i32_0 = arith.constant 0 : i32
    %c0_i32_1 = arith.constant 0 : i32
    return %c0_i32, %c0_i32_0 : i32, i32
  }
  func.func @transform_3(%arg0: i32) -> (i32, i32, i32) {
    %c0_i32 = arith.constant 0 : i32
    %c0_i32_0 = arith.constant 0 : i32
    %c0_i32_1 = arith.constant 0 : i32
    return %arg0, %c0_i32, %c0_i32_0 : i32, i32, i32
  }
}

module attributes {stable_mosaic.version = 11 : i64} {
  func.func @_tail_kernel(%arg0: i32, %arg1: memref<1x288x81xf32, #tpu.memory_space<vmem>>, %arg2: memref<16x144xf32, #tpu.memory_space<vmem>>, %arg3: memref<16x144xf32, #tpu.memory_space<vmem>>, %arg4: memref<16x1xf32, #tpu.memory_space<vmem>>, %arg5: memref<16x1xf32, #tpu.memory_space<vmem>>, %arg6: memref<81x4096xf32, #tpu.memory_space<vmem>>, %arg7: memref<81x4096xf32, #tpu.memory_space<vmem>>, %arg8: memref<1x256xf32, #tpu.memory_space<vmem>>, %arg9: memref<1x256xf32, #tpu.memory_space<vmem>>, %arg10: memref<256x4xf32, #tpu.memory_space<vmem>>, %arg11: memref<1x4xf32, #tpu.memory_space<vmem>>, %arg12: memref<256x1xf32, #tpu.memory_space<vmem>>, %arg13: memref<1x1xf32, #tpu.memory_space<vmem>>, %arg14: memref<1x1x5xf32, #tpu.memory_space<vmem>>) attributes {dimension_semantics = [#tpu.dimension_semantics<parallel>], iteration_bounds = array<i64: 2>, scalar_prefetch = 0 : i64, scratch_operands = 0 : i64, tpu.core_type = #tpu.core_type<tc>, window_params = [{transform_indices = @transform_0, window_bounds = array<i64: 1, 288, 81>}, {pipeline_mode = #tpu.pipeline_mode<synchronous>, transform_indices = @transform_1, window_bounds = array<i64: 16, 144>}, {pipeline_mode = #tpu.pipeline_mode<synchronous>, transform_indices = @transform_2, window_bounds = array<i64: 16, 144>}, {pipeline_mode = #tpu.pipeline_mode<synchronous>, transform_indices = @transform_3, window_bounds = array<i64: 16, 1>}, {pipeline_mode = #tpu.pipeline_mode<synchronous>, transform_indices = @transform_4, window_bounds = array<i64: 16, 1>}, {pipeline_mode = #tpu.pipeline_mode<synchronous>, transform_indices = @transform_5, window_bounds = array<i64: 81, 4096>}, {pipeline_mode = #tpu.pipeline_mode<synchronous>, transform_indices = @transform_6, window_bounds = array<i64: 81, 4096>}, {pipeline_mode = #tpu.pipeline_mode<synchronous>, transform_indices = @transform_7, window_bounds = array<i64: 1, 256>}, {pipeline_mode = #tpu.pipeline_mode<synchronous>, transform_indices = @transform_8, window_bounds = array<i64: 1, 256>}, {pipeline_mode = #tpu.pipeline_mode<synchronous>, transform_indices = @transform_9, window_bounds = array<i64: 256, 4>}, {pipeline_mode = #tpu.pipeline_mode<synchronous>, transform_indices = @transform_10, window_bounds = array<i64: 1, 4>}, {pipeline_mode = #tpu.pipeline_mode<synchronous>, transform_indices = @transform_11, window_bounds = array<i64: 256, 1>}, {pipeline_mode = #tpu.pipeline_mode<synchronous>, transform_indices = @transform_12, window_bounds = array<i64: 1, 1>}, {transform_indices = @transform_13, window_bounds = array<i64: 1, 1, 5>}]} {
    %c0 = arith.constant 0 : index
    %c0_0 = arith.constant 0 : index
    %c0_1 = arith.constant 0 : index
    %0 = vector.load %arg1[%c0, %c0_0, %c0_1] : memref<1x288x81xf32, #tpu.memory_space<vmem>>, vector<1x288x81xf32>
    %1 = vector.shape_cast %0 : vector<1x288x81xf32> to vector<288x81xf32>
    %c0_2 = arith.constant 0 : index
    %c0_3 = arith.constant 0 : index
    %2 = vector.load %arg2[%c0_2, %c0_3] : memref<16x144xf32, #tpu.memory_space<vmem>>, vector<16x144xf32>
    %3 = vector.extract_strided_slice %1 {offsets = [0, 0], sizes = [144, 81], strides = [1, 1]} : vector<288x81xf32> to vector<144x81xf32>
    %cst = arith.constant dense<0.000000e+00> : vector<16x81xf32>
    %4 = tpu.matmul %2, %3, %cst {dimension_numbers = #tpu.dot_dimension_numbers<[1], [0], [0], [1], [0, 0, 1, 1], [], []>} : vector<16x144xf32>, vector<144x81xf32>, vector<16x81xf32> -> vector<16x81xf32>
    %c0_4 = arith.constant 0 : index
    %c0_5 = arith.constant 0 : index
    %5 = vector.load %arg4[%c0_4, %c0_5] : memref<16x1xf32, #tpu.memory_space<vmem>>, vector<16x1xf32>
    %6 = vector.broadcast %5 : vector<16x1xf32> to vector<16x81xf32>
    %7 = arith.addf %4, %6 : vector<16x81xf32>
    %cst_6 = arith.constant 0.000000e+00 : f32
    %8 = vector.broadcast %cst_6 : f32 to vector<16x81xf32>
    %9 = arith.maximumf %7, %8 : vector<16x81xf32>
    %c0_7 = arith.constant 0 : index
    %c0_8 = arith.constant 0 : index
    %10 = vector.load %arg3[%c0_7, %c0_8] : memref<16x144xf32, #tpu.memory_space<vmem>>, vector<16x144xf32>
    %11 = vector.extract_strided_slice %1 {offsets = [144, 0], sizes = [144, 81], strides = [1, 1]} : vector<288x81xf32> to vector<144x81xf32>
    %cst_9 = arith.constant dense<0.000000e+00> : vector<16x81xf32>
    %12 = tpu.matmul %10, %11, %cst_9 {dimension_numbers = #tpu.dot_dimension_numbers<[1], [0], [0], [1], [0, 0, 1, 1], [], []>} : vector<16x144xf32>, vector<144x81xf32>, vector<16x81xf32> -> vector<16x81xf32>
    %c0_10 = arith.constant 0 : index
    %c0_11 = arith.constant 0 : index
    %13 = vector.load %arg5[%c0_10, %c0_11] : memref<16x1xf32, #tpu.memory_space<vmem>>, vector<16x1xf32>
    %14 = vector.broadcast %13 : vector<16x1xf32> to vector<16x81xf32>
    %15 = arith.addf %12, %14 : vector<16x81xf32>
    %cst_12 = arith.constant 0.000000e+00 : f32
    %16 = vector.broadcast %cst_12 : f32 to vector<16x81xf32>
    %17 = arith.maximumf %15, %16 : vector<16x81xf32>
    %c0_13 = arith.constant 0 : index
    %c0_14 = arith.constant 0 : index
    %18 = vector.load %arg6[%c0_13, %c0_14] : memref<81x4096xf32, #tpu.memory_space<vmem>>, vector<81x4096xf32>
    %cst_15 = arith.constant dense<0.000000e+00> : vector<16x4096xf32>
    %19 = tpu.matmul %9, %18, %cst_15 {dimension_numbers = #tpu.dot_dimension_numbers<[1], [0], [0], [1], [0, 0, 1, 1], [], []>} : vector<16x81xf32>, vector<81x4096xf32>, vector<16x4096xf32> -> vector<16x4096xf32>
    %20 = vector.extract_strided_slice %19 {offsets = [0, 0], sizes = [1, 256], strides = [1, 1]} : vector<16x4096xf32> to vector<1x256xf32>
    %21 = vector.extract_strided_slice %19 {offsets = [1, 256], sizes = [1, 256], strides = [1, 1]} : vector<16x4096xf32> to vector<1x256xf32>
    %22 = arith.addf %20, %21 : vector<1x256xf32>
    %23 = vector.extract_strided_slice %19 {offsets = [2, 512], sizes = [1, 256], strides = [1, 1]} : vector<16x4096xf32> to vector<1x256xf32>
    %24 = arith.addf %22, %23 : vector<1x256xf32>
    %25 = vector.extract_strided_slice %19 {offsets = [3, 768], sizes = [1, 256], strides = [1, 1]} : vector<16x4096xf32> to vector<1x256xf32>
    %26 = arith.addf %24, %25 : vector<1x256xf32>
    %27 = vector.extract_strided_slice %19 {offsets = [4, 1024], sizes = [1, 256], strides = [1, 1]} : vector<16x4096xf32> to vector<1x256xf32>
    %28 = arith.addf %26, %27 : vector<1x256xf32>
    %29 = vector.extract_strided_slice %19 {offsets = [5, 1280], sizes = [1, 256], strides = [1, 1]} : vector<16x4096xf32> to vector<1x256xf32>
    %30 = arith.addf %28, %29 : vector<1x256xf32>
    %31 = vector.extract_strided_slice %19 {offsets = [6, 1536], sizes = [1, 256], strides = [1, 1]} : vector<16x4096xf32> to vector<1x256xf32>
    %32 = arith.addf %30, %31 : vector<1x256xf32>
    %33 = vector.extract_strided_slice %19 {offsets = [7, 1792], sizes = [1, 256], strides = [1, 1]} : vector<16x4096xf32> to vector<1x256xf32>
    %34 = arith.addf %32, %33 : vector<1x256xf32>
    %35 = vector.extract_strided_slice %19 {offsets = [8, 2048], sizes = [1, 256], strides = [1, 1]} : vector<16x4096xf32> to vector<1x256xf32>
    %36 = arith.addf %34, %35 : vector<1x256xf32>
    %37 = vector.extract_strided_slice %19 {offsets = [9, 2304], sizes = [1, 256], strides = [1, 1]} : vector<16x4096xf32> to vector<1x256xf32>
    %38 = arith.addf %36, %37 : vector<1x256xf32>
    %39 = vector.extract_strided_slice %19 {offsets = [10, 2560], sizes = [1, 256], strides = [1, 1]} : vector<16x4096xf32> to vector<1x256xf32>
    %40 = arith.addf %38, %39 : vector<1x256xf32>
    %41 = vector.extract_strided_slice %19 {offsets = [11, 2816], sizes = [1, 256], strides = [1, 1]} : vector<16x4096xf32> to vector<1x256xf32>
    %42 = arith.addf %40, %41 : vector<1x256xf32>
    %43 = vector.extract_strided_slice %19 {offsets = [12, 3072], sizes = [1, 256], strides = [1, 1]} : vector<16x4096xf32> to vector<1x256xf32>
    %44 = arith.addf %42, %43 : vector<1x256xf32>
    %45 = vector.extract_strided_slice %19 {offsets = [13, 3328], sizes = [1, 256], strides = [1, 1]} : vector<16x4096xf32> to vector<1x256xf32>
    %46 = arith.addf %44, %45 : vector<1x256xf32>
    %47 = vector.extract_strided_slice %19 {offsets = [14, 3584], sizes = [1, 256], strides = [1, 1]} : vector<16x4096xf32> to vector<1x256xf32>
    %48 = arith.addf %46, %47 : vector<1x256xf32>
    %49 = vector.extract_strided_slice %19 {offsets = [15, 3840], sizes = [1, 256], strides = [1, 1]} : vector<16x4096xf32> to vector<1x256xf32>
    %50 = arith.addf %48, %49 : vector<1x256xf32>
    %c0_16 = arith.constant 0 : index
    %c0_17 = arith.constant 0 : index
    %51 = vector.load %arg8[%c0_16, %c0_17] : memref<1x256xf32, #tpu.memory_space<vmem>>, vector<1x256xf32>
    %52 = arith.addf %50, %51 : vector<1x256xf32>
    %cst_18 = arith.constant 0.000000e+00 : f32
    %53 = vector.broadcast %cst_18 : f32 to vector<1x256xf32>
    %54 = arith.maximumf %52, %53 : vector<1x256xf32>
    %c0_19 = arith.constant 0 : index
    %c0_20 = arith.constant 0 : index
    %55 = vector.load %arg7[%c0_19, %c0_20] : memref<81x4096xf32, #tpu.memory_space<vmem>>, vector<81x4096xf32>
    %cst_21 = arith.constant dense<0.000000e+00> : vector<16x4096xf32>
    %56 = tpu.matmul %17, %55, %cst_21 {dimension_numbers = #tpu.dot_dimension_numbers<[1], [0], [0], [1], [0, 0, 1, 1], [], []>} : vector<16x81xf32>, vector<81x4096xf32>, vector<16x4096xf32> -> vector<16x4096xf32>
    %57 = vector.extract_strided_slice %56 {offsets = [0, 0], sizes = [1, 256], strides = [1, 1]} : vector<16x4096xf32> to vector<1x256xf32>
    %58 = vector.extract_strided_slice %56 {offsets = [1, 256], sizes = [1, 256], strides = [1, 1]} : vector<16x4096xf32> to vector<1x256xf32>
    %59 = arith.addf %57, %58 : vector<1x256xf32>
    %60 = vector.extract_strided_slice %56 {offsets = [2, 512], sizes = [1, 256], strides = [1, 1]} : vector<16x4096xf32> to vector<1x256xf32>
    %61 = arith.addf %59, %60 : vector<1x256xf32>
    %62 = vector.extract_strided_slice %56 {offsets = [3, 768], sizes = [1, 256], strides = [1, 1]} : vector<16x4096xf32> to vector<1x256xf32>
    %63 = arith.addf %61, %62 : vector<1x256xf32>
    %64 = vector.extract_strided_slice %56 {offsets = [4, 1024], sizes = [1, 256], strides = [1, 1]} : vector<16x4096xf32> to vector<1x256xf32>
    %65 = arith.addf %63, %64 : vector<1x256xf32>
    %66 = vector.extract_strided_slice %56 {offsets = [5, 1280], sizes = [1, 256], strides = [1, 1]} : vector<16x4096xf32> to vector<1x256xf32>
    %67 = arith.addf %65, %66 : vector<1x256xf32>
    %68 = vector.extract_strided_slice %56 {offsets = [6, 1536], sizes = [1, 256], strides = [1, 1]} : vector<16x4096xf32> to vector<1x256xf32>
    %69 = arith.addf %67, %68 : vector<1x256xf32>
    %70 = vector.extract_strided_slice %56 {offsets = [7, 1792], sizes = [1, 256], strides = [1, 1]} : vector<16x4096xf32> to vector<1x256xf32>
    %71 = arith.addf %69, %70 : vector<1x256xf32>
    %72 = vector.extract_strided_slice %56 {offsets = [8, 2048], sizes = [1, 256], strides = [1, 1]} : vector<16x4096xf32> to vector<1x256xf32>
    %73 = arith.addf %71, %72 : vector<1x256xf32>
    %74 = vector.extract_strided_slice %56 {offsets = [9, 2304], sizes = [1, 256], strides = [1, 1]} : vector<16x4096xf32> to vector<1x256xf32>
    %75 = arith.addf %73, %74 : vector<1x256xf32>
    %76 = vector.extract_strided_slice %56 {offsets = [10, 2560], sizes = [1, 256], strides = [1, 1]} : vector<16x4096xf32> to vector<1x256xf32>
    %77 = arith.addf %75, %76 : vector<1x256xf32>
    %78 = vector.extract_strided_slice %56 {offsets = [11, 2816], sizes = [1, 256], strides = [1, 1]} : vector<16x4096xf32> to vector<1x256xf32>
    %79 = arith.addf %77, %78 : vector<1x256xf32>
    %80 = vector.extract_strided_slice %56 {offsets = [12, 3072], sizes = [1, 256], strides = [1, 1]} : vector<16x4096xf32> to vector<1x256xf32>
    %81 = arith.addf %79, %80 : vector<1x256xf32>
    %82 = vector.extract_strided_slice %56 {offsets = [13, 3328], sizes = [1, 256], strides = [1, 1]} : vector<16x4096xf32> to vector<1x256xf32>
    %83 = arith.addf %81, %82 : vector<1x256xf32>
    %84 = vector.extract_strided_slice %56 {offsets = [14, 3584], sizes = [1, 256], strides = [1, 1]} : vector<16x4096xf32> to vector<1x256xf32>
    %85 = arith.addf %83, %84 : vector<1x256xf32>
    %86 = vector.extract_strided_slice %56 {offsets = [15, 3840], sizes = [1, 256], strides = [1, 1]} : vector<16x4096xf32> to vector<1x256xf32>
    %87 = arith.addf %85, %86 : vector<1x256xf32>
    %c0_22 = arith.constant 0 : index
    %c0_23 = arith.constant 0 : index
    %88 = vector.load %arg9[%c0_22, %c0_23] : memref<1x256xf32, #tpu.memory_space<vmem>>, vector<1x256xf32>
    %89 = arith.addf %87, %88 : vector<1x256xf32>
    %cst_24 = arith.constant 0.000000e+00 : f32
    %90 = vector.broadcast %cst_24 : f32 to vector<1x256xf32>
    %91 = arith.maximumf %89, %90 : vector<1x256xf32>
    %c0_25 = arith.constant 0 : index
    %c0_26 = arith.constant 0 : index
    %92 = vector.load %arg10[%c0_25, %c0_26] : memref<256x4xf32, #tpu.memory_space<vmem>>, vector<256x4xf32>
    %cst_27 = arith.constant dense<0.000000e+00> : vector<1x4xf32>
    %93 = tpu.matmul %54, %92, %cst_27 {dimension_numbers = #tpu.dot_dimension_numbers<[1], [0], [0], [1], [0, 0, 1, 1], [], []>} : vector<1x256xf32>, vector<256x4xf32>, vector<1x4xf32> -> vector<1x4xf32>
    %c0_28 = arith.constant 0 : index
    %c0_29 = arith.constant 0 : index
    %94 = vector.load %arg11[%c0_28, %c0_29] : memref<1x4xf32, #tpu.memory_space<vmem>>, vector<1x4xf32>
    %95 = arith.addf %93, %94 : vector<1x4xf32>
    %c0_30 = arith.constant 0 : index
    %c0_31 = arith.constant 0 : index
    %c0_32 = arith.constant 0 : index
    %96 = vector.load %arg14[%c0_30, %c0_31, %c0_32] : memref<1x1x5xf32, #tpu.memory_space<vmem>>, vector<1x1x4xf32>
    %97 = vector.shape_cast %96 : vector<1x1x4xf32> to vector<1x4xf32>
    %98 = vector.shape_cast %95 : vector<1x4xf32> to vector<1x1x4xf32>
    tpu.vector_store %arg14[%c0_30, %c0_31, %c0_32], %98 {strides = array<i32>} : memref<1x1x5xf32, #tpu.memory_space<vmem>>, vector<1x1x4xf32>,
    %c0_33 = arith.constant 0 : index
    %c0_34 = arith.constant 0 : index
    %99 = vector.load %arg12[%c0_33, %c0_34] : memref<256x1xf32, #tpu.memory_space<vmem>>, vector<256x1xf32>
    %cst_35 = arith.constant dense<0.000000e+00> : vector<1x1xf32>
    %100 = tpu.matmul %91, %99, %cst_35 {dimension_numbers = #tpu.dot_dimension_numbers<[1], [0], [0], [1], [0, 0, 1, 1], [], []>} : vector<1x256xf32>, vector<256x1xf32>, vector<1x1xf32> -> vector<1x1xf32>
    %c0_36 = arith.constant 0 : index
    %c0_37 = arith.constant 0 : index
    %101 = vector.load %arg13[%c0_36, %c0_37] : memref<1x1xf32, #tpu.memory_space<vmem>>, vector<1x1xf32>
    %102 = arith.addf %100, %101 : vector<1x1xf32>
    %c0_38 = arith.constant 0 : index
    %c0_39 = arith.constant 0 : index
    %c4 = arith.constant 4 : index
    %103 = vector.load %arg14[%c0_38, %c0_39, %c4] : memref<1x1x5xf32, #tpu.memory_space<vmem>>, vector<1x1x1xf32>
    %104 = vector.shape_cast %103 : vector<1x1x1xf32> to vector<1x1xf32>
    %105 = vector.shape_cast %102 : vector<1x1xf32> to vector<1x1x1xf32>
    tpu.vector_store %arg14[%c0_38, %c0_39, %c4], %105 {strides = array<i32>} : memref<1x1x5xf32, #tpu.memory_space<vmem>>, vector<1x1x1xf32>,
    return
  }
  func.func @transform_0(%arg0: i32) -> (i32, i32, i32) {
    %c0_i32 = arith.constant 0 : i32
    %c0_i32_0 = arith.constant 0 : i32
    %c0_i32_1 = arith.constant 0 : i32
    return %arg0, %c0_i32, %c0_i32_0 : i32, i32, i32
  }
  func.func @transform_1(%arg0: i32) -> (i32, i32) {
    %c0_i32 = arith.constant 0 : i32
    %c0_i32_0 = arith.constant 0 : i32
    %c0_i32_1 = arith.constant 0 : i32
    return %c0_i32, %c0_i32_0 : i32, i32
  }
  func.func @transform_2(%arg0: i32) -> (i32, i32) {
    %c0_i32 = arith.constant 0 : i32
    %c0_i32_0 = arith.constant 0 : i32
    %c0_i32_1 = arith.constant 0 : i32
    return %c0_i32, %c0_i32_0 : i32, i32
  }
  func.func @transform_3(%arg0: i32) -> (i32, i32) {
    %c0_i32 = arith.constant 0 : i32
    %c0_i32_0 = arith.constant 0 : i32
    %c0_i32_1 = arith.constant 0 : i32
    return %c0_i32, %c0_i32_0 : i32, i32
  }
  func.func @transform_4(%arg0: i32) -> (i32, i32) {
    %c0_i32 = arith.constant 0 : i32
    %c0_i32_0 = arith.constant 0 : i32
    %c0_i32_1 = arith.constant 0 : i32
    return %c0_i32, %c0_i32_0 : i32, i32
  }
  func.func @transform_5(%arg0: i32) -> (i32, i32) {
    %c0_i32 = arith.constant 0 : i32
    %c0_i32_0 = arith.constant 0 : i32
    %c0_i32_1 = arith.constant 0 : i32
    return %c0_i32, %c0_i32_0 : i32, i32
  }
  func.func @transform_6(%arg0: i32) -> (i32, i32) {
    %c0_i32 = arith.constant 0 : i32
    %c0_i32_0 = arith.constant 0 : i32
    %c0_i32_1 = arith.constant 0 : i32
    return %c0_i32, %c0_i32_0 : i32, i32
  }
  func.func @transform_7(%arg0: i32) -> (i32, i32) {
    %c0_i32 = arith.constant 0 : i32
    %c0_i32_0 = arith.constant 0 : i32
    %c0_i32_1 = arith.constant 0 : i32
    return %c0_i32, %c0_i32_0 : i32, i32
  }
  func.func @transform_8(%arg0: i32) -> (i32, i32) {
    %c0_i32 = arith.constant 0 : i32
    %c0_i32_0 = arith.constant 0 : i32
    %c0_i32_1 = arith.constant 0 : i32
    return %c0_i32, %c0_i32_0 : i32, i32
  }
  func.func @transform_9(%arg0: i32) -> (i32, i32) {
    %c0_i32 = arith.constant 0 : i32
    %c0_i32_0 = arith.constant 0 : i32
    %c0_i32_1 = arith.constant 0 : i32
    return %c0_i32, %c0_i32_0 : i32, i32
  }
  func.func @transform_10(%arg0: i32) -> (i32, i32) {
    %c0_i32 = arith.constant 0 : i32
    %c0_i32_0 = arith.constant 0 : i32
    %c0_i32_1 = arith.constant 0 : i32
    return %c0_i32, %c0_i32_0 : i32, i32
  }
  func.func @transform_11(%arg0: i32) -> (i32, i32) {
    %c0_i32 = arith.constant 0 : i32
    %c0_i32_0 = arith.constant 0 : i32
    %c0_i32_1 = arith.constant 0 : i32
    return %c0_i32, %c0_i32_0 : i32, i32
  }
  func.func @transform_12(%arg0: i32) -> (i32, i32) {
    %c0_i32 = arith.constant 0 : i32
    %c0_i32_0 = arith.constant 0 : i32
    %c0_i32_1 = arith.constant 0 : i32
    return %c0_i32, %c0_i32_0 : i32, i32
  }
  func.func @transform_13(%arg0: i32) -> (i32, i32, i32) {
    %c0_i32 = arith.constant 0 : i32
    %c0_i32_0 = arith.constant 0 : i32
    %c0_i32_1 = arith.constant 0 : i32
    return %arg0, %c0_i32, %c0_i32_0 : i32, i32, i32
  }
}

</mosaic_0001>

<llo_original>
// kernel: network_forward.2
$region0: #{network_forward.2}
  #allocation0 [shape = 'u32[]', space=smem, size = 0x4, offset = 0x4, fixed_abs, tag = 'smem constant byte address 0x4 - core index']
  #allocation1 [shape = 'u32[72,128]{1,0:T(1,128)}', space=vmem, size = 0x9000, scoped, tag = 'internal scratch']
  %s0 = inlined_call_operand.vmem [shape: f32[2,144,1444], index: 0, kind: input, shape index: {}]
  %s1 = inlined_call_operand.vmem [shape: f32[8,144], index: 1, kind: input, shape index: {}]
  %s2 = inlined_call_operand.vmem [shape: f32[8,1], index: 2, kind: input, shape index: {}]
  %s3 = inlined_call_operand.vmem [shape: f32[2,8,1444], index: 3, kind: output, shape index: {}]
  %s4 = sld [smem:[#allocation0]]
  $region45: #{network_forward.2} parent=0
    _
  %s6 = ssub.s32 1, %s4
  %s7 = scalar_select 0, %s6, %s4
  loop: start=0, step=1, limit=4
  $region2: #{network_forward.2} parent=0 // loop_pre_header
    _
  $region3: #{network_forward.2} parent=0 // loop_header
    %s9 = sphi 0, %s13
    %p10 = scmp.ge.s32.totalorder %s9, 4
    %s19 = sphi 0, %s21
    %s22 = sphi 0, %s19
    %s23 = sphi 0, %s22
    %s39 = sphi 0, %s23
    %s43 = sphi 0, %s43
    %s45 = sphi 0, %s43
    %s46 = sphi 0, %s45
    %s60 = sphi 0, %s46
    %s64 = sphi 0, %s64
    %s66 = sphi 0, %s64
    %s67 = sphi 0, %s66
    %s81 = sphi 0, %s67
    %s87 = sphi 0, %s89
    %s90 = sphi 0, %s87
    %s91 = sphi 0, %s90
    %s107 = sphi 0, %s91
  $region4: #{network_forward.2} parent=0 // loop_header_branch
    %12 = sbr.rel (%p10) target = $region8
  $region5: #{network_forward.2} parent=0 // loop_body
    %s14 = ssub.s32 %s9, 1
    %s15 = ssub.s32 %s9, 2
    %s16 = sadd.s32 %s9, 1
    %s17 = ssub.s32 %s9, %s16
    %p18 = scmp.eq.s32.totalorder %s17, 0
    %s20 = sadd.s32 %s19, 1
    %s21 = scalar_select %p18, %s19, %s20
    %p24 = pneg %p18
    %p25 = scmp.eq.s32.totalorder %s9, 1
    %p26 = por %p24, %p25
    %p27 = scmp.ne.s32.totalorder %s19, %s22
    %p28 = scmp.eq.s32.totalorder %s9, 0
    %p29 = por %p27, %p28
    %p30 = scmp.ne.s32.totalorder %s19, %s22
    %p31 = scmp.eq.s32.totalorder %s14, 1
    %p32 = por %p30, %p31
    %p33 = scmp.ne.s32.totalorder %s22, %s23
    %p34 = scmp.eq.s32.totalorder %s14, 0
    %p35 = por %p33, %p34
    %p36 = scmp.ne.s32.totalorder %s22, %s23
    %p37 = scmp.eq.s32.totalorder %s15, 1
    %p38 = por %p36, %p37
    %p40 = scmp.ne.s32.totalorder %s23, %s39
    %p41 = scmp.eq.s32.totalorder %s15, 0
    %p42 = por %p40, %p41
    %s44 = sadd.s32 %s43, 1
    %p47 = scmp.eq.s32.totalorder %s9, 1
    %p48 = scmp.ne.s32.totalorder %s43, %s45
    %p49 = scmp.eq.s32.totalorder %s9, 0
    %p50 = por %p48, %p49
    %p51 = scmp.ne.s32.totalorder %s43, %s45
    %p52 = scmp.eq.s32.totalorder %s14, 1
    %p53 = por %p51, %p52
    %p54 = scmp.ne.s32.totalorder %s45, %s46
    %p55 = scmp.eq.s32.totalorder %s14, 0
    %p56 = por %p54, %p55
    %p57 = scmp.ne.s32.totalorder %s45, %s46
    %p58 = scmp.eq.s32.totalorder %s15, 1
    %p59 = por %p57, %p58
    %p61 = scmp.ne.s32.totalorder %s46, %s60
    %p62 = scmp.eq.s32.totalorder %s15, 0
    %p63 = por %p61, %p62
    %s65 = sadd.s32 %s64, 1
    %p68 = scmp.eq.s32.totalorder %s9, 1
    %p69 = scmp.ne.s32.totalorder %s64, %s66
    %p70 = scmp.eq.s32.totalorder %s9, 0
    %p71 = por %p69, %p70
    %p72 = scmp.ne.s32.totalorder %s64, %s66
    %p73 = scmp.eq.s32.totalorder %s14, 1
    %p74 = por %p72, %p73
    %p75 = scmp.ne.s32.totalorder %s66, %s67
    %p76 = scmp.eq.s32.totalorder %s14, 0
    %p77 = por %p75, %p76
    %p78 = scmp.ne.s32.totalorder %s66, %s67
    %p79 = scmp.eq.s32.totalorder %s15, 1
    %p80 = por %p78, %p79
    %p82 = scmp.ne.s32.totalorder %s67, %s81
    %p83 = scmp.eq.s32.totalorder %s15, 0
    %p84 = por %p82, %p83
    %s85 = ssub.s32 %s9, %s16
    %p86 = scmp.eq.s32.totalorder %s85, 0
    %s88 = sadd.s32 %s87, 1
    %s89 = scalar_select %p86, %s87, %s88
    %p92 = pneg %p86
    %p93 = scmp.eq.s32.totalorder %s9, 1
    %p94 = por %p92, %p93
    %p95 = scmp.ne.s32.totalorder %s87, %s90
    %p96 = scmp.eq.s32.totalorder %s9, 0
    %p97 = por %p95, %p96
    %p98 = scmp.ne.s32.totalorder %s87, %s90
    %p99 = scmp.eq.s32.totalorder %s14, 1
    %p100 = por %p98, %p99
    %p101 = scmp.ne.s32.totalorder %s90, %s91
    %p102 = scmp.eq.s32.totalorder %s14, 0
    %p103 = por %p101, %p102
    %p104 = scmp.ne.s32.totalorder %s90, %s91
    %p105 = scmp.eq.s32.totalorder %s15, 1
    %p106 = por %p104, %p105
    %p108 = scmp.ne.s32.totalorder %s91, %s107
    %p109 = scmp.eq.s32.totalorder %s15, 0
    %p110 = por %p108, %p109
    %p111 = scmp.le.s32.totalorder 1, %s9
    %p112 = scmp.lt.s32.totalorder %s9, 3
    %p113 = pnand %p111, %p112
    %p114 = pneg %p113
    // Predicated region
    $region9: #{network_forward.2} parent=5 // pred_check
      _
    $region10: #{network_forward.2} parent=5 // pred_check_branch
      %116 = sbr.rel (%p113) target = $region12
    $region11: #{network_forward.2} parent=5 // pred_region
      %s117 = ssub.s32 %s9, 1
      // Predicated region
      $region13: #{network_forward.2} parent=11 // pred_check
        %p118 = pneg %p56
      $region14: #{network_forward.2} parent=11 // pred_check_branch
        %120 = sbr.rel (%p118) target = $region16
      $region15: #{network_forward.2} parent=11 // pred_region
        _
      $region16: #{network_forward.2} parent=11 // pred_fallthru
        _
      // Predicated region
      $region17: #{network_forward.2} parent=11 // pred_check
        %p121 = pneg %p77
      $region18: #{network_forward.2} parent=11 // pred_check_branch
        %123 = sbr.rel (%p121) target = $region20
      $region19: #{network_forward.2} parent=11 // pred_region
        _
      $region20: #{network_forward.2} parent=11 // pred_fallthru
        _
    $region12: #{network_forward.2} parent=5 // pred_fallthru
      _
    %p124 = scmp.lt.s32.totalorder %s9, 2
    // Predicated region
    $region21: #{network_forward.2} parent=5 // pred_check
      %p125 = pneg %p124
    $region22: #{network_forward.2} parent=5 // pred_check_branch
      %127 = sbr.rel (%p125) target = $region24
    $region23: #{network_forward.2} parent=5 // pred_region
      // Predicated region
      $region25: #{network_forward.2} parent=23 // pred_check
        %p128 = pneg %p29
      $region26: #{network_forward.2} parent=23 // pred_check_branch
        %130 = sbr.rel (%p128) target = $region28
      $region27: #{network_forward.2} parent=23 // pred_region
        %p131 = scmp.lt.s32.totalorder %s9, 1
        %s132 = scalar_select %p131, %s9, 1
        %s133 = smul.addr %s132, 216
        %s134 = smul.addr %s133, 8
        %s135 = scalar_lea.vmem %s0, %s134
      $region28: #{network_forward.2} parent=23 // pred_fallthru
        _
    $region24: #{network_forward.2} parent=5 // pred_fallthru
      _
    %p136 = scmp.le.s32.totalorder 1, %s9
    %p137 = scmp.lt.s32.totalorder %s9, 3
    %p138 = pnand %p136, %p137
    %p139 = pneg %p138
    // Predicated region
    $region29: #{network_forward.2} parent=5 // pred_check
      _
    $region30: #{network_forward.2} parent=5 // pred_check_branch
      %141 = sbr.rel (%p138) target = $region32
    $region31: #{network_forward.2} parent=5 // pred_region
      %s142 = ssub.s32 %s9, 1
      %p143 = scmp.lt.s32.totalorder %s14, 1
      %s144 = scalar_select %p143, %s14, 1
      %s145 = smul.addr %s144, 216
      %s146 = smul.addr %s145, 8
      %s147 = scalar_lea.vmem %s0, %s146
      %p148 = pneg %p35
      %p149 = pneg %p32
      %p150 = pneg %p56
      %p151 = pneg %p53
      %p152 = pneg %p77
      %p153 = pneg %p74
      %p154 = pneg %p103
      %p155 = pneg %p100
      %p156 = scmp.lt.s32.totalorder %s14, 1
      %s157 = scalar_select %p156, %s14, 1
      %s158 = smul.addr %s157, 12
      %s159 = smul.addr %s158, 8
      %s160 = scalar_lea.vmem %s3, %s159
      %p161 = scmp.lt.s32.totalorder %s14, 1
      %s162 = scalar_select %p161, %s14, 1
      %s163 = smul.addr %s162, 216
      %s164 = smul.addr %s163, 8
      %s165 = scalar_lea.vmem %s0, %s164
      %p166 = scmp.lt.s32.totalorder %s14, 1
      %s167 = scalar_select %p166, %s14, 1
      %s168 = smul.addr %s167, 12
      %s169 = smul.addr %s168, 8
      %s170 = scalar_lea.vmem %s3, %s169
      %v171 = vld [vmem:[%s1] sm:$0xff]
      %v172 = vld [vmem:[%s1 + $0x8] sm:$0xff]
      %v173 = vld [vmem:[%s165] sm:$0xff]
      %v174 = vld [vmem:[%s165 + $0x8] sm:$0xff]
      %v175 = vld [vmem:[%s165 + $0x10] sm:$0xff]
      %v176 = vld [vmem:[%s165 + $0x18] sm:$0xff]
      %v177 = vld [vmem:[%s165 + $0x20] sm:$0xff]
      %v178 = vld [vmem:[%s165 + $0x28] sm:$0xff]
      %v179 = vld [vmem:[%s165 + $0x30] sm:$0xff]
      %v180 = vld [vmem:[%s165 + $0x38] sm:$0xff]
      %v181 = vld [vmem:[%s165 + $0x40] sm:$0xff]
      %v182 = vld [vmem:[%s165 + $0x48] sm:$0xff]
      %v183 = vld [vmem:[%s165 + $0x50] sm:$0xff]
      %v184 = vld [vmem:[%s165 + $0x58] sm:$0xff]
      %v185 = vld [vmem:[%s165 + $0x60] sm:$0xff]
      %v186 = vld [vmem:[%s165 + $0x68] sm:$0xff]
      %v187 = vld [vmem:[%s165 + $0x70] sm:$0xff]
      %v188 = vld [vmem:[%s165 + $0x78] sm:$0xff]
      %v189 = vld [vmem:[%s165 + $0x80] sm:$0xff]
      %v190 = vld [vmem:[%s165 + $0x88] sm:$0xff]
      %v191 = vld [vmem:[%s165 + $0x90] sm:$0xff]
      %v192 = vld [vmem:[%s165 + $0x98] sm:$0xff]
      %v193 = vld [vmem:[%s165 + $0xa0] sm:$0xff]
      %v194 = vld [vmem:[%s165 + $0xa8] sm:$0xff]
      %v195 = vld [vmem:[%s165 + $0xb0] sm:$0xff]
      %v196 = vld [vmem:[%s165 + $0xb8] sm:$0xff]
      %v197 = vld [vmem:[%s165 + $0xc0] sm:$0xff]
      %v198 = vld [vmem:[%s165 + $0xc8] sm:$0xff]
      %v199 = vld [vmem:[%s165 + $0xd0] sm:$0xff]
      %v200 = vld [vmem:[%s165 + $0xd8] sm:$0xff]
      %v201 = vld [vmem:[%s165 + $0xe0] sm:$0xff]
      %v202 = vld [vmem:[%s165 + $0xe8] sm:$0xff]
      %v203 = vld [vmem:[%s165 + $0xf0] sm:$0xff]
      %v204 = vld [vmem:[%s165 + $0xf8] sm:$0xff]
      %v205 = vld [vmem:[%s165 + $0x100] sm:$0xff]
      %v206 = vld [vmem:[%s165 + $0x108] sm:$0xff]
      %v207 = vld [vmem:[%s165 + $0x110] sm:$0xff]
      %v208 = vld [vmem:[%s165 + $0x118] sm:$0xff]
      %v209 = vld [vmem:[%s165 + $0x120] sm:$0xff]
      %v210 = vld [vmem:[%s165 + $0x128] sm:$0xff]
      %v211 = vld [vmem:[%s165 + $0x130] sm:$0xff]
      %v212 = vld [vmem:[%s165 + $0x138] sm:$0xff]
      %v213 = vld [vmem:[%s165 + $0x140] sm:$0xff]
      %v214 = vld [vmem:[%s165 + $0x148] sm:$0xff]
      %v215 = vld [vmem:[%s165 + $0x150] sm:$0xff]
      %v216 = vld [vmem:[%s165 + $0x158] sm:$0xff]
      %v217 = vld [vmem:[%s165 + $0x160] sm:$0xff]
      %v218 = vld [vmem:[%s165 + $0x168] sm:$0xff]
      %v219 = vld [vmem:[%s165 + $0x170] sm:$0xff]
      %v220 = vld [vmem:[%s165 + $0x178] sm:$0xff]
      %v221 = vld [vmem:[%s165 + $0x180] sm:$0xff]
      %v222 = vld [vmem:[%s165 + $0x188] sm:$0xff]
      %v223 = vld [vmem:[%s165 + $0x190] sm:$0xff]
      %v224 = vld [vmem:[%s165 + $0x198] sm:$0xff]
      %v225 = vld [vmem:[%s165 + $0x1a0] sm:$0xff]
      %v226 = vld [vmem:[%s165 + $0x1a8] sm:$0xff]
      %v227 = vld [vmem:[%s165 + $0x1b0] sm:$0xff]
      %v228 = vld [vmem:[%s165 + $0x1b8] sm:$0xff]
      %v229 = vld [vmem:[%s165 + $0x1c0] sm:$0xff]
      %v230 = vld [vmem:[%s165 + $0x1c8] sm:$0xff]
      %v231 = vld [vmem:[%s165 + $0x1d0] sm:$0xff]
      %v232 = vld [vmem:[%s165 + $0x1d8] sm:$0xff]
      %v233 = vld [vmem:[%s165 + $0x1e0] sm:$0xff]
      %v234 = vld [vmem:[%s165 + $0x1e8] sm:$0xff]
      %v235 = vld [vmem:[%s165 + $0x1f0] sm:$0xff]
      %v236 = vld [vmem:[%s165 + $0x1f8] sm:$0xff]
      %v237 = vld [vmem:[%s165 + $0x200] sm:$0xff]
      %v238 = vld [vmem:[%s165 + $0x208] sm:$0xff]
      %v239 = vld [vmem:[%s165 + $0x210] sm:$0xff]
      %v240 = vld [vmem:[%s165 + $0x218] sm:$0xff]
      %v241 = vld [vmem:[%s165 + $0x220] sm:$0xff]
      %v242 = vld [vmem:[%s165 + $0x228] sm:$0xff]
      %v243 = vld [vmem:[%s165 + $0x230] sm:$0xff]
      %v244 = vld [vmem:[%s165 + $0x238] sm:$0xff]
      %v245 = vld [vmem:[%s165 + $0x240] sm:$0xff]
      %v246 = vld [vmem:[%s165 + $0x248] sm:$0xff]
      %v247 = vld [vmem:[%s165 + $0x250] sm:$0xff]
      %v248 = vld [vmem:[%s165 + $0x258] sm:$0xff]
      %v249 = vld [vmem:[%s165 + $0x260] sm:$0xff]
      %v250 = vld [vmem:[%s165 + $0x268] sm:$0xff]
      %v251 = vld [vmem:[%s165 + $0x270] sm:$0xff]
      %v252 = vld [vmem:[%s165 + $0x278] sm:$0xff]
      %v253 = vld [vmem:[%s165 + $0x280] sm:$0xff]
      %v254 = vld [vmem:[%s165 + $0x288] sm:$0xff]
      %v255 = vld [vmem:[%s165 + $0x290] sm:$0xff]
      %v256 = vld [vmem:[%s165 + $0x298] sm:$0xff]
      %v257 = vld [vmem:[%s165 + $0x2a0] sm:$0xff]
      %v258 = vld [vmem:[%s165 + $0x2a8] sm:$0xff]
      %v259 = vld [vmem:[%s165 + $0x2b0] sm:$0xff]
      %v260 = vld [vmem:[%s165 + $0x2b8] sm:$0xff]
      %v261 = vld [vmem:[%s165 + $0x2c0] sm:$0xff]
      %v262 = vld [vmem:[%s165 + $0x2c8] sm:$0xff]
      %v263 = vld [vmem:[%s165 + $0x2d0] sm:$0xff]
      %v264 = vld [vmem:[%s165 + $0x2d8] sm:$0xff]
      %v265 = vld [vmem:[%s165 + $0x2e0] sm:$0xff]
      %v266 = vld [vmem:[%s165 + $0x2e8] sm:$0xff]
      %v267 = vld [vmem:[%s165 + $0x2f0] sm:$0xff]
      %v268 = vld [vmem:[%s165 + $0x2f8] sm:$0xff]
      %v269 = vld [vmem:[%s165 + $0x300] sm:$0xff]
      %v270 = vld [vmem:[%s165 + $0x308] sm:$0xff]
      %v271 = vld [vmem:[%s165 + $0x310] sm:$0xff]
      %v272 = vld [vmem:[%s165 + $0x318] sm:$0xff]
      %v273 = vld [vmem:[%s165 + $0x320] sm:$0xff]
      %v274 = vld [vmem:[%s165 + $0x328] sm:$0xff]
      %v275 = vld [vmem:[%s165 + $0x330] sm:$0xff]
      %v276 = vld [vmem:[%s165 + $0x338] sm:$0xff]
      %v277 = vld [vmem:[%s165 + $0x340] sm:$0xff]
      %v278 = vld [vmem:[%s165 + $0x348] sm:$0xff]
      %v279 = vld [vmem:[%s165 + $0x350] sm:$0xff]
      %v280 = vld [vmem:[%s165 + $0x358] sm:$0xff]
      %v281 = vld [vmem:[%s165 + $0x360] sm:$0xff]
      %v282 = vld [vmem:[%s165 + $0x368] sm:$0xff]
      %v283 = vld [vmem:[%s165 + $0x370] sm:$0xff]
      %v284 = vld [vmem:[%s165 + $0x378] sm:$0xff]
      %v285 = vld [vmem:[%s165 + $0x380] sm:$0xff]
      %v286 = vld [vmem:[%s165 + $0x388] sm:$0xff]
      %v287 = vld [vmem:[%s165 + $0x390] sm:$0xff]
      %v288 = vld [vmem:[%s165 + $0x398] sm:$0xff]
      %v289 = vld [vmem:[%s165 + $0x3a0] sm:$0xff]
      %v290 = vld [vmem:[%s165 + $0x3a8] sm:$0xff]
      %v291 = vld [vmem:[%s165 + $0x3b0] sm:$0xff]
      %v292 = vld [vmem:[%s165 + $0x3b8] sm:$0xff]
      %v293 = vld [vmem:[%s165 + $0x3c0] sm:$0xff]
      %v294 = vld [vmem:[%s165 + $0x3c8] sm:$0xff]
      %v295 = vld [vmem:[%s165 + $0x3d0] sm:$0xff]
      %v296 = vld [vmem:[%s165 + $0x3d8] sm:$0xff]
      %v297 = vld [vmem:[%s165 + $0x3e0] sm:$0xff]
      %v298 = vld [vmem:[%s165 + $0x3e8] sm:$0xff]
      %v299 = vld [vmem:[%s165 + $0x3f0] sm:$0xff]
      %v300 = vld [vmem:[%s165 + $0x3f8] sm:$0xff]
      %v301 = vld [vmem:[%s165 + $0x400] sm:$0xff]
      %v302 = vld [vmem:[%s165 + $0x408] sm:$0xff]
      %v303 = vld [vmem:[%s165 + $0x410] sm:$0xff]
      %v304 = vld [vmem:[%s165 + $0x418] sm:$0xff]
      %v305 = vld [vmem:[%s165 + $0x420] sm:$0xff]
      %v306 = vld [vmem:[%s165 + $0x428] sm:$0xff]
      %v307 = vld [vmem:[%s165 + $0x430] sm:$0xff]
      %v308 = vld [vmem:[%s165 + $0x438] sm:$0xff]
      %v309 = vld [vmem:[%s165 + $0x440] sm:$0xff]
      %v310 = vld [vmem:[%s165 + $0x448] sm:$0xff]
      %v311 = vld [vmem:[%s165 + $0x450] sm:$0xff]
      %v312 = vld [vmem:[%s165 + $0x458] sm:$0xff]
      %v313 = vld [vmem:[%s165 + $0x460] sm:$0xff]
      %v314 = vld [vmem:[%s165 + $0x468] sm:$0xff]
      %v315 = vld [vmem:[%s165 + $0x470] sm:$0xff]
      %v316 = vld [vmem:[%s165 + $0x478] sm:$0xff]
      %v317 = vld [vmem:[%s165 + $0x480] sm:$0xff]
      %v318 = vld [vmem:[%s165 + $0x488] sm:$0xff]
      %v319 = vld [vmem:[%s165 + $0x490] sm:$0xff]
      %v320 = vld [vmem:[%s165 + $0x498] sm:$0xff]
      %v321 = vld [vmem:[%s165 + $0x4a0] sm:$0xff]
      %v322 = vld [vmem:[%s165 + $0x4a8] sm:$0xff]
      %v323 = vld [vmem:[%s165 + $0x4b0] sm:$0xff]
      %v324 = vld [vmem:[%s165 + $0x4b8] sm:$0xff]
      %v325 = vld [vmem:[%s165 + $0x4c0] sm:$0xff]
      %v326 = vld [vmem:[%s165 + $0x4c8] sm:$0xff]
      %v327 = vld [vmem:[%s165 + $0x4d0] sm:$0xff]
      %v328 = vld [vmem:[%s165 + $0x4d8] sm:$0xff]
      %v329 = vld [vmem:[%s165 + $0x4e0] sm:$0xff]
      %v330 = vld [vmem:[%s165 + $0x4e8] sm:$0xff]
      %v331 = vld [vmem:[%s165 + $0x4f0] sm:$0xff]
      %v332 = vld [vmem:[%s165 + $0x4f8] sm:$0xff]
      %v333 = vld [vmem:[%s165 + $0x500] sm:$0xff]
      %v334 = vld [vmem:[%s165 + $0x508] sm:$0xff]
      %v335 = vld [vmem:[%s165 + $0x510] sm:$0xff]
      %v336 = vld [vmem:[%s165 + $0x518] sm:$0xff]
      %v337 = vld [vmem:[%s165 + $0x520] sm:$0xff]
      %v338 = vld [vmem:[%s165 + $0x528] sm:$0xff]
      %v339 = vld [vmem:[%s165 + $0x530] sm:$0xff]
      %v340 = vld [vmem:[%s165 + $0x538] sm:$0xff]
      %v341 = vld [vmem:[%s165 + $0x540] sm:$0xff]
      %v342 = vld [vmem:[%s165 + $0x548] sm:$0xff]
      %v343 = vld [vmem:[%s165 + $0x550] sm:$0xff]
      %v344 = vld [vmem:[%s165 + $0x558] sm:$0xff]
      %v345 = vld [vmem:[%s165 + $0x560] sm:$0xff]
      %v346 = vld [vmem:[%s165 + $0x568] sm:$0xff]
      %v347 = vld [vmem:[%s165 + $0x570] sm:$0xff]
      %v348 = vld [vmem:[%s165 + $0x578] sm:$0xff]
      %v349 = vld [vmem:[%s165 + $0x580] sm:$0xff]
      %v350 = vld [vmem:[%s165 + $0x588] sm:$0xff]
      %v351 = vld [vmem:[%s165 + $0x590] sm:$0xff]
      %v352 = vld [vmem:[%s165 + $0x598] sm:$0xff]
      %v353 = vld [vmem:[%s165 + $0x5a0] sm:$0xff]
      %v354 = vld [vmem:[%s165 + $0x5a8] sm:$0xff]
      %v355 = vld [vmem:[%s165 + $0x5b0] sm:$0xff]
      %v356 = vld [vmem:[%s165 + $0x5b8] sm:$0xff]
      %v357 = vld [vmem:[%s165 + $0x5c0] sm:$0xff]
      %v358 = vld [vmem:[%s165 + $0x5c8] sm:$0xff]
      %v359 = vld [vmem:[%s165 + $0x5d0] sm:$0xff]
      %v360 = vld [vmem:[%s165 + $0x5d8] sm:$0xff]
      %v361 = vld [vmem:[%s165 + $0x5e0] sm:$0xff]
      %v362 = vld [vmem:[%s165 + $0x5e8] sm:$0xff]
      %v363 = vld [vmem:[%s165 + $0x5f0] sm:$0xff]
      %v364 = vld [vmem:[%s165 + $0x5f8] sm:$0xff]
      %v365 = vld [vmem:[%s165 + $0x600] sm:$0xff]
      %v366 = vld [vmem:[%s165 + $0x608] sm:$0xff]
      %v367 = vld [vmem:[%s165 + $0x610] sm:$0xff]
      %v368 = vld [vmem:[%s165 + $0x618] sm:$0xff]
      %v369 = vld [vmem:[%s165 + $0x620] sm:$0xff]
      %v370 = vld [vmem:[%s165 + $0x628] sm:$0xff]
      %v371 = vld [vmem:[%s165 + $0x630] sm:$0xff]
      %v372 = vld [vmem:[%s165 + $0x638] sm:$0xff]
      %v373 = vld [vmem:[%s165 + $0x640] sm:$0xff]
      %v374 = vld [vmem:[%s165 + $0x648] sm:$0xff]
      %v375 = vld [vmem:[%s165 + $0x650] sm:$0xff]
      %v376 = vld [vmem:[%s165 + $0x658] sm:$0xff]
      %v377 = vld [vmem:[%s165 + $0x660] sm:$0xff]
      %v378 = vld [vmem:[%s165 + $0x668] sm:$0xff]
      %v379 = vld [vmem:[%s165 + $0x670] sm:$0xff]
      %v380 = vld [vmem:[%s165 + $0x678] sm:$0xff]
      %v381 = vld [vmem:[%s165 + $0x680] sm:$0xff]
      %v382 = vld [vmem:[%s165 + $0x688] sm:$0xff]
      %v383 = vld [vmem:[%s165 + $0x690] sm:$0xff]
      %v384 = vld [vmem:[%s165 + $0x698] sm:$0xff]
      %v385 = vld [vmem:[%s165 + $0x6a0] sm:$0xff]
      %v386 = vld [vmem:[%s165 + $0x6a8] sm:$0xff]
      %v387 = vld [vmem:[%s165 + $0x6b0] sm:$0xff]
      %v388 = vld [vmem:[%s165 + $0x6b8] sm:$0xff]
      %v389 = vld [vmem:[%s2] sm:$0xff]
      %391 = vset.pattern.permute.xlu0 0
      %392 = vperm.xlu0 %391, %v389
      %v393 = vpop.permute.xlu0 %392
      %vm395 = vcmask 130048
      %v397 = vsel %vm395, %v172, 0
      %399 = vmatpush.msra.mxu0 %v353
      %400 = vmatpush.msra.mxu0 %v341
      %401 = vmatpush.msra.mxu0 %v329
      %402 = vmatpush.msra.mxu0 %v317
      %403 = vmatpush.msra.mxu0 %v305
      %404 = vmatpush.msra.mxu0 %v293
      %405 = vmatpush.msra.mxu0 %v281
      %406 = vmatpush.msra.mxu0 %v269
      %407 = vmatpush.msra.mxu0 %v257
      %408 = vmatpush.msra.mxu0 %v245
      %409 = vmatpush.msra.mxu0 %v233
      %410 = vmatpush.msra.mxu0 %v221
      %411 = vmatpush.msra.mxu0 %v209
      %412 = vmatpush.msra.mxu0 %v197
      %413 = vmatpush.msra.mxu0 %v185
      %414 = vmatpush.msra.mxu0 %v173
      %415 = vmatmul.f32.gmra.mxu0 %v171
      %v416 = vpop.f32.mrf.mxu0
      %v417 = vadd.f32 %v393, %v416
      %418 = vdwg.mxu0
      %419 = vmatpush.msra.mxu0 0.0
      %420 = vmatpush.msra.mxu0 0.0
      %421 = vmatpush.msra.mxu0 0.0
      %422 = vmatpush.msra.mxu0 0.0
      %423 = vmatpush.msra.mxu0 0.0
      %424 = vmatpush.msra.mxu0 0.0
      %425 = vmatpush.msra.mxu0 0.0
      %426 = vmatpush.msra.mxu0 0.0
      %427 = vmatpush.msra.mxu0 0.0
      %428 = vmatpush.msra.mxu0 0.0
      %429 = vmatpush.msra.mxu0 0.0
      %430 = vmatpush.msra.mxu0 0.0
      %431 = vmatpush.msra.mxu0 0.0
      %432 = vmatpush.msra.mxu0 0.0
      %433 = vmatpush.msra.mxu0 %v377
      %434 = vmatpush.msra.mxu0 %v365
      %435 = vmatmul.f32.gmra.mxu0 %v397
      %v436 = vpop.f32.mrf.mxu0
      %v437 = vadd.f32 %v417, %v436
      %438 = vdwg.mxu0
      %439 = vmatpush.msra.mxu0 %v354
      %440 = vmatpush.msra.mxu0 %v342
      %441 = vmatpush.msra.mxu0 %v330
      %442 = vmatpush.msra.mxu0 %v318
      %443 = vmatpush.msra.mxu0 %v306
      %444 = vmatpush.msra.mxu0 %v294
      %445 = vmatpush.msra.mxu0 %v282
      %446 = vmatpush.msra.mxu0 %v270
      %447 = vmatpush.msra.mxu0 %v258
      %448 = vmatpush.msra.mxu0 %v246
      %449 = vmatpush.msra.mxu0 %v234
      %450 = vmatpush.msra.mxu0 %v222
      %451 = vmatpush.msra.mxu0 %v210
      %452 = vmatpush.msra.mxu0 %v198
      %453 = vmatpush.msra.mxu0 %v186
      %454 = vmatpush.msra.mxu0 %v174
      %455 = vmatmul.f32.gmra.mxu0 %v171
      %v456 = vpop.f32.mrf.mxu0
      %v457 = vadd.f32 %v393, %v456
      %458 = vdwg.mxu0
      %459 = vmatpush.msra.mxu0 0.0
      %460 = vmatpush.msra.mxu0 0.0
      %461 = vmatpush.msra.mxu0 0.0
      %462 = vmatpush.msra.mxu0 0.0
      %463 = vmatpush.msra.mxu0 0.0
      %464 = vmatpush.msra.mxu0 0.0
      %465 = vmatpush.msra.mxu0 0.0
      %466 = vmatpush.msra.mxu0 0.0
      %467 = vmatpush.msra.mxu0 0.0
      %468 = vmatpush.msra.mxu0 0.0
      %469 = vmatpush.msra.mxu0 0.0
      %470 = vmatpush.msra.mxu0 0.0
      %471 = vmatpush.msra.mxu0 0.0
      %472 = vmatpush.msra.mxu0 0.0
      %473 = vmatpush.msra.mxu0 %v378
      %474 = vmatpush.msra.mxu0 %v366
      %475 = vmatmul.f32.gmra.mxu0 %v397
      %v476 = vpop.f32.mrf.mxu0
      %v477 = vadd.f32 %v457, %v476
      %478 = vdwg.mxu0
      %479 = vmatpush.msra.mxu0 %v355
      %480 = vmatpush.msra.mxu0 %v343
      %481 = vmatpush.msra.mxu0 %v331
      %482 = vmatpush.msra.mxu0 %v319
      %483 = vmatpush.msra.mxu0 %v307
      %484 = vmatpush.msra.mxu0 %v295
      %485 = vmatpush.msra.mxu0 %v283
      %486 = vmatpush.msra.mxu0 %v271
      %487 = vmatpush.msra.mxu0 %v259
      %488 = vmatpush.msra.mxu0 %v247
      %489 = vmatpush.msra.mxu0 %v235
      %490 = vmatpush.msra.mxu0 %v223
      %491 = vmatpush.msra.mxu0 %v211
      %492 = vmatpush.msra.mxu0 %v199
      %493 = vmatpush.msra.mxu0 %v187
      %494 = vmatpush.msra.mxu0 %v175
      %495 = vmatmul.f32.gmra.mxu0 %v171
      %v496 = vpop.f32.mrf.mxu0
      %v497 = vadd.f32 %v393, %v496
      %498 = vdwg.mxu0
      %499 = vmatpush.msra.mxu0 0.0
      %500 = vmatpush.msra.mxu0 0.0
      %501 = vmatpush.msra.mxu0 0.0
      %502 = vmatpush.msra.mxu0 0.0
      %503 = vmatpush.msra.mxu0 0.0
      %504 = vmatpush.msra.mxu0 0.0
      %505 = vmatpush.msra.mxu0 0.0
      %506 = vmatpush.msra.mxu0 0.0
      %507 = vmatpush.msra.mxu0 0.0
      %508 = vmatpush.msra.mxu0 0.0
      %509 = vmatpush.msra.mxu0 0.0
      %510 = vmatpush.msra.mxu0 0.0
      %511 = vmatpush.msra.mxu0 0.0
      %512 = vmatpush.msra.mxu0 0.0
      %513 = vmatpush.msra.mxu0 %v379
      %514 = vmatpush.msra.mxu0 %v367
      %515 = vmatmul.f32.gmra.mxu0 %v397
      %v516 = vpop.f32.mrf.mxu0
      %v517 = vadd.f32 %v497, %v516
      %518 = vdwg.mxu0
      %519 = vmatpush.msra.mxu0 %v356
      %520 = vmatpush.msra.mxu0 %v344
      %521 = vmatpush.msra.mxu0 %v332
      %522 = vmatpush.msra.mxu0 %v320
      %523 = vmatpush.msra.mxu0 %v308
      %524 = vmatpush.msra.mxu0 %v296
      %525 = vmatpush.msra.mxu0 %v284
      %526 = vmatpush.msra.mxu0 %v272
      %527 = vmatpush.msra.mxu0 %v260
      %528 = vmatpush.msra.mxu0 %v248
      %529 = vmatpush.msra.mxu0 %v236
      %530 = vmatpush.msra.mxu0 %v224
      %531 = vmatpush.msra.mxu0 %v212
      %532 = vmatpush.msra.mxu0 %v200
      %533 = vmatpush.msra.mxu0 %v188
      %534 = vmatpush.msra.mxu0 %v176
      %535 = vmatmul.f32.gmra.mxu0 %v171
      %v536 = vpop.f32.mrf.mxu0
      %v537 = vadd.f32 %v393, %v536
      %538 = vdwg.mxu0
      %539 = vmatpush.msra.mxu0 0.0
      %540 = vmatpush.msra.mxu0 0.0
      %541 = vmatpush.msra.mxu0 0.0
      %542 = vmatpush.msra.mxu0 0.0
      %543 = vmatpush.msra.mxu0 0.0
      %544 = vmatpush.msra.mxu0 0.0
      %545 = vmatpush.msra.mxu0 0.0
      %546 = vmatpush.msra.mxu0 0.0
      %547 = vmatpush.msra.mxu0 0.0
      %548 = vmatpush.msra.mxu0 0.0
      %549 = vmatpush.msra.mxu0 0.0
      %550 = vmatpush.msra.mxu0 0.0
      %551 = vmatpush.msra.mxu0 0.0
      %552 = vmatpush.msra.mxu0 0.0
      %553 = vmatpush.msra.mxu0 %v380
      %554 = vmatpush.msra.mxu0 %v368
      %555 = vmatmul.f32.gmra.mxu0 %v397
      %v556 = vpop.f32.mrf.mxu0
      %v557 = vadd.f32 %v537, %v556
      %558 = vdwg.mxu0
      %559 = vmatpush.msra.mxu0 %v357
      %560 = vmatpush.msra.mxu0 %v345
      %561 = vmatpush.msra.mxu0 %v333
      %562 = vmatpush.msra.mxu0 %v321
      %563 = vmatpush.msra.mxu0 %v309
      %564 = vmatpush.msra.mxu0 %v297
      %565 = vmatpush.msra.mxu0 %v285
      %566 = vmatpush.msra.mxu0 %v273
      %567 = vmatpush.msra.mxu0 %v261
      %568 = vmatpush.msra.mxu0 %v249
      %569 = vmatpush.msra.mxu0 %v237
      %570 = vmatpush.msra.mxu0 %v225
      %571 = vmatpush.msra.mxu0 %v213
      %572 = vmatpush.msra.mxu0 %v201
      %573 = vmatpush.msra.mxu0 %v189
      %574 = vmatpush.msra.mxu0 %v177
      %575 = vmatmul.f32.gmra.mxu0 %v171
      %v576 = vpop.f32.mrf.mxu0
      %v577 = vadd.f32 %v393, %v576
      %578 = vdwg.mxu0
      %579 = vmatpush.msra.mxu0 0.0
      %580 = vmatpush.msra.mxu0 0.0
      %581 = vmatpush.msra.mxu0 0.0
      %582 = vmatpush.msra.mxu0 0.0
      %583 = vmatpush.msra.mxu0 0.0
      %584 = vmatpush.msra.mxu0 0.0
      %585 = vmatpush.msra.mxu0 0.0
      %586 = vmatpush.msra.mxu0 0.0
      %587 = vmatpush.msra.mxu0 0.0
      %588 = vmatpush.msra.mxu0 0.0
      %589 = vmatpush.msra.mxu0 0.0
      %590 = vmatpush.msra.mxu0 0.0
      %591 = vmatpush.msra.mxu0 0.0
      %592 = vmatpush.msra.mxu0 0.0
      %593 = vmatpush.msra.mxu0 %v381
      %594 = vmatpush.msra.mxu0 %v369
      %595 = vmatmul.f32.gmra.mxu0 %v397
      %v596 = vpop.f32.mrf.mxu0
      %v597 = vadd.f32 %v577, %v596
      %598 = vdwg.mxu0
      %599 = vmatpush.msra.mxu0 %v358
      %600 = vmatpush.msra.mxu0 %v346
      %601 = vmatpush.msra.mxu0 %v334
      %602 = vmatpush.msra.mxu0 %v322
      %603 = vmatpush.msra.mxu0 %v310
      %604 = vmatpush.msra.mxu0 %v298
      %605 = vmatpush.msra.mxu0 %v286
      %606 = vmatpush.msra.mxu0 %v274
      %607 = vmatpush.msra.mxu0 %v262
      %608 = vmatpush.msra.mxu0 %v250
      %609 = vmatpush.msra.mxu0 %v238
      %610 = vmatpush.msra.mxu0 %v226
      %611 = vmatpush.msra.mxu0 %v214
      %612 = vmatpush.msra.mxu0 %v202
      %613 = vmatpush.msra.mxu0 %v190
      %614 = vmatpush.msra.mxu0 %v178
      %615 = vmatmul.f32.gmra.mxu0 %v171
      %v616 = vpop.f32.mrf.mxu0
      %v617 = vadd.f32 %v393, %v616
      %618 = vdwg.mxu0
      %619 = vmatpush.msra.mxu0 0.0
      %620 = vmatpush.msra.mxu0 0.0
      %621 = vmatpush.msra.mxu0 0.0
      %622 = vmatpush.msra.mxu0 0.0
      %623 = vmatpush.msra.mxu0 0.0
      %624 = vmatpush.msra.mxu0 0.0
      %625 = vmatpush.msra.mxu0 0.0
      %626 = vmatpush.msra.mxu0 0.0
      %627 = vmatpush.msra.mxu0 0.0
      %628 = vmatpush.msra.mxu0 0.0
      %629 = vmatpush.msra.mxu0 0.0
      %630 = vmatpush.msra.mxu0 0.0
      %631 = vmatpush.msra.mxu0 0.0
      %632 = vmatpush.msra.mxu0 0.0
      %633 = vmatpush.msra.mxu0 %v382
      %634 = vmatpush.msra.mxu0 %v370
      %635 = vmatmul.f32.gmra.mxu0 %v397
      %v636 = vpop.f32.mrf.mxu0
      %v637 = vadd.f32 %v617, %v636
      %638 = vdwg.mxu0
      %639 = vmatpush.msra.mxu0 %v359
      %640 = vmatpush.msra.mxu0 %v347
      %641 = vmatpush.msra.mxu0 %v335
      %642 = vmatpush.msra.mxu0 %v323
      %643 = vmatpush.msra.mxu0 %v311
      %644 = vmatpush.msra.mxu0 %v299
      %645 = vmatpush.msra.mxu0 %v287
      %646 = vmatpush.msra.mxu0 %v275
      %647 = vmatpush.msra.mxu0 %v263
      %648 = vmatpush.msra.mxu0 %v251
      %649 = vmatpush.msra.mxu0 %v239
      %650 = vmatpush.msra.mxu0 %v227
      %651 = vmatpush.msra.mxu0 %v215
      %652 = vmatpush.msra.mxu0 %v203
      %653 = vmatpush.msra.mxu0 %v191
      %654 = vmatpush.msra.mxu0 %v179
      %655 = vmatmul.f32.gmra.mxu0 %v171
      %v656 = vpop.f32.mrf.mxu0
      %v657 = vadd.f32 %v393, %v656
      %658 = vdwg.mxu0
      %659 = vmatpush.msra.mxu0 0.0
      %660 = vmatpush.msra.mxu0 0.0
      %661 = vmatpush.msra.mxu0 0.0
      %662 = vmatpush.msra.mxu0 0.0
      %663 = vmatpush.msra.mxu0 0.0
      %664 = vmatpush.msra.mxu0 0.0
      %665 = vmatpush.msra.mxu0 0.0
      %666 = vmatpush.msra.mxu0 0.0
      %667 = vmatpush.msra.mxu0 0.0
      %668 = vmatpush.msra.mxu0 0.0
      %669 = vmatpush.msra.mxu0 0.0
      %670 = vmatpush.msra.mxu0 0.0
      %671 = vmatpush.msra.mxu0 0.0
      %672 = vmatpush.msra.mxu0 0.0
      %673 = vmatpush.msra.mxu0 %v383
      %674 = vmatpush.msra.mxu0 %v371
      %675 = vmatmul.f32.gmra.mxu0 %v397
      %v676 = vpop.f32.mrf.mxu0
      %v677 = vadd.f32 %v657, %v676
      %678 = vdwg.mxu0
      %679 = vmatpush.msra.mxu0 %v360
      %680 = vmatpush.msra.mxu0 %v348
      %681 = vmatpush.msra.mxu0 %v336
      %682 = vmatpush.msra.mxu0 %v324
      %683 = vmatpush.msra.mxu0 %v312
      %684 = vmatpush.msra.mxu0 %v300
      %685 = vmatpush.msra.mxu0 %v288
      %686 = vmatpush.msra.mxu0 %v276
      %687 = vmatpush.msra.mxu0 %v264
      %688 = vmatpush.msra.mxu0 %v252
      %689 = vmatpush.msra.mxu0 %v240
      %690 = vmatpush.msra.mxu0 %v228
      %691 = vmatpush.msra.mxu0 %v216
      %692 = vmatpush.msra.mxu0 %v204
      %693 = vmatpush.msra.mxu0 %v192
      %694 = vmatpush.msra.mxu0 %v180
      %695 = vmatmul.f32.gmra.mxu0 %v171
      %v696 = vpop.f32.mrf.mxu0
      %v697 = vadd.f32 %v393, %v696
      %698 = vdwg.mxu0
      %699 = vmatpush.msra.mxu0 0.0
      %700 = vmatpush.msra.mxu0 0.0
      %701 = vmatpush.msra.mxu0 0.0
      %702 = vmatpush.msra.mxu0 0.0
      %703 = vmatpush.msra.mxu0 0.0
      %704 = vmatpush.msra.mxu0 0.0
      %705 = vmatpush.msra.mxu0 0.0
      %706 = vmatpush.msra.mxu0 0.0
      %707 = vmatpush.msra.mxu0 0.0
      %708 = vmatpush.msra.mxu0 0.0
      %709 = vmatpush.msra.mxu0 0.0
      %710 = vmatpush.msra.mxu0 0.0
      %711 = vmatpush.msra.mxu0 0.0
      %712 = vmatpush.msra.mxu0 0.0
      %713 = vmatpush.msra.mxu0 %v384
      %714 = vmatpush.msra.mxu0 %v372
      %715 = vmatmul.f32.gmra.mxu0 %v397
      %v716 = vpop.f32.mrf.mxu0
      %v717 = vadd.f32 %v697, %v716
      %718 = vdwg.mxu0
      %719 = vmatpush.msra.mxu0 %v361
      %720 = vmatpush.msra.mxu0 %v349
      %721 = vmatpush.msra.mxu0 %v337
      %722 = vmatpush.msra.mxu0 %v325
      %723 = vmatpush.msra.mxu0 %v313
      %724 = vmatpush.msra.mxu0 %v301
      %725 = vmatpush.msra.mxu0 %v289
      %726 = vmatpush.msra.mxu0 %v277
      %727 = vmatpush.msra.mxu0 %v265
      %728 = vmatpush.msra.mxu0 %v253
      %729 = vmatpush.msra.mxu0 %v241
      %730 = vmatpush.msra.mxu0 %v229
      %731 = vmatpush.msra.mxu0 %v217
      %732 = vmatpush.msra.mxu0 %v205
      %733 = vmatpush.msra.mxu0 %v193
      %734 = vmatpush.msra.mxu0 %v181
      %735 = vmatmul.f32.gmra.mxu0 %v171
      %v736 = vpop.f32.mrf.mxu0
      %v737 = vadd.f32 %v393, %v736
      %738 = vdwg.mxu0
      %739 = vmatpush.msra.mxu0 0.0
      %740 = vmatpush.msra.mxu0 0.0
      %741 = vmatpush.msra.mxu0 0.0
      %742 = vmatpush.msra.mxu0 0.0
      %743 = vmatpush.msra.mxu0 0.0
      %744 = vmatpush.msra.mxu0 0.0
      %745 = vmatpush.msra.mxu0 0.0
      %746 = vmatpush.msra.mxu0 0.0
      %747 = vmatpush.msra.mxu0 0.0
      %748 = vmatpush.msra.mxu0 0.0
      %749 = vmatpush.msra.mxu0 0.0
      %750 = vmatpush.msra.mxu0 0.0
      %751 = vmatpush.msra.mxu0 0.0
      %752 = vmatpush.msra.mxu0 0.0
      %753 = vmatpush.msra.mxu0 %v385
      %754 = vmatpush.msra.mxu0 %v373
      %755 = vmatmul.f32.gmra.mxu0 %v397
      %v756 = vpop.f32.mrf.mxu0
      %v757 = vadd.f32 %v737, %v756
      %758 = vdwg.mxu0
      %759 = vmatpush.msra.mxu0 %v362
      %760 = vmatpush.msra.mxu0 %v350
      %761 = vmatpush.msra.mxu0 %v338
      %762 = vmatpush.msra.mxu0 %v326
      %763 = vmatpush.msra.mxu0 %v314
      %764 = vmatpush.msra.mxu0 %v302
      %765 = vmatpush.msra.mxu0 %v290
      %766 = vmatpush.msra.mxu0 %v278
      %767 = vmatpush.msra.mxu0 %v266
      %768 = vmatpush.msra.mxu0 %v254
      %769 = vmatpush.msra.mxu0 %v242
      %770 = vmatpush.msra.mxu0 %v230
      %771 = vmatpush.msra.mxu0 %v218
      %772 = vmatpush.msra.mxu0 %v206
      %773 = vmatpush.msra.mxu0 %v194
      %774 = vmatpush.msra.mxu0 %v182
      %775 = vmatmul.f32.gmra.mxu0 %v171
      %v776 = vpop.f32.mrf.mxu0
      %v777 = vadd.f32 %v393, %v776
      %778 = vdwg.mxu0
      %779 = vmatpush.msra.mxu0 0.0
      %780 = vmatpush.msra.mxu0 0.0
      %781 = vmatpush.msra.mxu0 0.0
      %782 = vmatpush.msra.mxu0 0.0
      %783 = vmatpush.msra.mxu0 0.0
      %784 = vmatpush.msra.mxu0 0.0
      %785 = vmatpush.msra.mxu0 0.0
      %786 = vmatpush.msra.mxu0 0.0
      %787 = vmatpush.msra.mxu0 0.0
      %788 = vmatpush.msra.mxu0 0.0
      %789 = vmatpush.msra.mxu0 0.0
      %790 = vmatpush.msra.mxu0 0.0
      %791 = vmatpush.msra.mxu0 0.0
      %792 = vmatpush.msra.mxu0 0.0
      %793 = vmatpush.msra.mxu0 %v386
      %794 = vmatpush.msra.mxu0 %v374
      %795 = vmatmul.f32.gmra.mxu0 %v397
      %v796 = vpop.f32.mrf.mxu0
      %v797 = vadd.f32 %v777, %v796
      %798 = vdwg.mxu0
      %799 = vmatpush.msra.mxu0 %v363
      %800 = vmatpush.msra.mxu0 %v351
      %801 = vmatpush.msra.mxu0 %v339
      %802 = vmatpush.msra.mxu0 %v327
      %803 = vmatpush.msra.mxu0 %v315
      %804 = vmatpush.msra.mxu0 %v303
      %805 = vmatpush.msra.mxu0 %v291
      %806 = vmatpush.msra.mxu0 %v279
      %807 = vmatpush.msra.mxu0 %v267
      %808 = vmatpush.msra.mxu0 %v255
      %809 = vmatpush.msra.mxu0 %v243
      %810 = vmatpush.msra.mxu0 %v231
      %811 = vmatpush.msra.mxu0 %v219
      %812 = vmatpush.msra.mxu0 %v207
      %813 = vmatpush.msra.mxu0 %v195
      %814 = vmatpush.msra.mxu0 %v183
      %815 = vmatmul.f32.gmra.mxu0 %v171
      %v816 = vpop.f32.mrf.mxu0
      %v817 = vadd.f32 %v393, %v816
      %818 = vdwg.mxu0
      %819 = vmatpush.msra.mxu0 0.0
      %820 = vmatpush.msra.mxu0 0.0
      %821 = vmatpush.msra.mxu0 0.0
      %822 = vmatpush.msra.mxu0 0.0
      %823 = vmatpush.msra.mxu0 0.0
      %824 = vmatpush.msra.mxu0 0.0
      %825 = vmatpush.msra.mxu0 0.0
      %826 = vmatpush.msra.mxu0 0.0
      %827 = vmatpush.msra.mxu0 0.0
      %828 = vmatpush.msra.mxu0 0.0
      %829 = vmatpush.msra.mxu0 0.0
      %830 = vmatpush.msra.mxu0 0.0
      %831 = vmatpush.msra.mxu0 0.0
      %832 = vmatpush.msra.mxu0 0.0
      %833 = vmatpush.msra.mxu0 %v387
      %834 = vmatpush.msra.mxu0 %v375
      %835 = vmatmul.f32.gmra.mxu0 %v397
      %v836 = vpop.f32.mrf.mxu0
      %v837 = vadd.f32 %v817, %v836
      %838 = vdwg.mxu0
      %839 = vmatpush.msra.mxu0 %v364
      %840 = vmatpush.msra.mxu0 %v352
      %841 = vmatpush.msra.mxu0 %v340
      %842 = vmatpush.msra.mxu0 %v328
      %843 = vmatpush.msra.mxu0 %v316
      %844 = vmatpush.msra.mxu0 %v304
      %845 = vmatpush.msra.mxu0 %v292
      %846 = vmatpush.msra.mxu0 %v280
      %847 = vmatpush.msra.mxu0 %v268
      %848 = vmatpush.msra.mxu0 %v256
      %849 = vmatpush.msra.mxu0 %v244
      %850 = vmatpush.msra.mxu0 %v232
      %851 = vmatpush.msra.mxu0 %v220
      %852 = vmatpush.msra.mxu0 %v208
      %853 = vmatpush.msra.mxu0 %v196
      %854 = vmatpush.msra.mxu0 %v184
      %855 = vmatmul.f32.gmra.mxu0 %v171
      %v856 = vpop.f32.mrf.mxu0
      %v857 = vadd.f32 %v393, %v856
      %858 = vdwg.mxu0
      %859 = vmatpush.msra.mxu0 0.0
      %860 = vmatpush.msra.mxu0 0.0
      %861 = vmatpush.msra.mxu0 0.0
      %862 = vmatpush.msra.mxu0 0.0
      %863 = vmatpush.msra.mxu0 0.0
      %864 = vmatpush.msra.mxu0 0.0
      %865 = vmatpush.msra.mxu0 0.0
      %866 = vmatpush.msra.mxu0 0.0
      %867 = vmatpush.msra.mxu0 0.0
      %868 = vmatpush.msra.mxu0 0.0
      %869 = vmatpush.msra.mxu0 0.0
      %870 = vmatpush.msra.mxu0 0.0
      %871 = vmatpush.msra.mxu0 0.0
      %872 = vmatpush.msra.mxu0 0.0
      %873 = vmatpush.msra.mxu0 %v388
      %874 = vmatpush.msra.mxu0 %v376
      %875 = vmatmul.f32.gmra.mxu0 %v397
      %v876 = vpop.f32.mrf.mxu0
      %v877 = vadd.f32 %v857, %v876
      %878 = vdwg.mxu0
      %v879 = vmax.f32 %v437, 0.0
      %v880 = vmax.f32 %v477, 0.0
      %v881 = vmax.f32 %v517, 0.0
      %v882 = vmax.f32 %v557, 0.0
      %v883 = vmax.f32 %v597, 0.0
      %v884 = vmax.f32 %v637, 0.0
      %v885 = vmax.f32 %v677, 0.0
      %v886 = vmax.f32 %v717, 0.0
      %v887 = vmax.f32 %v757, 0.0
      %v888 = vmax.f32 %v797, 0.0
      %v889 = vmax.f32 %v837, 0.0
      %v890 = vmax.f32 %v877, 0.0
      %891 = vst [vmem:[%s170] sm:$0xff] %v879
      %892 = vst [vmem:[%s170 + $0x8] sm:$0xff] %v880
      %893 = vst [vmem:[%s170 + $0x10] sm:$0xff] %v881
      %894 = vst [vmem:[%s170 + $0x18] sm:$0xff] %v882
      %895 = vst [vmem:[%s170 + $0x20] sm:$0xff] %v883
      %896 = vst [vmem:[%s170 + $0x28] sm:$0xff] %v884
      %897 = vst [vmem:[%s170 + $0x30] sm:$0xff] %v885
      %898 = vst [vmem:[%s170 + $0x38] sm:$0xff] %v886
      %899 = vst [vmem:[%s170 + $0x40] sm:$0xff] %v887
      %900 = vst [vmem:[%s170 + $0x48] sm:$0xff] %v888
      %901 = vst [vmem:[%s170 + $0x50] sm:$0xff] %v889
      %vm902 = vcmask 293888
      %903 = vst.msk [vmem:[%s170 + $0x58] sm:$0xff] %vm902, %v890
      %p904 = scmp.lt.s32.totalorder %s14, 1
      %s905 = scalar_select %p904, %s14, 1
      %s906 = smul.addr %s905, 12
      %s907 = smul.addr %s906, 8
      %s908 = scalar_lea.vmem %s3, %s907
      // Predicated region
      $region33: #{network_forward.2} parent=31 // pred_check
        %p909 = pneg %p100
      $region34: #{network_forward.2} parent=31 // pred_check_branch
        %911 = sbr.rel (%p909) target = $region36
      $region35: #{network_forward.2} parent=31 // pred_region
        _
      $region36: #{network_forward.2} parent=31 // pred_fallthru
        _
    $region32: #{network_forward.2} parent=5 // pred_fallthru
      _
    %p912 = scmp.le.s32.totalorder 2, %s9
    // Predicated region
    $region37: #{network_forward.2} parent=5 // pred_check
      %p913 = pneg %p912
    $region38: #{network_forward.2} parent=5 // pred_check_branch
      %915 = sbr.rel (%p913) target = $region40
    $region39: #{network_forward.2} parent=5 // pred_region
      %s916 = ssub.s32 %s9, 2
      // Predicated region
      $region41: #{network_forward.2} parent=39 // pred_check
        %p917 = pneg %p106
      $region42: #{network_forward.2} parent=39 // pred_check_branch
        %919 = sbr.rel (%p917) target = $region44
      $region43: #{network_forward.2} parent=39 // pred_region
        %p920 = scmp.lt.s32.totalorder %s15, 1
        %s921 = scalar_select %p920, %s15, 1
        %s922 = smul.addr %s921, 12
        %s923 = smul.addr %s922, 8
        %s924 = scalar_lea.vmem %s3, %s923
      $region44: #{network_forward.2} parent=39 // pred_fallthru
        _
    $region40: #{network_forward.2} parent=5 // pred_fallthru
      _
  $region6: #{network_forward.2} parent=0 // loop_footer
    %s13 = sadd.s32 1, %s9
  $region7: #{network_forward.2} parent=0 // loop_footer_branch
    %8 = sbr.rel target = $region3
  $region8: #{network_forward.2} parent=0 // loop_exit
    _

// kernel: network_forward.3
$region0: #{network_forward.3}
  #allocation0 [shape = 'u32[]', space=smem, size = 0x4, offset = 0x4, fixed_abs, tag = 'smem constant byte address 0x4 - core index']
  #allocation1 [shape = 'u32[72,128]{1,0:T(1,128)}', space=vmem, size = 0x9000, scoped, tag = 'internal scratch']
  #allocation2 [shape = 'f32[1,1]{1,0:T(1,128)S(1)}', space=vmem, size = 0x200, scoped, tag = 'scoped memory for network_forward.3']
  %s0 = inlined_call_operand.vmem [shape: f32[2,288,81], index: 0, kind: input, shape index: {}]
  %s1 = inlined_call_operand.vmem [shape: f32[16,144], index: 1, kind: input, shape index: {}]
  %s2 = inlined_call_operand.vmem [shape: f32[16,144], index: 2, kind: input, shape index: {}]
  %s3 = inlined_call_operand.vmem [shape: f32[16,1], index: 3, kind: input, shape index: {}]
  %s4 = inlined_call_operand.vmem [shape: f32[16,1], index: 4, kind: input, shape index: {}]
  %s5 = inlined_call_operand.vmem [shape: f32[81,4096], index: 5, kind: input, shape index: {}]
  %s6 = inlined_call_operand.vmem [shape: f32[81,4096], index: 6, kind: input, shape index: {}]
  %s7 = inlined_call_operand.vmem [shape: f32[1,256], index: 7, kind: input, shape index: {}]
  %s8 = inlined_call_operand.vmem [shape: f32[1,256], index: 8, kind: input, shape index: {}]
  %s9 = inlined_call_operand.vmem [shape: f32[256,4], index: 9, kind: input, shape index: {}]
  %s10 = inlined_call_operand.vmem [shape: f32[1,4], index: 10, kind: input, shape index: {}]
  %s11 = inlined_call_operand.vmem [shape: f32[256,1], index: 11, kind: input, shape index: {}]
  %s12 = inlined_call_operand.<no memory space> [shape: f32[1,1], index: 12, kind: input, shape index: {}]
  %s13 = inlined_call_operand.vmem [shape: f32[2,1,5], index: 13, kind: output, shape index: {}]
  %s14 = sld [smem:[#allocation0]]
  $region85: #{network_forward.3} parent=0
    _
  %s16 = ssub.s32 1, %s14
  %s17 = scalar_select 0, %s16, %s14
  %v18 = vstv %s12
  %19 = vst [vmem:[#allocation2] sm:$0x1] %v18
  loop: start=0, step=1, limit=4
  $region2: #{network_forward.3} parent=0 // loop_pre_header
    _
  $region3: #{network_forward.3} parent=0 // loop_header
    %s21 = sphi 0, %s25
    %p22 = scmp.ge.s32.totalorder %s21, 4
    %s31 = sphi 0, %s33
    %s34 = sphi 0, %s31
    %s35 = sphi 0, %s34
    %s51 = sphi 0, %s35
    %s55 = sphi 0, %s55
    %s57 = sphi 0, %s55
    %s58 = sphi 0, %s57
    %s72 = sphi 0, %s58
    %s76 = sphi 0, %s76
    %s78 = sphi 0, %s76
    %s79 = sphi 0, %s78
    %s93 = sphi 0, %s79
    %s97 = sphi 0, %s97
    %s99 = sphi 0, %s97
    %s100 = sphi 0, %s99
    %s114 = sphi 0, %s100
    %s118 = sphi 0, %s118
    %s120 = sphi 0, %s118
    %s121 = sphi 0, %s120
    %s135 = sphi 0, %s121
    %s139 = sphi 0, %s139
    %s141 = sphi 0, %s139
    %s142 = sphi 0, %s141
    %s156 = sphi 0, %s142
    %s160 = sphi 0, %s160
    %s162 = sphi 0, %s160
    %s163 = sphi 0, %s162
    %s177 = sphi 0, %s163
    %s181 = sphi 0, %s181
    %s183 = sphi 0, %s181
    %s184 = sphi 0, %s183
    %s198 = sphi 0, %s184
    %s202 = sphi 0, %s202
    %s204 = sphi 0, %s202
    %s205 = sphi 0, %s204
    %s219 = sphi 0, %s205
    %s223 = sphi 0, %s223
    %s225 = sphi 0, %s223
    %s226 = sphi 0, %s225
    %s240 = sphi 0, %s226
    %s244 = sphi 0, %s244
    %s246 = sphi 0, %s244
    %s247 = sphi 0, %s246
    %s261 = sphi 0, %s247
    %s265 = sphi 0, %s265
    %s267 = sphi 0, %s265
    %s268 = sphi 0, %s267
    %s282 = sphi 0, %s268
    %s286 = sphi 0, %s286
    %s288 = sphi 0, %s286
    %s289 = sphi 0, %s288
    %s303 = sphi 0, %s289
    %s309 = sphi 0, %s311
    %s312 = sphi 0, %s309
    %s313 = sphi 0, %s312
    %s329 = sphi 0, %s313
  $region4: #{network_forward.3} parent=0 // loop_header_branch
    %24 = sbr.rel (%p22) target = $region8
  $region5: #{network_forward.3} parent=0 // loop_body
    %s26 = ssub.s32 %s21, 1
    %s27 = ssub.s32 %s21, 2
    %s28 = sadd.s32 %s21, 1
    %s29 = ssub.s32 %s21, %s28
    %p30 = scmp.eq.s32.totalorder %s29, 0
    %s32 = sadd.s32 %s31, 1
    %s33 = scalar_select %p30, %s31, %s32
    %p36 = pneg %p30
    %p37 = scmp.eq.s32.totalorder %s21, 1
    %p38 = por %p36, %p37
    %p39 = scmp.ne.s32.totalorder %s31, %s34
    %p40 = scmp.eq.s32.totalorder %s21, 0
    %p41 = por %p39, %p40
    %p42 = scmp.ne.s32.totalorder %s31, %s34
    %p43 = scmp.eq.s32.totalorder %s26, 1
    %p44 = por %p42, %p43
    %p45 = scmp.ne.s32.totalorder %s34, %s35
    %p46 = scmp.eq.s32.totalorder %s26, 0
    %p47 = por %p45, %p46
    %p48 = scmp.ne.s32.totalorder %s34, %s35
    %p49 = scmp.eq.s32.totalorder %s27, 1
    %p50 = por %p48, %p49
    %p52 = scmp.ne.s32.totalorder %s35, %s51
    %p53 = scmp.eq.s32.totalorder %s27, 0
    %p54 = por %p52, %p53
    %s56 = sadd.s32 %s55, 1
    %p59 = scmp.eq.s32.totalorder %s21, 1
    %p60 = scmp.ne.s32.totalorder %s55, %s57
    %p61 = scmp.eq.s32.totalorder %s21, 0
    %p62 = por %p60, %p61
    %p63 = scmp.ne.s32.totalorder %s55, %s57
    %p64 = scmp.eq.s32.totalorder %s26, 1
    %p65 = por %p63, %p64
    %p66 = scmp.ne.s32.totalorder %s57, %s58
    %p67 = scmp.eq.s32.totalorder %s26, 0
    %p68 = por %p66, %p67
    %p69 = scmp.ne.s32.totalorder %s57, %s58
    %p70 = scmp.eq.s32.totalorder %s27, 1
    %p71 = por %p69, %p70
    %p73 = scmp.ne.s32.totalorder %s58, %s72
    %p74 = scmp.eq.s32.totalorder %s27, 0
    %p75 = por %p73, %p74
    %s77 = sadd.s32 %s76, 1
    %p80 = scmp.eq.s32.totalorder %s21, 1
    %p81 = scmp.ne.s32.totalorder %s76, %s78
    %p82 = scmp.eq.s32.totalorder %s21, 0
    %p83 = por %p81, %p82
    %p84 = scmp.ne.s32.totalorder %s76, %s78
    %p85 = scmp.eq.s32.totalorder %s26, 1
    %p86 = por %p84, %p85
    %p87 = scmp.ne.s32.totalorder %s78, %s79
    %p88 = scmp.eq.s32.totalorder %s26, 0
    %p89 = por %p87, %p88
    %p90 = scmp.ne.s32.totalorder %s78, %s79
    %p91 = scmp.eq.s32.totalorder %s27, 1
    %p92 = por %p90, %p91
    %p94 = scmp.ne.s32.totalorder %s79, %s93
    %p95 = scmp.eq.s32.totalorder %s27, 0
    %p96 = por %p94, %p95
    %s98 = sadd.s32 %s97, 1
    %p101 = scmp.eq.s32.totalorder %s21, 1
    %p102 = scmp.ne.s32.totalorder %s97, %s99
    %p103 = scmp.eq.s32.totalorder %s21, 0
    %p104 = por %p102, %p103
    %p105 = scmp.ne.s32.totalorder %s97, %s99
    %p106 = scmp.eq.s32.totalorder %s26, 1
    %p107 = por %p105, %p106
    %p108 = scmp.ne.s32.totalorder %s99, %s100
    %p109 = scmp.eq.s32.totalorder %s26, 0
    %p110 = por %p108, %p109
    %p111 = scmp.ne.s32.totalorder %s99, %s100
    %p112 = scmp.eq.s32.totalorder %s27, 1
    %p113 = por %p111, %p112
    %p115 = scmp.ne.s32.totalorder %s100, %s114
    %p116 = scmp.eq.s32.totalorder %s27, 0
    %p117 = por %p115, %p116
    %s119 = sadd.s32 %s118, 1
    %p122 = scmp.eq.s32.totalorder %s21, 1
    %p123 = scmp.ne.s32.totalorder %s118, %s120
    %p124 = scmp.eq.s32.totalorder %s21, 0
    %p125 = por %p123, %p124
    %p126 = scmp.ne.s32.totalorder %s118, %s120
    %p127 = scmp.eq.s32.totalorder %s26, 1
    %p128 = por %p126, %p127
    %p129 = scmp.ne.s32.totalorder %s120, %s121
    %p130 = scmp.eq.s32.totalorder %s26, 0
    %p131 = por %p129, %p130
    %p132 = scmp.ne.s32.totalorder %s120, %s121
    %p133 = scmp.eq.s32.totalorder %s27, 1
    %p134 = por %p132, %p133
    %p136 = scmp.ne.s32.totalorder %s121, %s135
    %p137 = scmp.eq.s32.totalorder %s27, 0
    %p138 = por %p136, %p137
    %s140 = sadd.s32 %s139, 1
    %p143 = scmp.eq.s32.totalorder %s21, 1
    %p144 = scmp.ne.s32.totalorder %s139, %s141
    %p145 = scmp.eq.s32.totalorder %s21, 0
    %p146 = por %p144, %p145
    %p147 = scmp.ne.s32.totalorder %s139, %s141
    %p148 = scmp.eq.s32.totalorder %s26, 1
    %p149 = por %p147, %p148
    %p150 = scmp.ne.s32.totalorder %s141, %s142
    %p151 = scmp.eq.s32.totalorder %s26, 0
    %p152 = por %p150, %p151
    %p153 = scmp.ne.s32.totalorder %s141, %s142
    %p154 = scmp.eq.s32.totalorder %s27, 1
    %p155 = por %p153, %p154
    %p157 = scmp.ne.s32.totalorder %s142, %s156
    %p158 = scmp.eq.s32.totalorder %s27, 0
    %p159 = por %p157, %p158
    %s161 = sadd.s32 %s160, 1
    %p164 = scmp.eq.s32.totalorder %s21, 1
    %p165 = scmp.ne.s32.totalorder %s160, %s162
    %p166 = scmp.eq.s32.totalorder %s21, 0
    %p167 = por %p165, %p166
    %p168 = scmp.ne.s32.totalorder %s160, %s162
    %p169 = scmp.eq.s32.totalorder %s26, 1
    %p170 = por %p168, %p169
    %p171 = scmp.ne.s32.totalorder %s162, %s163
    %p172 = scmp.eq.s32.totalorder %s26, 0
    %p173 = por %p171, %p172
    %p174 = scmp.ne.s32.totalorder %s162, %s163
    %p175 = scmp.eq.s32.totalorder %s27, 1
    %p176 = por %p174, %p175
    %p178 = scmp.ne.s32.totalorder %s163, %s177
    %p179 = scmp.eq.s32.totalorder %s27, 0
    %p180 = por %p178, %p179
    %s182 = sadd.s32 %s181, 1
    %p185 = scmp.eq.s32.totalorder %s21, 1
    %p186 = scmp.ne.s32.totalorder %s181, %s183
    %p187 = scmp.eq.s32.totalorder %s21, 0
    %p188 = por %p186, %p187
    %p189 = scmp.ne.s32.totalorder %s181, %s183
    %p190 = scmp.eq.s32.totalorder %s26, 1
    %p191 = por %p189, %p190
    %p192 = scmp.ne.s32.totalorder %s183, %s184
    %p193 = scmp.eq.s32.totalorder %s26, 0
    %p194 = por %p192, %p193
    %p195 = scmp.ne.s32.totalorder %s183, %s184
    %p196 = scmp.eq.s32.totalorder %s27, 1
    %p197 = por %p195, %p196
    %p199 = scmp.ne.s32.totalorder %s184, %s198
    %p200 = scmp.eq.s32.totalorder %s27, 0
    %p201 = por %p199, %p200
    %s203 = sadd.s32 %s202, 1
    %p206 = scmp.eq.s32.totalorder %s21, 1
    %p207 = scmp.ne.s32.totalorder %s202, %s204
    %p208 = scmp.eq.s32.totalorder %s21, 0
    %p209 = por %p207, %p208
    %p210 = scmp.ne.s32.totalorder %s202, %s204
    %p211 = scmp.eq.s32.totalorder %s26, 1
    %p212 = por %p210, %p211
    %p213 = scmp.ne.s32.totalorder %s204, %s205
    %p214 = scmp.eq.s32.totalorder %s26, 0
    %p215 = por %p213, %p214
    %p216 = scmp.ne.s32.totalorder %s204, %s205
    %p217 = scmp.eq.s32.totalorder %s27, 1
    %p218 = por %p216, %p217
    %p220 = scmp.ne.s32.totalorder %s205, %s219
    %p221 = scmp.eq.s32.totalorder %s27, 0
    %p222 = por %p220, %p221
    %s224 = sadd.s32 %s223, 1
    %p227 = scmp.eq.s32.totalorder %s21, 1
    %p228 = scmp.ne.s32.totalorder %s223, %s225
    %p229 = scmp.eq.s32.totalorder %s21, 0
    %p230 = por %p228, %p229
    %p231 = scmp.ne.s32.totalorder %s223, %s225
    %p232 = scmp.eq.s32.totalorder %s26, 1
    %p233 = por %p231, %p232
    %p234 = scmp.ne.s32.totalorder %s225, %s226
    %p235 = scmp.eq.s32.totalorder %s26, 0
    %p236 = por %p234, %p235
    %p237 = scmp.ne.s32.totalorder %s225, %s226
    %p238 = scmp.eq.s32.totalorder %s27, 1
    %p239 = por %p237, %p238
    %p241 = scmp.ne.s32.totalorder %s226, %s240
    %p242 = scmp.eq.s32.totalorder %s27, 0
    %p243 = por %p241, %p242
    %s245 = sadd.s32 %s244, 1
    %p248 = scmp.eq.s32.totalorder %s21, 1
    %p249 = scmp.ne.s32.totalorder %s244, %s246
    %p250 = scmp.eq.s32.totalorder %s21, 0
    %p251 = por %p249, %p250
    %p252 = scmp.ne.s32.totalorder %s244, %s246
    %p253 = scmp.eq.s32.totalorder %s26, 1
    %p254 = por %p252, %p253
    %p255 = scmp.ne.s32.totalorder %s246, %s247
    %p256 = scmp.eq.s32.totalorder %s26, 0
    %p257 = por %p255, %p256
    %p258 = scmp.ne.s32.totalorder %s246, %s247
    %p259 = scmp.eq.s32.totalorder %s27, 1
    %p260 = por %p258, %p259
    %p262 = scmp.ne.s32.totalorder %s247, %s261
    %p263 = scmp.eq.s32.totalorder %s27, 0
    %p264 = por %p262, %p263
    %s266 = sadd.s32 %s265, 1
    %p269 = scmp.eq.s32.totalorder %s21, 1
    %p270 = scmp.ne.s32.totalorder %s265, %s267
    %p271 = scmp.eq.s32.totalorder %s21, 0
    %p272 = por %p270, %p271
    %p273 = scmp.ne.s32.totalorder %s265, %s267
    %p274 = scmp.eq.s32.totalorder %s26, 1
    %p275 = por %p273, %p274
    %p276 = scmp.ne.s32.totalorder %s267, %s268
    %p277 = scmp.eq.s32.totalorder %s26, 0
    %p278 = por %p276, %p277
    %p279 = scmp.ne.s32.totalorder %s267, %s268
    %p280 = scmp.eq.s32.totalorder %s27, 1
    %p281 = por %p279, %p280
    %p283 = scmp.ne.s32.totalorder %s268, %s282
    %p284 = scmp.eq.s32.totalorder %s27, 0
    %p285 = por %p283, %p284
    %s287 = sadd.s32 %s286, 1
    %p290 = scmp.eq.s32.totalorder %s21, 1
    %p291 = scmp.ne.s32.totalorder %s286, %s288
    %p292 = scmp.eq.s32.totalorder %s21, 0
    %p293 = por %p291, %p292
    %p294 = scmp.ne.s32.totalorder %s286, %s288
    %p295 = scmp.eq.s32.totalorder %s26, 1
    %p296 = por %p294, %p295
    %p297 = scmp.ne.s32.totalorder %s288, %s289
    %p298 = scmp.eq.s32.totalorder %s26, 0
    %p299 = por %p297, %p298
    %p300 = scmp.ne.s32.totalorder %s288, %s289
    %p301 = scmp.eq.s32.totalorder %s27, 1
    %p302 = por %p300, %p301
    %p304 = scmp.ne.s32.totalorder %s289, %s303
    %p305 = scmp.eq.s32.totalorder %s27, 0
    %p306 = por %p304, %p305
    %s307 = ssub.s32 %s21, %s28
    %p308 = scmp.eq.s32.totalorder %s307, 0
    %s310 = sadd.s32 %s309, 1
    %s311 = scalar_select %p308, %s309, %s310
    %p314 = pneg %p308
    %p315 = scmp.eq.s32.totalorder %s21, 1
    %p316 = por %p314, %p315
    %p317 = scmp.ne.s32.totalorder %s309, %s312
    %p318 = scmp.eq.s32.totalorder %s21, 0
    %p319 = por %p317, %p318
    %p320 = scmp.ne.s32.totalorder %s309, %s312
    %p321 = scmp.eq.s32.totalorder %s26, 1
    %p322 = por %p320, %p321
    %p323 = scmp.ne.s32.totalorder %s312, %s313
    %p324 = scmp.eq.s32.totalorder %s26, 0
    %p325 = por %p323, %p324
    %p326 = scmp.ne.s32.totalorder %s312, %s313
    %p327 = scmp.eq.s32.totalorder %s27, 1
    %p328 = por %p326, %p327
    %p330 = scmp.ne.s32.totalorder %s313, %s329
    %p331 = scmp.eq.s32.totalorder %s27, 0
    %p332 = por %p330, %p331
    %p333 = scmp.le.s32.totalorder 1, %s21
    %p334 = scmp.lt.s32.totalorder %s21, 3
    %p335 = pnand %p333, %p334
    %p336 = pneg %p335
    // Predicated region
    $region9: #{network_forward.3} parent=5 // pred_check
      _
    $region10: #{network_forward.3} parent=5 // pred_check_branch
      %338 = sbr.rel (%p335) target = $region12
    $region11: #{network_forward.3} parent=5 // pred_region
      %s339 = ssub.s32 %s21, 1
      // Predicated region
      $region13: #{network_forward.3} parent=11 // pred_check
        %p340 = pneg %p68
      $region14: #{network_forward.3} parent=11 // pred_check_branch
        %342 = sbr.rel (%p340) target = $region16
      $region15: #{network_forward.3} parent=11 // pred_region
        _
      $region16: #{network_forward.3} parent=11 // pred_fallthru
        _
      // Predicated region
      $region17: #{network_forward.3} parent=11 // pred_check
        %p343 = pneg %p89
      $region18: #{network_forward.3} parent=11 // pred_check_branch
        %345 = sbr.rel (%p343) target = $region20
      $region19: #{network_forward.3} parent=11 // pred_region
        _
      $region20: #{network_forward.3} parent=11 // pred_fallthru
        _
      // Predicated region
      $region21: #{network_forward.3} parent=11 // pred_check
        %p346 = pneg %p110
      $region22: #{network_forward.3} parent=11 // pred_check_branch
        %348 = sbr.rel (%p346) target = $region24
      $region23: #{network_forward.3} parent=11 // pred_region
        _
      $region24: #{network_forward.3} parent=11 // pred_fallthru
        _
      // Predicated region
      $region25: #{network_forward.3} parent=11 // pred_check
        %p349 = pneg %p131
      $region26: #{network_forward.3} parent=11 // pred_check_branch
        %351 = sbr.rel (%p349) target = $region28
      $region27: #{network_forward.3} parent=11 // pred_region
        _
      $region28: #{network_forward.3} parent=11 // pred_fallthru
        _
      // Predicated region
      $region29: #{network_forward.3} parent=11 // pred_check
        %p352 = pneg %p152
      $region30: #{network_forward.3} parent=11 // pred_check_branch
        %354 = sbr.rel (%p352) target = $region32
      $region31: #{network_forward.3} parent=11 // pred_region
        _
      $region32: #{network_forward.3} parent=11 // pred_fallthru
        _
      // Predicated region
      $region33: #{network_forward.3} parent=11 // pred_check
        %p355 = pneg %p173
      $region34: #{network_forward.3} parent=11 // pred_check_branch
        %357 = sbr.rel (%p355) target = $region36
      $region35: #{network_forward.3} parent=11 // pred_region
        _
      $region36: #{network_forward.3} parent=11 // pred_fallthru
        _
      // Predicated region
      $region37: #{network_forward.3} parent=11 // pred_check
        %p358 = pneg %p194
      $region38: #{network_forward.3} parent=11 // pred_check_branch
        %360 = sbr.rel (%p358) target = $region40
      $region39: #{network_forward.3} parent=11 // pred_region
        _
      $region40: #{network_forward.3} parent=11 // pred_fallthru
        _
      // Predicated region
      $region41: #{network_forward.3} parent=11 // pred_check
        %p361 = pneg %p215
      $region42: #{network_forward.3} parent=11 // pred_check_branch
        %363 = sbr.rel (%p361) target = $region44
      $region43: #{network_forward.3} parent=11 // pred_region
        _
      $region44: #{network_forward.3} parent=11 // pred_fallthru
        _
      // Predicated region
      $region45: #{network_forward.3} parent=11 // pred_check
        %p364 = pneg %p236
      $region46: #{network_forward.3} parent=11 // pred_check_branch
        %366 = sbr.rel (%p364) target = $region48
      $region47: #{network_forward.3} parent=11 // pred_region
        _
      $region48: #{network_forward.3} parent=11 // pred_fallthru
        _
      // Predicated region
      $region49: #{network_forward.3} parent=11 // pred_check
        %p367 = pneg %p257
      $region50: #{network_forward.3} parent=11 // pred_check_branch
        %369 = sbr.rel (%p367) target = $region52
      $region51: #{network_forward.3} parent=11 // pred_region
        _
      $region52: #{network_forward.3} parent=11 // pred_fallthru
        _
      // Predicated region
      $region53: #{network_forward.3} parent=11 // pred_check
        %p370 = pneg %p278
      $region54: #{network_forward.3} parent=11 // pred_check_branch
        %372 = sbr.rel (%p370) target = $region56
      $region55: #{network_forward.3} parent=11 // pred_region
        _
      $region56: #{network_forward.3} parent=11 // pred_fallthru
        _
      // Predicated region
      $region57: #{network_forward.3} parent=11 // pred_check
        %p373 = pneg %p299
      $region58: #{network_forward.3} parent=11 // pred_check_branch
        %375 = sbr.rel (%p373) target = $region60
      $region59: #{network_forward.3} parent=11 // pred_region
        _
      $region60: #{network_forward.3} parent=11 // pred_fallthru
        _
    $region12: #{network_forward.3} parent=5 // pred_fallthru
      _
    %p376 = scmp.lt.s32.totalorder %s21, 2
    // Predicated region
    $region61: #{network_forward.3} parent=5 // pred_check
      %p377 = pneg %p376
    $region62: #{network_forward.3} parent=5 // pred_check_branch
      %379 = sbr.rel (%p377) target = $region64
    $region63: #{network_forward.3} parent=5 // pred_region
      // Predicated region
      $region65: #{network_forward.3} parent=63 // pred_check
        %p380 = pneg %p41
      $region66: #{network_forward.3} parent=63 // pred_check_branch
        %382 = sbr.rel (%p380) target = $region68
      $region67: #{network_forward.3} parent=63 // pred_region
        %p383 = scmp.lt.s32.totalorder %s21, 1
        %s384 = scalar_select %p383, %s21, 1
        %s385 = smul.addr %s384, 36
        %s386 = smul.addr %s385, 8
        %s387 = scalar_lea.vmem %s0, %s386
      $region68: #{network_forward.3} parent=63 // pred_fallthru
        _
    $region64: #{network_forward.3} parent=5 // pred_fallthru
      _
    %p388 = scmp.le.s32.totalorder 1, %s21
    %p389 = scmp.lt.s32.totalorder %s21, 3
    %p390 = pnand %p388, %p389
    %p391 = pneg %p390
    // Predicated region
    $region69: #{network_forward.3} parent=5 // pred_check
      _
    $region70: #{network_forward.3} parent=5 // pred_check_branch
      %393 = sbr.rel (%p390) target = $region72
    $region71: #{network_forward.3} parent=5 // pred_region
      %s394 = ssub.s32 %s21, 1
      %p395 = scmp.lt.s32.totalorder %s26, 1
      %s396 = scalar_select %p395, %s26, 1
      %s397 = smul.addr %s396, 36
      %s398 = smul.addr %s397, 8
      %s399 = scalar_lea.vmem %s0, %s398
      %p400 = pneg %p47
      %p401 = pneg %p44
      %p402 = pneg %p68
      %p403 = pneg %p65
      %p404 = pneg %p89
      %p405 = pneg %p86
      %p406 = pneg %p110
      %p407 = pneg %p107
      %p408 = pneg %p131
      %p409 = pneg %p128
      %p410 = pneg %p152
      %p411 = pneg %p149
      %p412 = pneg %p173
      %p413 = pneg %p170
      %p414 = pneg %p194
      %p415 = pneg %p191
      %p416 = pneg %p215
      %p417 = pneg %p212
      %p418 = pneg %p236
      %p419 = pneg %p233
      %p420 = pneg %p257
      %p421 = pneg %p254
      %p422 = pneg %p278
      %p423 = pneg %p275
      %p424 = pneg %p299
      %p425 = pneg %p296
      %p426 = pneg %p325
      %p427 = pneg %p322
      %p428 = scmp.lt.s32.totalorder %s26, 1
      %s429 = scalar_select %p428, %s26, 1
      %s430 = scalar_lea.vmem %s13, %s429
      %p431 = scmp.lt.s32.totalorder %s26, 1
      %s432 = scalar_select %p431, %s26, 1
      %s433 = smul.addr %s432, 36
      %s434 = smul.addr %s433, 8
      %s435 = scalar_lea.vmem %s0, %s434
      %p436 = scmp.lt.s32.totalorder %s26, 1
      %s437 = scalar_select %p436, %s26, 1
      %s438 = scalar_lea.vmem %s13, %s437
      %v439 = vld [vmem:[%s435] sm:$0xff]
      %v440 = vld [vmem:[%s435 + $0x8] sm:$0xff]
      %v441 = vld [vmem:[%s435 + $0x10] sm:$0xff]
      %v442 = vld [vmem:[%s435 + $0x18] sm:$0xff]
      %v443 = vld [vmem:[%s435 + $0x20] sm:$0xff]
      %v444 = vld [vmem:[%s435 + $0x28] sm:$0xff]
      %v445 = vld [vmem:[%s435 + $0x30] sm:$0xff]
      %v446 = vld [vmem:[%s435 + $0x38] sm:$0xff]
      %v447 = vld [vmem:[%s435 + $0x40] sm:$0xff]
      %v448 = vld [vmem:[%s435 + $0x48] sm:$0xff]
      %v449 = vld [vmem:[%s435 + $0x50] sm:$0xff]
      %v450 = vld [vmem:[%s435 + $0x58] sm:$0xff]
      %v451 = vld [vmem:[%s435 + $0x60] sm:$0xff]
      %v452 = vld [vmem:[%s435 + $0x68] sm:$0xff]
      %v453 = vld [vmem:[%s435 + $0x70] sm:$0xff]
      %v454 = vld [vmem:[%s435 + $0x78] sm:$0xff]
      %v455 = vld [vmem:[%s435 + $0x80] sm:$0xff]
      %v456 = vld [vmem:[%s435 + $0x88] sm:$0xff]
      %v457 = vld [vmem:[%s435 + $0x90] sm:$0xff]
      %v458 = vld [vmem:[%s435 + $0x98] sm:$0xff]
      %v459 = vld [vmem:[%s435 + $0xa0] sm:$0xff]
      %v460 = vld [vmem:[%s435 + $0xa8] sm:$0xff]
      %v461 = vld [vmem:[%s435 + $0xb0] sm:$0xff]
      %v462 = vld [vmem:[%s435 + $0xb8] sm:$0xff]
      %v463 = vld [vmem:[%s435 + $0xc0] sm:$0xff]
      %v464 = vld [vmem:[%s435 + $0xc8] sm:$0xff]
      %v465 = vld [vmem:[%s435 + $0xd0] sm:$0xff]
      %v466 = vld [vmem:[%s435 + $0xd8] sm:$0xff]
      %v467 = vld [vmem:[%s435 + $0xe0] sm:$0xff]
      %v468 = vld [vmem:[%s435 + $0xe8] sm:$0xff]
      %v469 = vld [vmem:[%s435 + $0xf0] sm:$0xff]
      %v470 = vld [vmem:[%s435 + $0xf8] sm:$0xff]
      %v471 = vld [vmem:[%s435 + $0x100] sm:$0xff]
      %v472 = vld [vmem:[%s435 + $0x108] sm:$0xff]
      %v473 = vld [vmem:[%s435 + $0x110] sm:$0xff]
      %v474 = vld [vmem:[%s435 + $0x118] sm:$0xff]
      %v475 = vld [vmem:[%s1] sm:$0xff]
      %v476 = vld [vmem:[%s1 + $0x8] sm:$0xff]
      %v477 = vld [vmem:[%s1 + $0x10] sm:$0xff]
      %v478 = vld [vmem:[%s1 + $0x18] sm:$0xff]
      %v479 = vld [vmem:[%s3] sm:$0xff]
      %v480 = vld [vmem:[%s3 + $0x8] sm:$0xff]
      %482 = vset.pattern.permute.xlu0 0
      %483 = vperm.xlu0 %482, %v479
      %v484 = vpop.permute.xlu0 %483
      %487 = vset.pattern.permute.xlu0 0
      %488 = vperm.xlu0 %487, %v480
      %v489 = vpop.permute.xlu0 %488
      %vm491 = vcmask 130048
      %v493 = vsel %vm491, %v476, 0
      %v496 = vsel %vm491, %v478, 0
      %498 = vmatpush.msra.mxu0 %v454
      %499 = vmatpush.msra.mxu0 %v453
      %500 = vmatpush.msra.mxu0 %v452
      %501 = vmatpush.msra.mxu0 %v451
      %502 = vmatpush.msra.mxu0 %v450
      %503 = vmatpush.msra.mxu0 %v449
      %504 = vmatpush.msra.mxu0 %v448
      %505 = vmatpush.msra.mxu0 %v447
      %506 = vmatpush.msra.mxu0 %v446
      %507 = vmatpush.msra.mxu0 %v445
      %508 = vmatpush.msra.mxu0 %v444
      %509 = vmatpush.msra.mxu0 %v443
      %510 = vmatpush.msra.mxu0 %v442
      %511 = vmatpush.msra.mxu0 %v441
      %512 = vmatpush.msra.mxu0 %v440
      %513 = vmatpush.msra.mxu0 %v439
      %514 = vmatmul.f32.gmra.mxu0 %v475
      %v515 = vpop.f32.mrf.mxu0
      %v516 = vadd.f32 %v484, %v515
      %517 = vmatmul.f32.gmra.mxu0 %v477
      %v518 = vpop.f32.mrf.mxu0
      %v519 = vadd.f32 %v489, %v518
      %520 = vdwg.mxu0
      %521 = vmatpush.msra.mxu0 0.0
      %522 = vmatpush.msra.mxu0 0.0
      %523 = vmatpush.msra.mxu0 0.0
      %524 = vmatpush.msra.mxu0 0.0
      %525 = vmatpush.msra.mxu0 0.0
      %526 = vmatpush.msra.mxu0 0.0
      %527 = vmatpush.msra.mxu0 0.0
      %528 = vmatpush.msra.mxu0 0.0
      %529 = vmatpush.msra.mxu0 0.0
      %530 = vmatpush.msra.mxu0 0.0
      %531 = vmatpush.msra.mxu0 0.0
      %532 = vmatpush.msra.mxu0 0.0
      %533 = vmatpush.msra.mxu0 0.0
      %534 = vmatpush.msra.mxu0 0.0
      %535 = vmatpush.msra.mxu0 %v456
      %536 = vmatpush.msra.mxu0 %v455
      %537 = vmatmul.f32.gmra.mxu0 %v493
      %v538 = vpop.f32.mrf.mxu0
      %v539 = vadd.f32 %v516, %v538
      %540 = vmatmul.f32.gmra.mxu0 %v496
      %v541 = vpop.f32.mrf.mxu0
      %v542 = vadd.f32 %v519, %v541
      %543 = vdwg.mxu0
      %v544 = vmax.f32 %v539, 0.0
      %v545 = vmax.f32 %v542, 0.0
      %v546 = vld [vmem:[%s2] sm:$0xff]
      %v547 = vld [vmem:[%s2 + $0x8] sm:$0xff]
      %v548 = vld [vmem:[%s2 + $0x10] sm:$0xff]
      %v549 = vld [vmem:[%s2 + $0x18] sm:$0xff]
      %v550 = vld [vmem:[%s4] sm:$0xff]
      %v551 = vld [vmem:[%s4 + $0x8] sm:$0xff]
      %553 = vset.pattern.permute.xlu0 0
      %554 = vperm.xlu0 %553, %v550
      %v555 = vpop.permute.xlu0 %554
      %558 = vset.pattern.permute.xlu0 0
      %559 = vperm.xlu0 %558, %v551
      %v560 = vpop.permute.xlu0 %559
      %v563 = vsel %vm491, %v547, 0
      %v566 = vsel %vm491, %v549, 0
      %568 = vmatpush.msra.mxu0 %v472
      %569 = vmatpush.msra.mxu0 %v471
      %570 = vmatpush.msra.mxu0 %v470
      %571 = vmatpush.msra.mxu0 %v469
      %572 = vmatpush.msra.mxu0 %v468
      %573 = vmatpush.msra.mxu0 %v467
      %574 = vmatpush.msra.mxu0 %v466
      %575 = vmatpush.msra.mxu0 %v465
      %576 = vmatpush.msra.mxu0 %v464
      %577 = vmatpush.msra.mxu0 %v463
      %578 = vmatpush.msra.mxu0 %v462
      %579 = vmatpush.msra.mxu0 %v461
      %580 = vmatpush.msra.mxu0 %v460
      %581 = vmatpush.msra.mxu0 %v459
      %582 = vmatpush.msra.mxu0 %v458
      %583 = vmatpush.msra.mxu0 %v457
      %584 = vmatmul.f32.gmra.mxu0 %v546
      %v585 = vpop.f32.mrf.mxu0
      %v586 = vadd.f32 %v555, %v585
      %587 = vmatmul.f32.gmra.mxu0 %v548
      %v588 = vpop.f32.mrf.mxu0
      %v589 = vadd.f32 %v560, %v588
      %590 = vdwg.mxu0
      %591 = vmatpush.msra.mxu0 0.0
      %592 = vmatpush.msra.mxu0 0.0
      %593 = vmatpush.msra.mxu0 0.0
      %594 = vmatpush.msra.mxu0 0.0
      %595 = vmatpush.msra.mxu0 0.0
      %596 = vmatpush.msra.mxu0 0.0
      %597 = vmatpush.msra.mxu0 0.0
      %598 = vmatpush.msra.mxu0 0.0
      %599 = vmatpush.msra.mxu0 0.0
      %600 = vmatpush.msra.mxu0 0.0
      %601 = vmatpush.msra.mxu0 0.0
      %602 = vmatpush.msra.mxu0 0.0
      %603 = vmatpush.msra.mxu0 0.0
      %604 = vmatpush.msra.mxu0 0.0
      %605 = vmatpush.msra.mxu0 %v474
      %606 = vmatpush.msra.mxu0 %v473
      %607 = vmatmul.f32.gmra.mxu0 %v563
      %v608 = vpop.f32.mrf.mxu0
      %v609 = vadd.f32 %v586, %v608
      %610 = vmatmul.f32.gmra.mxu0 %v566
      %v611 = vpop.f32.mrf.mxu0
      %v612 = vadd.f32 %v589, %v611
      %613 = vdwg.mxu0
      %v614 = vmax.f32 %v609, 0.0
      %v615 = vmax.f32 %v612, 0.0
      %v616 = vld [vmem:[%s5] sm:$0xff]
      %v617 = vld [vmem:[%s5 + $0x8] sm:$0xff]
      %v618 = vld [vmem:[%s5 + $0x10] sm:$0xff]
      %v619 = vld [vmem:[%s5 + $0x18] sm:$0xff]
      %v620 = vld [vmem:[%s5 + $0x20] sm:$0xff]
      %v621 = vld [vmem:[%s5 + $0x28] sm:$0xff]
      %v622 = vld [vmem:[%s5 + $0x30] sm:$0xff]
      %v623 = vld [vmem:[%s5 + $0x38] sm:$0xff]
      %v624 = vld [vmem:[%s5 + $0x40] sm:$0xff]
      %v625 = vld [vmem:[%s5 + $0x48] sm:$0xff]
      %v626 = vld [vmem:[%s5 + $0x50] sm:$0xff]
      %v627 = vld [vmem:[%s5 + $0x58] sm:$0xff]
      %v628 = vld [vmem:[%s5 + $0x60] sm:$0xff]
      %v629 = vld [vmem:[%s5 + $0x68] sm:$0xff]
      %v630 = vld [vmem:[%s5 + $0x70] sm:$0xff]
      %v631 = vld [vmem:[%s5 + $0x78] sm:$0xff]
      %v632 = vld [vmem:[%s5 + $0x80] sm:$0xff]
      %v633 = vld [vmem:[%s5 + $0x88] sm:$0xff]
      %v634 = vld [vmem:[%s5 + $0x90] sm:$0xff]
      %v635 = vld [vmem:[%s5 + $0x98] sm:$0xff]
      %v636 = vld [vmem:[%s5 + $0xa0] sm:$0xff]
      %v637 = vld [vmem:[%s5 + $0xa8] sm:$0xff]
      %v638 = vld [vmem:[%s5 + $0xb0] sm:$0xff]
      %v639 = vld [vmem:[%s5 + $0xb8] sm:$0xff]
      %v640 = vld [vmem:[%s5 + $0xc0] sm:$0xff]
      %v641 = vld [vmem:[%s5 + $0xc8] sm:$0xff]
      %v642 = vld [vmem:[%s5 + $0xd0] sm:$0xff]
      %v643 = vld [vmem:[%s5 + $0xd8] sm:$0xff]
      %v644 = vld [vmem:[%s5 + $0xe0] sm:$0xff]
      %v645 = vld [vmem:[%s5 + $0xe8] sm:$0xff]
      %v646 = vld [vmem:[%s5 + $0xf0] sm:$0xff]
      %v647 = vld [vmem:[%s5 + $0xf8] sm:$0xff]
      %v648 = vld [vmem:[%s5 + $0x100] sm:$0xff]
      %v649 = vld [vmem:[%s5 + $0x108] sm:$0xff]
      %v650 = vld [vmem:[%s5 + $0x110] sm:$0xff]
      %v651 = vld [vmem:[%s5 + $0x118] sm:$0xff]
      %v652 = vld [vmem:[%s5 + $0x120] sm:$0xff]
      %v653 = vld [vmem:[%s5 + $0x128] sm:$0xff]
      %v654 = vld [vmem:[%s5 + $0x130] sm:$0xff]
      %v655 = vld [vmem:[%s5 + $0x138] sm:$0xff]
      %v656 = vld [vmem:[%s5 + $0x140] sm:$0xff]
      %v657 = vld [vmem:[%s5 + $0x148] sm:$0xff]
      %v658 = vld [vmem:[%s5 + $0x150] sm:$0xff]
      %v659 = vld [vmem:[%s5 + $0x158] sm:$0xff]
      %v660 = vld [vmem:[%s5 + $0x160] sm:$0xff]
      %v661 = vld [vmem:[%s5 + $0x168] sm:$0xff]
      %v662 = vld [vmem:[%s5 + $0x170] sm:$0xff]
      %v663 = vld [vmem:[%s5 + $0x178] sm:$0xff]
      %v664 = vld [vmem:[%s5 + $0x180] sm:$0xff]
      %v665 = vld [vmem:[%s5 + $0x188] sm:$0xff]
      %v666 = vld [vmem:[%s5 + $0x190] sm:$0xff]
      %v667 = vld [vmem:[%s5 + $0x198] sm:$0xff]
      %v668 = vld [vmem:[%s5 + $0x1a0] sm:$0xff]
      %v669 = vld [vmem:[%s5 + $0x1a8] sm:$0xff]
      %v670 = vld [vmem:[%s5 + $0x1b0] sm:$0xff]
      %v671 = vld [vmem:[%s5 + $0x1b8] sm:$0xff]
      %v672 = vld [vmem:[%s5 + $0x1c0] sm:$0xff]
      %v673 = vld [vmem:[%s5 + $0x1c8] sm:$0xff]
      %v674 = vld [vmem:[%s5 + $0x1d0] sm:$0xff]
      %v675 = vld [vmem:[%s5 + $0x1d8] sm:$0xff]
      %v676 = vld [vmem:[%s5 + $0x1e0] sm:$0xff]
      %v677 = vld [vmem:[%s5 + $0x1e8] sm:$0xff]
      %v678 = vld [vmem:[%s5 + $0x1f0] sm:$0xff]
      %v679 = vld [vmem:[%s5 + $0x1f8] sm:$0xff]
      %v680 = vld [vmem:[%s5 + $0x200] sm:$0xff]
      %v681 = vld [vmem:[%s5 + $0x208] sm:$0xff]
      %v682 = vld [vmem:[%s5 + $0x210] sm:$0xff]
      %v683 = vld [vmem:[%s5 + $0x218] sm:$0xff]
      %v684 = vld [vmem:[%s5 + $0x220] sm:$0xff]
      %v685 = vld [vmem:[%s5 + $0x228] sm:$0xff]
      %v686 = vld [vmem:[%s5 + $0x230] sm:$0xff]
      %v687 = vld [vmem:[%s5 + $0x238] sm:$0xff]
      %v688 = vld [vmem:[%s5 + $0x240] sm:$0xff]
      %v689 = vld [vmem:[%s5 + $0x248] sm:$0xff]
      %v690 = vld [vmem:[%s5 + $0x250] sm:$0xff]
      %v691 = vld [vmem:[%s5 + $0x258] sm:$0xff]
      %v692 = vld [vmem:[%s5 + $0x260] sm:$0xff]
      %v693 = vld [vmem:[%s5 + $0x268] sm:$0xff]
      %v694 = vld [vmem:[%s5 + $0x270] sm:$0xff]
      %v695 = vld [vmem:[%s5 + $0x278] sm:$0xff]
      %v696 = vld [vmem:[%s5 + $0x280] sm:$0xff]
      %v697 = vld [vmem:[%s5 + $0x288] sm:$0xff]
      %v698 = vld [vmem:[%s5 + $0x290] sm:$0xff]
      %v699 = vld [vmem:[%s5 + $0x298] sm:$0xff]
      %v700 = vld [vmem:[%s5 + $0x2a0] sm:$0xff]
      %v701 = vld [vmem:[%s5 + $0x2a8] sm:$0xff]
      %v702 = vld [vmem:[%s5 + $0x2b0] sm:$0xff]
      %v703 = vld [vmem:[%s5 + $0x2b8] sm:$0xff]
      %v704 = vld [vmem:[%s5 + $0x2c0] sm:$0xff]
      %v705 = vld [vmem:[%s5 + $0x2c8] sm:$0xff]
      %v706 = vld [vmem:[%s5 + $0x2d0] sm:$0xff]
      %v707 = vld [vmem:[%s5 + $0x2d8] sm:$0xff]
      %v708 = vld [vmem:[%s5 + $0x2e0] sm:$0xff]
      %v709 = vld [vmem:[%s5 + $0x2e8] sm:$0xff]
      %v710 = vld [vmem:[%s5 + $0x2f0] sm:$0xff]
      %v711 = vld [vmem:[%s5 + $0x2f8] sm:$0xff]
      %v712 = vld [vmem:[%s5 + $0x300] sm:$0xff]
      %v713 = vld [vmem:[%s5 + $0x308] sm:$0xff]
      %v714 = vld [vmem:[%s5 + $0x310] sm:$0xff]
      %v715 = vld [vmem:[%s5 + $0x318] sm:$0xff]
      %v716 = vld [vmem:[%s5 + $0x320] sm:$0xff]
      %v717 = vld [vmem:[%s5 + $0x328] sm:$0xff]
      %v718 = vld [vmem:[%s5 + $0x330] sm:$0xff]
      %v719 = vld [vmem:[%s5 + $0x338] sm:$0xff]
      %v720 = vld [vmem:[%s5 + $0x340] sm:$0xff]
      %v721 = vld [vmem:[%s5 + $0x348] sm:$0xff]
      %v722 = vld [vmem:[%s5 + $0x350] sm:$0xff]
      %v723 = vld [vmem:[%s5 + $0x358] sm:$0xff]
      %v724 = vld [vmem:[%s5 + $0x360] sm:$0xff]
      %v725 = vld [vmem:[%s5 + $0x368] sm:$0xff]
      %v726 = vld [vmem:[%s5 + $0x370] sm:$0xff]
      %v727 = vld [vmem:[%s5 + $0x378] sm:$0xff]
      %v728 = vld [vmem:[%s5 + $0x380] sm:$0xff]
      %v729 = vld [vmem:[%s5 + $0x388] sm:$0xff]
      %v730 = vld [vmem:[%s5 + $0x390] sm:$0xff]
      %v731 = vld [vmem:[%s5 + $0x398] sm:$0xff]
      %v732 = vld [vmem:[%s5 + $0x3a0] sm:$0xff]
      %v733 = vld [vmem:[%s5 + $0x3a8] sm:$0xff]
      %v734 = vld [vmem:[%s5 + $0x3b0] sm:$0xff]
      %v735 = vld [vmem:[%s5 + $0x3b8] sm:$0xff]
      %v736 = vld [vmem:[%s5 + $0x3c0] sm:$0xff]
      %v737 = vld [vmem:[%s5 + $0x3c8] sm:$0xff]
      %v738 = vld [vmem:[%s5 + $0x3d0] sm:$0xff]
      %v739 = vld [vmem:[%s5 + $0x3d8] sm:$0xff]
      %v740 = vld [vmem:[%s5 + $0x3e0] sm:$0xff]
      %v741 = vld [vmem:[%s5 + $0x3e8] sm:$0xff]
      %v742 = vld [vmem:[%s5 + $0x3f0] sm:$0xff]
      %v743 = vld [vmem:[%s5 + $0x3f8] sm:$0xff]
      %v744 = vld [vmem:[%s5 + $0x400] sm:$0xff]
      %v745 = vld [vmem:[%s5 + $0x408] sm:$0xff]
      %v746 = vld [vmem:[%s5 + $0x410] sm:$0xff]
      %v747 = vld [vmem:[%s5 + $0x418] sm:$0xff]
      %v748 = vld [vmem:[%s5 + $0x420] sm:$0xff]
      %v749 = vld [vmem:[%s5 + $0x428] sm:$0xff]
      %v750 = vld [vmem:[%s5 + $0x430] sm:$0xff]
      %v751 = vld [vmem:[%s5 + $0x438] sm:$0xff]
      %v752 = vld [vmem:[%s5 + $0x440] sm:$0xff]
      %v753 = vld [vmem:[%s5 + $0x448] sm:$0xff]
      %v754 = vld [vmem:[%s5 + $0x450] sm:$0xff]
      %v755 = vld [vmem:[%s5 + $0x458] sm:$0xff]
      %v756 = vld [vmem:[%s5 + $0x460] sm:$0xff]
      %v757 = vld [vmem:[%s5 + $0x468] sm:$0xff]
      %v758 = vld [vmem:[%s5 + $0x470] sm:$0xff]
      %v759 = vld [vmem:[%s5 + $0x478] sm:$0xff]
      %v760 = vld [vmem:[%s5 + $0x480] sm:$0xff]
      %v761 = vld [vmem:[%s5 + $0x488] sm:$0xff]
      %v762 = vld [vmem:[%s5 + $0x490] sm:$0xff]
      %v763 = vld [vmem:[%s5 + $0x498] sm:$0xff]
      %v764 = vld [vmem:[%s5 + $0x4a0] sm:$0xff]
      %v765 = vld [vmem:[%s5 + $0x4a8] sm:$0xff]
      %v766 = vld [vmem:[%s5 + $0x4b0] sm:$0xff]
      %v767 = vld [vmem:[%s5 + $0x4b8] sm:$0xff]
      %v768 = vld [vmem:[%s5 + $0x4c0] sm:$0xff]
      %v769 = vld [vmem:[%s5 + $0x4c8] sm:$0xff]
      %v770 = vld [vmem:[%s5 + $0x4d0] sm:$0xff]
      %v771 = vld [vmem:[%s5 + $0x4d8] sm:$0xff]
      %v772 = vld [vmem:[%s5 + $0x4e0] sm:$0xff]
      %v773 = vld [vmem:[%s5 + $0x4e8] sm:$0xff]
      %v774 = vld [vmem:[%s5 + $0x4f0] sm:$0xff]
      %v775 = vld [vmem:[%s5 + $0x4f8] sm:$0xff]
      %v776 = vld [vmem:[%s5 + $0x500] sm:$0xff]
      %v777 = vld [vmem:[%s5 + $0x508] sm:$0xff]
      %v778 = vld [vmem:[%s5 + $0x510] sm:$0xff]
      %v779 = vld [vmem:[%s5 + $0x518] sm:$0xff]
      %v780 = vld [vmem:[%s5 + $0x520] sm:$0xff]
      %v781 = vld [vmem:[%s5 + $0x528] sm:$0xff]
      %v782 = vld [vmem:[%s5 + $0x530] sm:$0xff]
      %v783 = vld [vmem:[%s5 + $0x538] sm:$0xff]
      %v784 = vld [vmem:[%s5 + $0x540] sm:$0xff]
      %v785 = vld [vmem:[%s5 + $0x548] sm:$0xff]
      %v786 = vld [vmem:[%s5 + $0x550] sm:$0xff]
      %v787 = vld [vmem:[%s5 + $0x558] sm:$0xff]
      %v788 = vld [vmem:[%s5 + $0x560] sm:$0xff]
      %v789 = vld [vmem:[%s5 + $0x568] sm:$0xff]
      %v790 = vld [vmem:[%s5 + $0x570] sm:$0xff]
      %v791 = vld [vmem:[%s5 + $0x578] sm:$0xff]
      %v792 = vld [vmem:[%s5 + $0x580] sm:$0xff]
      %v793 = vld [vmem:[%s5 + $0x588] sm:$0xff]
      %v794 = vld [vmem:[%s5 + $0x590] sm:$0xff]
      %v795 = vld [vmem:[%s5 + $0x598] sm:$0xff]
      %v796 = vld [vmem:[%s5 + $0x5a0] sm:$0xff]
      %v797 = vld [vmem:[%s5 + $0x5a8] sm:$0xff]
      %v798 = vld [vmem:[%s5 + $0x5b0] sm:$0xff]
      %v799 = vld [vmem:[%s5 + $0x5b8] sm:$0xff]
      %v800 = vld [vmem:[%s5 + $0x5c0] sm:$0xff]
      %v801 = vld [vmem:[%s5 + $0x5c8] sm:$0xff]
      %v802 = vld [vmem:[%s5 + $0x5d0] sm:$0xff]
      %v803 = vld [vmem:[%s5 + $0x5d8] sm:$0xff]
      %v804 = vld [vmem:[%s5 + $0x5e0] sm:$0xff]
      %v805 = vld [vmem:[%s5 + $0x5e8] sm:$0xff]
      %v806 = vld [vmem:[%s5 + $0x5f0] sm:$0xff]
      %v807 = vld [vmem:[%s5 + $0x5f8] sm:$0xff]
      %v808 = vld [vmem:[%s5 + $0x600] sm:$0xff]
      %v809 = vld [vmem:[%s5 + $0x608] sm:$0xff]
      %v810 = vld [vmem:[%s5 + $0x610] sm:$0xff]
      %v811 = vld [vmem:[%s5 + $0x618] sm:$0xff]
      %v812 = vld [vmem:[%s5 + $0x620] sm:$0xff]
      %v813 = vld [vmem:[%s5 + $0x628] sm:$0xff]
      %v814 = vld [vmem:[%s5 + $0x630] sm:$0xff]
      %v815 = vld [vmem:[%s5 + $0x638] sm:$0xff]
      %v816 = vld [vmem:[%s5 + $0x640] sm:$0xff]
      %v817 = vld [vmem:[%s5 + $0x648] sm:$0xff]
      %v818 = vld [vmem:[%s5 + $0x650] sm:$0xff]
      %v819 = vld [vmem:[%s5 + $0x658] sm:$0xff]
      %v820 = vld [vmem:[%s5 + $0x660] sm:$0xff]
      %v821 = vld [vmem:[%s5 + $0x668] sm:$0xff]
      %v822 = vld [vmem:[%s5 + $0x670] sm:$0xff]
      %v823 = vld [vmem:[%s5 + $0x678] sm:$0xff]
      %v824 = vld [vmem:[%s5 + $0x680] sm:$0xff]
      %v825 = vld [vmem:[%s5 + $0x688] sm:$0xff]
      %v826 = vld [vmem:[%s5 + $0x690] sm:$0xff]
      %v827 = vld [vmem:[%s5 + $0x698] sm:$0xff]
      %v828 = vld [vmem:[%s5 + $0x6a0] sm:$0xff]
      %v829 = vld [vmem:[%s5 + $0x6a8] sm:$0xff]
      %v830 = vld [vmem:[%s5 + $0x6b0] sm:$0xff]
      %v831 = vld [vmem:[%s5 + $0x6b8] sm:$0xff]
      %v832 = vld [vmem:[%s5 + $0x6c0] sm:$0xff]
      %v833 = vld [vmem:[%s5 + $0x6c8] sm:$0xff]
      %v834 = vld [vmem:[%s5 + $0x6d0] sm:$0xff]
      %v835 = vld [vmem:[%s5 + $0x6d8] sm:$0xff]
      %v836 = vld [vmem:[%s5 + $0x6e0] sm:$0xff]
      %v837 = vld [vmem:[%s5 + $0x6e8] sm:$0xff]
      %v838 = vld [vmem:[%s5 + $0x6f0] sm:$0xff]
      %v839 = vld [vmem:[%s5 + $0x6f8] sm:$0xff]
      %v840 = vld [vmem:[%s5 + $0x700] sm:$0xff]
      %v841 = vld [vmem:[%s5 + $0x708] sm:$0xff]
      %v842 = vld [vmem:[%s5 + $0x710] sm:$0xff]
      %v843 = vld [vmem:[%s5 + $0x718] sm:$0xff]
      %v844 = vld [vmem:[%s5 + $0x720] sm:$0xff]
      %v845 = vld [vmem:[%s5 + $0x728] sm:$0xff]
      %v846 = vld [vmem:[%s5 + $0x730] sm:$0xff]
      %v847 = vld [vmem:[%s5 + $0x738] sm:$0xff]
      %v848 = vld [vmem:[%s5 + $0x740] sm:$0xff]
      %v849 = vld [vmem:[%s5 + $0x748] sm:$0xff]
      %v850 = vld [vmem:[%s5 + $0x750] sm:$0xff]
      %v851 = vld [vmem:[%s5 + $0x758] sm:$0xff]
      %v852 = vld [vmem:[%s5 + $0x760] sm:$0xff]
      %v853 = vld [vmem:[%s5 + $0x768] sm:$0xff]
      %v854 = vld [vmem:[%s5 + $0x770] sm:$0xff]
      %v855 = vld [vmem:[%s5 + $0x778] sm:$0xff]
      %v856 = vld [vmem:[%s5 + $0x780] sm:$0xff]
      %v857 = vld [vmem:[%s5 + $0x788] sm:$0xff]
      %v858 = vld [vmem:[%s5 + $0x790] sm:$0xff]
      %v859 = vld [vmem:[%s5 + $0x798] sm:$0xff]
      %v860 = vld [vmem:[%s5 + $0x7a0] sm:$0xff]
      %v861 = vld [vmem:[%s5 + $0x7a8] sm:$0xff]
      %v862 = vld [vmem:[%s5 + $0x7b0] sm:$0xff]
      %v863 = vld [vmem:[%s5 + $0x7b8] sm:$0xff]
      %v864 = vld [vmem:[%s5 + $0x7c0] sm:$0xff]
      %v865 = vld [vmem:[%s5 + $0x7c8] sm:$0xff]
      %v866 = vld [vmem:[%s5 + $0x7d0] sm:$0xff]
      %v867 = vld [vmem:[%s5 + $0x7d8] sm:$0xff]
      %v868 = vld [vmem:[%s5 + $0x7e0] sm:$0xff]
      %v869 = vld [vmem:[%s5 + $0x7e8] sm:$0xff]
      %v870 = vld [vmem:[%s5 + $0x7f0] sm:$0xff]
      %v871 = vld [vmem:[%s5 + $0x7f8] sm:$0xff]
      %v872 = vld [vmem:[%s5 + $0x800] sm:$0xff]
      %v873 = vld [vmem:[%s5 + $0x808] sm:$0xff]
      %v874 = vld [vmem:[%s5 + $0x810] sm:$0xff]
      %v875 = vld [vmem:[%s5 + $0x818] sm:$0xff]
      %v876 = vld [vmem:[%s5 + $0x820] sm:$0xff]
      %v877 = vld [vmem:[%s5 + $0x828] sm:$0xff]
      %v878 = vld [vmem:[%s5 + $0x830] sm:$0xff]
      %v879 = vld [vmem:[%s5 + $0x838] sm:$0xff]
      %v880 = vld [vmem:[%s5 + $0x840] sm:$0xff]
      %v881 = vld [vmem:[%s5 + $0x848] sm:$0xff]
      %v882 = vld [vmem:[%s5 + $0x850] sm:$0xff]
      %v883 = vld [vmem:[%s5 + $0x858] sm:$0xff]
      %v884 = vld [vmem:[%s5 + $0x860] sm:$0xff]
      %v885 = vld [vmem:[%s5 + $0x868] sm:$0xff]
      %v886 = vld [vmem:[%s5 + $0x870] sm:$0xff]
      %v887 = vld [vmem:[%s5 + $0x878] sm:$0xff]
      %v888 = vld [vmem:[%s5 + $0x880] sm:$0xff]
      %v889 = vld [vmem:[%s5 + $0x888] sm:$0xff]
      %v890 = vld [vmem:[%s5 + $0x890] sm:$0xff]
      %v891 = vld [vmem:[%s5 + $0x898] sm:$0xff]
      %v892 = vld [vmem:[%s5 + $0x8a0] sm:$0xff]
      %v893 = vld [vmem:[%s5 + $0x8a8] sm:$0xff]
      %v894 = vld [vmem:[%s5 + $0x8b0] sm:$0xff]
      %v895 = vld [vmem:[%s5 + $0x8b8] sm:$0xff]
      %v896 = vld [vmem:[%s5 + $0x8c0] sm:$0xff]
      %v897 = vld [vmem:[%s5 + $0x8c8] sm:$0xff]
      %v898 = vld [vmem:[%s5 + $0x8d0] sm:$0xff]
      %v899 = vld [vmem:[%s5 + $0x8d8] sm:$0xff]
      %v900 = vld [vmem:[%s5 + $0x8e0] sm:$0xff]
      %v901 = vld [vmem:[%s5 + $0x8e8] sm:$0xff]
      %v902 = vld [vmem:[%s5 + $0x8f0] sm:$0xff]
      %v903 = vld [vmem:[%s5 + $0x8f8] sm:$0xff]
      %v904 = vld [vmem:[%s5 + $0x900] sm:$0xff]
      %v905 = vld [vmem:[%s5 + $0x908] sm:$0xff]
      %v906 = vld [vmem:[%s5 + $0x910] sm:$0xff]
      %v907 = vld [vmem:[%s5 + $0x918] sm:$0xff]
      %v908 = vld [vmem:[%s5 + $0x920] sm:$0xff]
      %v909 = vld [vmem:[%s5 + $0x928] sm:$0xff]
      %v910 = vld [vmem:[%s5 + $0x930] sm:$0xff]
      %v911 = vld [vmem:[%s5 + $0x938] sm:$0xff]
      %v912 = vld [vmem:[%s5 + $0x940] sm:$0xff]
      %v913 = vld [vmem:[%s5 + $0x948] sm:$0xff]
      %v914 = vld [vmem:[%s5 + $0x950] sm:$0xff]
      %v915 = vld [vmem:[%s5 + $0x958] sm:$0xff]
      %v916 = vld [vmem:[%s5 + $0x960] sm:$0xff]
      %v917 = vld [vmem:[%s5 + $0x968] sm:$0xff]
      %v918 = vld [vmem:[%s5 + $0x970] sm:$0xff]
      %v919 = vld [vmem:[%s5 + $0x978] sm:$0xff]
      %v920 = vld [vmem:[%s5 + $0x980] sm:$0xff]
      %v921 = vld [vmem:[%s5 + $0x988] sm:$0xff]
      %v922 = vld [vmem:[%s5 + $0x990] sm:$0xff]
      %v923 = vld [vmem:[%s5 + $0x998] sm:$0xff]
      %v924 = vld [vmem:[%s5 + $0x9a0] sm:$0xff]
      %v925 = vld [vmem:[%s5 + $0x9a8] sm:$0xff]
      %v926 = vld [vmem:[%s5 + $0x9b0] sm:$0xff]
      %v927 = vld [vmem:[%s5 + $0x9b8] sm:$0xff]
      %v928 = vld [vmem:[%s5 + $0x9c0] sm:$0xff]
      %v929 = vld [vmem:[%s5 + $0x9c8] sm:$0xff]
      %v930 = vld [vmem:[%s5 + $0x9d0] sm:$0xff]
      %v931 = vld [vmem:[%s5 + $0x9d8] sm:$0xff]
      %v932 = vld [vmem:[%s5 + $0x9e0] sm:$0xff]
      %v933 = vld [vmem:[%s5 + $0x9e8] sm:$0xff]
      %v934 = vld [vmem:[%s5 + $0x9f0] sm:$0xff]
      %v935 = vld [vmem:[%s5 + $0x9f8] sm:$0xff]
      %v936 = vld [vmem:[%s5 + $0xa00] sm:$0x1]
      %v937 = vld [vmem:[%s5 + $0xa08] sm:$0x1]
      %v938 = vld [vmem:[%s5 + $0xa10] sm:$0x1]
      %v939 = vld [vmem:[%s5 + $0xa18] sm:$0x1]
      %v940 = vld [vmem:[%s5 + $0xa20] sm:$0x1]
      %v941 = vld [vmem:[%s5 + $0xa28] sm:$0x1]
      %v942 = vld [vmem:[%s5 + $0xa30] sm:$0x1]
      %v943 = vld [vmem:[%s5 + $0xa38] sm:$0x1]
      %v944 = vld [vmem:[%s5 + $0xa40] sm:$0x1]
      %v945 = vld [vmem:[%s5 + $0xa48] sm:$0x1]
      %v946 = vld [vmem:[%s5 + $0xa50] sm:$0x1]
      %v947 = vld [vmem:[%s5 + $0xa58] sm:$0x1]
      %v948 = vld [vmem:[%s5 + $0xa60] sm:$0x1]
      %v949 = vld [vmem:[%s5 + $0xa68] sm:$0x1]
      %v950 = vld [vmem:[%s5 + $0xa70] sm:$0x1]
      %v951 = vld [vmem:[%s5 + $0xa78] sm:$0x1]
      %v952 = vld [vmem:[%s5 + $0xa80] sm:$0x1]
      %v953 = vld [vmem:[%s5 + $0xa88] sm:$0x1]
      %v954 = vld [vmem:[%s5 + $0xa90] sm:$0x1]
      %v955 = vld [vmem:[%s5 + $0xa98] sm:$0x1]
      %v956 = vld [vmem:[%s5 + $0xaa0] sm:$0x1]
      %v957 = vld [vmem:[%s5 + $0xaa8] sm:$0x1]
      %v958 = vld [vmem:[%s5 + $0xab0] sm:$0x1]
      %v959 = vld [vmem:[%s5 + $0xab8] sm:$0x1]
      %v960 = vld [vmem:[%s5 + $0xac0] sm:$0x1]
      %v961 = vld [vmem:[%s5 + $0xac8] sm:$0x1]
      %v962 = vld [vmem:[%s5 + $0xad0] sm:$0x1]
      %v963 = vld [vmem:[%s5 + $0xad8] sm:$0x1]
      %v964 = vld [vmem:[%s5 + $0xae0] sm:$0x1]
      %v965 = vld [vmem:[%s5 + $0xae8] sm:$0x1]
      %v966 = vld [vmem:[%s5 + $0xaf0] sm:$0x1]
      %v967 = vld [vmem:[%s5 + $0xaf8] sm:$0x1]
      %vm968 = vcmask 662528
      %v970 = vsel %vm968, %v544, 0
      %v973 = vsel %vm968, %v545, 0
      %vm975 = vcmask 1040384
      %v977 = vsel %vm975, %v936, 0
      %v980 = vsel %vm975, %v937, 0
      %v983 = vsel %vm975, %v938, 0
      %v986 = vsel %vm975, %v939, 0
      %v989 = vsel %vm975, %v940, 0
      %v992 = vsel %vm975, %v941, 0
      %v995 = vsel %vm975, %v942, 0
      %v998 = vsel %vm975, %v943, 0
      %v1001 = vsel %vm975, %v944, 0
      %v1004 = vsel %vm975, %v945, 0
      %v1007 = vsel %vm975, %v946, 0
      %v1010 = vsel %vm975, %v947, 0
      %v1013 = vsel %vm975, %v948, 0
      %v1016 = vsel %vm975, %v949, 0
      %v1019 = vsel %vm975, %v950, 0
      %v1022 = vsel %vm975, %v951, 0
      %v1025 = vsel %vm975, %v952, 0
      %v1028 = vsel %vm975, %v953, 0
      %v1031 = vsel %vm975, %v954, 0
      %v1034 = vsel %vm975, %v955, 0
      %v1037 = vsel %vm975, %v956, 0
      %v1040 = vsel %vm975, %v957, 0
      %v1043 = vsel %vm975, %v958, 0
      %v1046 = vsel %vm975, %v959, 0
      %v1049 = vsel %vm975, %v960, 0
      %v1052 = vsel %vm975, %v961, 0
      %v1055 = vsel %vm975, %v962, 0
      %v1058 = vsel %vm975, %v963, 0
      %v1061 = vsel %vm975, %v964, 0
      %v1064 = vsel %vm975, %v965, 0
      %v1067 = vsel %vm975, %v966, 0
      %v1070 = vsel %vm975, %v967, 0
      %1072 = vmatpush.msra.mxu0 0.0
      %1073 = vmatpush.msra.mxu0 0.0
      %1074 = vmatpush.msra.mxu0 0.0
      %1075 = vmatpush.msra.mxu0 0.0
      %1076 = vmatpush.msra.mxu0 0.0
      %1077 = vmatpush.msra.mxu0 %v977
      %1078 = vmatpush.msra.mxu0 %v904
      %1079 = vmatpush.msra.mxu0 %v872
      %1080 = vmatpush.msra.mxu0 %v840
      %1081 = vmatpush.msra.mxu0 %v808
      %1082 = vmatpush.msra.mxu0 %v776
      %1083 = vmatpush.msra.mxu0 %v744
      %1084 = vmatpush.msra.mxu0 %v712
      %1085 = vmatpush.msra.mxu0 %v680
      %1086 = vmatpush.msra.mxu0 %v648
      %1087 = vmatpush.msra.mxu0 %v616
      %1088 = vmatmul.f32.gmra.mxu0 %v970
      %v1089 = vpop.f32.mrf.mxu0
      %v1090 = vadd.f32 0.0, %v1089
      %1091 = vmatmul.f32.gmra.mxu0 %v973
      %v1092 = vpop.f32.mrf.mxu0
      %1093 = vdwg.mxu0
      %1094 = vmatpush.msra.mxu0 0.0
      %1095 = vmatpush.msra.mxu0 0.0
      %1096 = vmatpush.msra.mxu0 0.0
      %1097 = vmatpush.msra.mxu0 0.0
      %1098 = vmatpush.msra.mxu0 0.0
      %1099 = vmatpush.msra.mxu0 %v980
      %1100 = vmatpush.msra.mxu0 %v905
      %1101 = vmatpush.msra.mxu0 %v873
      %1102 = vmatpush.msra.mxu0 %v841
      %1103 = vmatpush.msra.mxu0 %v809
      %1104 = vmatpush.msra.mxu0 %v777
      %1105 = vmatpush.msra.mxu0 %v745
      %1106 = vmatpush.msra.mxu0 %v713
      %1107 = vmatpush.msra.mxu0 %v681
      %1108 = vmatpush.msra.mxu0 %v649
      %1109 = vmatpush.msra.mxu0 %v617
      %1110 = vmatmul.f32.gmra.mxu0 %v970
      %v1111 = vpop.f32.mrf.mxu0
      %v1112 = vadd.f32 0.0, %v1111
      %1113 = vmatmul.f32.gmra.mxu0 %v973
      %v1114 = vpop.f32.mrf.mxu0
      %1115 = vdwg.mxu0
      %1116 = vmatpush.msra.mxu0 0.0
      %1117 = vmatpush.msra.mxu0 0.0
      %1118 = vmatpush.msra.mxu0 0.0
      %1119 = vmatpush.msra.mxu0 0.0
      %1120 = vmatpush.msra.mxu0 0.0
      %1121 = vmatpush.msra.mxu0 %v983
      %1122 = vmatpush.msra.mxu0 %v906
      %1123 = vmatpush.msra.mxu0 %v874
      %1124 = vmatpush.msra.mxu0 %v842
      %1125 = vmatpush.msra.mxu0 %v810
      %1126 = vmatpush.msra.mxu0 %v778
      %1127 = vmatpush.msra.mxu0 %v746
      %1128 = vmatpush.msra.mxu0 %v714
      %1129 = vmatpush.msra.mxu0 %v682
      %1130 = vmatpush.msra.mxu0 %v650
      %1131 = vmatpush.msra.mxu0 %v618
      %1132 = vmatmul.f32.gmra.mxu0 %v970
      %v1133 = vpop.f32.mrf.mxu0
      %v1134 = vadd.f32 0.0, %v1133
      %1135 = vmatmul.f32.gmra.mxu0 %v973
      %v1136 = vpop.f32.mrf.mxu0
      %1137 = vdwg.mxu0
      %1138 = vmatpush.msra.mxu0 0.0
      %1139 = vmatpush.msra.mxu0 0.0
      %1140 = vmatpush.msra.mxu0 0.0
      %1141 = vmatpush.msra.mxu0 0.0
      %1142 = vmatpush.msra.mxu0 0.0
      %1143 = vmatpush.msra.mxu0 %v986
      %1144 = vmatpush.msra.mxu0 %v907
      %1145 = vmatpush.msra.mxu0 %v875
      %1146 = vmatpush.msra.mxu0 %v843
      %1147 = vmatpush.msra.mxu0 %v811
      %1148 = vmatpush.msra.mxu0 %v779
      %1149 = vmatpush.msra.mxu0 %v747
      %1150 = vmatpush.msra.mxu0 %v715
      %1151 = vmatpush.msra.mxu0 %v683
      %1152 = vmatpush.msra.mxu0 %v651
      %1153 = vmatpush.msra.mxu0 %v619
      %1154 = vmatmul.f32.gmra.mxu0 %v970
      %v1155 = vpop.f32.mrf.mxu0
      %v1156 = vadd.f32 0.0, %v1155
      %1157 = vmatmul.f32.gmra.mxu0 %v973
      %v1158 = vpop.f32.mrf.mxu0
      %1159 = vdwg.mxu0
      %1160 = vmatpush.msra.mxu0 0.0
      %1161 = vmatpush.msra.mxu0 0.0
      %1162 = vmatpush.msra.mxu0 0.0
      %1163 = vmatpush.msra.mxu0 0.0
      %1164 = vmatpush.msra.mxu0 0.0
      %1165 = vmatpush.msra.mxu0 %v989
      %1166 = vmatpush.msra.mxu0 %v908
      %1167 = vmatpush.msra.mxu0 %v876
      %1168 = vmatpush.msra.mxu0 %v844
      %1169 = vmatpush.msra.mxu0 %v812
      %1170 = vmatpush.msra.mxu0 %v780
      %1171 = vmatpush.msra.mxu0 %v748
      %1172 = vmatpush.msra.mxu0 %v716
      %1173 = vmatpush.msra.mxu0 %v684
      %1174 = vmatpush.msra.mxu0 %v652
      %1175 = vmatpush.msra.mxu0 %v620
      %1176 = vmatmul.f32.gmra.mxu0 %v970
      %v1177 = vpop.f32.mrf.mxu0
      %v1178 = vadd.f32 0.0, %v1177
      %1179 = vmatmul.f32.gmra.mxu0 %v973
      %v1180 = vpop.f32.mrf.mxu0
      %1181 = vdwg.mxu0
      %1182 = vmatpush.msra.mxu0 0.0
      %1183 = vmatpush.msra.mxu0 0.0
      %1184 = vmatpush.msra.mxu0 0.0
      %1185 = vmatpush.msra.mxu0 0.0
      %1186 = vmatpush.msra.mxu0 0.0
      %1187 = vmatpush.msra.mxu0 %v992
      %1188 = vmatpush.msra.mxu0 %v909
      %1189 = vmatpush.msra.mxu0 %v877
      %1190 = vmatpush.msra.mxu0 %v845
      %1191 = vmatpush.msra.mxu0 %v813
      %1192 = vmatpush.msra.mxu0 %v781
      %1193 = vmatpush.msra.mxu0 %v749
      %1194 = vmatpush.msra.mxu0 %v717
      %1195 = vmatpush.msra.mxu0 %v685
      %1196 = vmatpush.msra.mxu0 %v653
      %1197 = vmatpush.msra.mxu0 %v621
      %1198 = vmatmul.f32.gmra.mxu0 %v970
      %v1199 = vpop.f32.mrf.mxu0
      %v1200 = vadd.f32 0.0, %v1199
      %1201 = vmatmul.f32.gmra.mxu0 %v973
      %v1202 = vpop.f32.mrf.mxu0
      %1203 = vdwg.mxu0
      %1204 = vmatpush.msra.mxu0 0.0
      %1205 = vmatpush.msra.mxu0 0.0
      %1206 = vmatpush.msra.mxu0 0.0
      %1207 = vmatpush.msra.mxu0 0.0
      %1208 = vmatpush.msra.mxu0 0.0
      %1209 = vmatpush.msra.mxu0 %v995
      %1210 = vmatpush.msra.mxu0 %v910
      %1211 = vmatpush.msra.mxu0 %v878
      %1212 = vmatpush.msra.mxu0 %v846
      %1213 = vmatpush.msra.mxu0 %v814
      %1214 = vmatpush.msra.mxu0 %v782
      %1215 = vmatpush.msra.mxu0 %v750
      %1216 = vmatpush.msra.mxu0 %v718
      %1217 = vmatpush.msra.mxu0 %v686
      %1218 = vmatpush.msra.mxu0 %v654
      %1219 = vmatpush.msra.mxu0 %v622
      %1220 = vmatmul.f32.gmra.mxu0 %v970
      %v1221 = vpop.f32.mrf.mxu0
      %v1222 = vadd.f32 0.0, %v1221
      %1223 = vmatmul.f32.gmra.mxu0 %v973
      %v1224 = vpop.f32.mrf.mxu0
      %1225 = vdwg.mxu0
      %1226 = vmatpush.msra.mxu0 0.0
      %1227 = vmatpush.msra.mxu0 0.0
      %1228 = vmatpush.msra.mxu0 0.0
      %1229 = vmatpush.msra.mxu0 0.0
      %1230 = vmatpush.msra.mxu0 0.0
      %1231 = vmatpush.msra.mxu0 %v998
      %1232 = vmatpush.msra.mxu0 %v911
      %1233 = vmatpush.msra.mxu0 %v879
      %1234 = vmatpush.msra.mxu0 %v847
      %1235 = vmatpush.msra.mxu0 %v815
      %1236 = vmatpush.msra.mxu0 %v783
      %1237 = vmatpush.msra.mxu0 %v751
      %1238 = vmatpush.msra.mxu0 %v719
      %1239 = vmatpush.msra.mxu0 %v687
      %1240 = vmatpush.msra.mxu0 %v655
      %1241 = vmatpush.msra.mxu0 %v623
      %1242 = vmatmul.f32.gmra.mxu0 %v970
      %v1243 = vpop.f32.mrf.mxu0
      %v1244 = vadd.f32 0.0, %v1243
      %1245 = vmatmul.f32.gmra.mxu0 %v973
      %v1246 = vpop.f32.mrf.mxu0
      %1247 = vdwg.mxu0
      %1248 = vmatpush.msra.mxu0 0.0
      %1249 = vmatpush.msra.mxu0 0.0
      %1250 = vmatpush.msra.mxu0 0.0
      %1251 = vmatpush.msra.mxu0 0.0
      %1252 = vmatpush.msra.mxu0 0.0
      %1253 = vmatpush.msra.mxu0 %v1001
      %1254 = vmatpush.msra.mxu0 %v912
      %1255 = vmatpush.msra.mxu0 %v880
      %1256 = vmatpush.msra.mxu0 %v848
      %1257 = vmatpush.msra.mxu0 %v816
      %1258 = vmatpush.msra.mxu0 %v784
      %1259 = vmatpush.msra.mxu0 %v752
      %1260 = vmatpush.msra.mxu0 %v720
      %1261 = vmatpush.msra.mxu0 %v688
      %1262 = vmatpush.msra.mxu0 %v656
      %1263 = vmatpush.msra.mxu0 %v624
      %1264 = vmatmul.f32.gmra.mxu0 %v970
      %v1265 = vpop.f32.mrf.mxu0
      %v1266 = vadd.f32 0.0, %v1265
      %1267 = vmatmul.f32.gmra.mxu0 %v973
      %v1268 = vpop.f32.mrf.mxu0
      %1269 = vdwg.mxu0
      %1270 = vmatpush.msra.mxu0 0.0
      %1271 = vmatpush.msra.mxu0 0.0
      %1272 = vmatpush.msra.mxu0 0.0
      %1273 = vmatpush.msra.mxu0 0.0
      %1274 = vmatpush.msra.mxu0 0.0
      %1275 = vmatpush.msra.mxu0 %v1004
      %1276 = vmatpush.msra.mxu0 %v913
      %1277 = vmatpush.msra.mxu0 %v881
      %1278 = vmatpush.msra.mxu0 %v849
      %1279 = vmatpush.msra.mxu0 %v817
      %1280 = vmatpush.msra.mxu0 %v785
      %1281 = vmatpush.msra.mxu0 %v753
      %1282 = vmatpush.msra.mxu0 %v721
      %1283 = vmatpush.msra.mxu0 %v689
      %1284 = vmatpush.msra.mxu0 %v657
      %1285 = vmatpush.msra.mxu0 %v625
      %1286 = vmatmul.f32.gmra.mxu0 %v970
      %v1287 = vpop.f32.mrf.mxu0
      %v1288 = vadd.f32 0.0, %v1287
      %1289 = vmatmul.f32.gmra.mxu0 %v973
      %v1290 = vpop.f32.mrf.mxu0
      %1291 = vdwg.mxu0
      %1292 = vmatpush.msra.mxu0 0.0
      %1293 = vmatpush.msra.mxu0 0.0
      %1294 = vmatpush.msra.mxu0 0.0
      %1295 = vmatpush.msra.mxu0 0.0
      %1296 = vmatpush.msra.mxu0 0.0
      %1297 = vmatpush.msra.mxu0 %v1007
      %1298 = vmatpush.msra.mxu0 %v914
      %1299 = vmatpush.msra.mxu0 %v882
      %1300 = vmatpush.msra.mxu0 %v850
      %1301 = vmatpush.msra.mxu0 %v818
      %1302 = vmatpush.msra.mxu0 %v786
      %1303 = vmatpush.msra.mxu0 %v754
      %1304 = vmatpush.msra.mxu0 %v722
      %1305 = vmatpush.msra.mxu0 %v690
      %1306 = vmatpush.msra.mxu0 %v658
      %1307 = vmatpush.msra.mxu0 %v626
      %1308 = vmatmul.f32.gmra.mxu0 %v970
      %v1309 = vpop.f32.mrf.mxu0
      %v1310 = vadd.f32 0.0, %v1309
      %1311 = vmatmul.f32.gmra.mxu0 %v973
      %v1312 = vpop.f32.mrf.mxu0
      %1313 = vdwg.mxu0
      %1314 = vmatpush.msra.mxu0 0.0
      %1315 = vmatpush.msra.mxu0 0.0
      %1316 = vmatpush.msra.mxu0 0.0
      %1317 = vmatpush.msra.mxu0 0.0
      %1318 = vmatpush.msra.mxu0 0.0
      %1319 = vmatpush.msra.mxu0 %v1010
      %1320 = vmatpush.msra.mxu0 %v915
      %1321 = vmatpush.msra.mxu0 %v883
      %1322 = vmatpush.msra.mxu0 %v851
      %1323 = vmatpush.msra.mxu0 %v819
      %1324 = vmatpush.msra.mxu0 %v787
      %1325 = vmatpush.msra.mxu0 %v755
      %1326 = vmatpush.msra.mxu0 %v723
      %1327 = vmatpush.msra.mxu0 %v691
      %1328 = vmatpush.msra.mxu0 %v659
      %1329 = vmatpush.msra.mxu0 %v627
      %1330 = vmatmul.f32.gmra.mxu0 %v970
      %v1331 = vpop.f32.mrf.mxu0
      %v1332 = vadd.f32 0.0, %v1331
      %1333 = vmatmul.f32.gmra.mxu0 %v973
      %v1334 = vpop.f32.mrf.mxu0
      %1335 = vdwg.mxu0
      %1336 = vmatpush.msra.mxu0 0.0
      %1337 = vmatpush.msra.mxu0 0.0
      %1338 = vmatpush.msra.mxu0 0.0
      %1339 = vmatpush.msra.mxu0 0.0
      %1340 = vmatpush.msra.mxu0 0.0
      %1341 = vmatpush.msra.mxu0 %v1013
      %1342 = vmatpush.msra.mxu0 %v916
      %1343 = vmatpush.msra.mxu0 %v884
      %1344 = vmatpush.msra.mxu0 %v852
      %1345 = vmatpush.msra.mxu0 %v820
      %1346 = vmatpush.msra.mxu0 %v788
      %1347 = vmatpush.msra.mxu0 %v756
      %1348 = vmatpush.msra.mxu0 %v724
      %1349 = vmatpush.msra.mxu0 %v692
      %1350 = vmatpush.msra.mxu0 %v660
      %1351 = vmatpush.msra.mxu0 %v628
      %1352 = vmatmul.f32.gmra.mxu0 %v970
      %v1353 = vpop.f32.mrf.mxu0
      %v1354 = vadd.f32 0.0, %v1353
      %1355 = vmatmul.f32.gmra.mxu0 %v973
      %v1356 = vpop.f32.mrf.mxu0
      %1357 = vdwg.mxu0
      %1358 = vmatpush.msra.mxu0 0.0
      %1359 = vmatpush.msra.mxu0 0.0
      %1360 = vmatpush.msra.mxu0 0.0
      %1361 = vmatpush.msra.mxu0 0.0
      %1362 = vmatpush.msra.mxu0 0.0
      %1363 = vmatpush.msra.mxu0 %v1016
      %1364 = vmatpush.msra.mxu0 %v917
      %1365 = vmatpush.msra.mxu0 %v885
      %1366 = vmatpush.msra.mxu0 %v853
      %1367 = vmatpush.msra.mxu0 %v821
      %1368 = vmatpush.msra.mxu0 %v789
      %1369 = vmatpush.msra.mxu0 %v757
      %1370 = vmatpush.msra.mxu0 %v725
      %1371 = vmatpush.msra.mxu0 %v693
      %1372 = vmatpush.msra.mxu0 %v661
      %1373 = vmatpush.msra.mxu0 %v629
      %1374 = vmatmul.f32.gmra.mxu0 %v970
      %v1375 = vpop.f32.mrf.mxu0
      %v1376 = vadd.f32 0.0, %v1375
      %1377 = vmatmul.f32.gmra.mxu0 %v973
      %v1378 = vpop.f32.mrf.mxu0
      %1379 = vdwg.mxu0
      %1380 = vmatpush.msra.mxu0 0.0
      %1381 = vmatpush.msra.mxu0 0.0
      %1382 = vmatpush.msra.mxu0 0.0
      %1383 = vmatpush.msra.mxu0 0.0
      %1384 = vmatpush.msra.mxu0 0.0
      %1385 = vmatpush.msra.mxu0 %v1019
      %1386 = vmatpush.msra.mxu0 %v918
      %1387 = vmatpush.msra.mxu0 %v886
      %1388 = vmatpush.msra.mxu0 %v854
      %1389 = vmatpush.msra.mxu0 %v822
      %1390 = vmatpush.msra.mxu0 %v790
      %1391 = vmatpush.msra.mxu0 %v758
      %1392 = vmatpush.msra.mxu0 %v726
      %1393 = vmatpush.msra.mxu0 %v694
      %1394 = vmatpush.msra.mxu0 %v662
      %1395 = vmatpush.msra.mxu0 %v630
      %1396 = vmatmul.f32.gmra.mxu0 %v970
      %v1397 = vpop.f32.mrf.mxu0
      %v1398 = vadd.f32 0.0, %v1397
      %1399 = vmatmul.f32.gmra.mxu0 %v973
      %v1400 = vpop.f32.mrf.mxu0
      %1401 = vdwg.mxu0
      %1402 = vmatpush.msra.mxu0 0.0
      %1403 = vmatpush.msra.mxu0 0.0
      %1404 = vmatpush.msra.mxu0 0.0
      %1405 = vmatpush.msra.mxu0 0.0
      %1406 = vmatpush.msra.mxu0 0.0
      %1407 = vmatpush.msra.mxu0 %v1022
      %1408 = vmatpush.msra.mxu0 %v919
      %1409 = vmatpush.msra.mxu0 %v887
      %1410 = vmatpush.msra.mxu0 %v855
      %1411 = vmatpush.msra.mxu0 %v823
      %1412 = vmatpush.msra.mxu0 %v791
      %1413 = vmatpush.msra.mxu0 %v759
      %1414 = vmatpush.msra.mxu0 %v727
      %1415 = vmatpush.msra.mxu0 %v695
      %1416 = vmatpush.msra.mxu0 %v663
      %1417 = vmatpush.msra.mxu0 %v631
      %1418 = vmatmul.f32.gmra.mxu0 %v970
      %v1419 = vpop.f32.mrf.mxu0
      %v1420 = vadd.f32 0.0, %v1419
      %1421 = vmatmul.f32.gmra.mxu0 %v973
      %v1422 = vpop.f32.mrf.mxu0
      %1423 = vdwg.mxu0
      %1424 = vmatpush.msra.mxu0 0.0
      %1425 = vmatpush.msra.mxu0 0.0
      %1426 = vmatpush.msra.mxu0 0.0
      %1427 = vmatpush.msra.mxu0 0.0
      %1428 = vmatpush.msra.mxu0 0.0
      %1429 = vmatpush.msra.mxu0 %v1025
      %1430 = vmatpush.msra.mxu0 %v920
      %1431 = vmatpush.msra.mxu0 %v888
      %1432 = vmatpush.msra.mxu0 %v856
      %1433 = vmatpush.msra.mxu0 %v824
      %1434 = vmatpush.msra.mxu0 %v792
      %1435 = vmatpush.msra.mxu0 %v760
      %1436 = vmatpush.msra.mxu0 %v728
      %1437 = vmatpush.msra.mxu0 %v696
      %1438 = vmatpush.msra.mxu0 %v664
      %1439 = vmatpush.msra.mxu0 %v632
      %1440 = vmatmul.f32.gmra.mxu0 %v970
      %v1441 = vpop.f32.mrf.mxu0
      %1442 = vmatmul.f32.gmra.mxu0 %v973
      %v1443 = vpop.f32.mrf.mxu0
      %v1444 = vadd.f32 0.0, %v1443
      %1445 = vdwg.mxu0
      %1446 = vmatpush.msra.mxu0 0.0
      %1447 = vmatpush.msra.mxu0 0.0
      %1448 = vmatpush.msra.mxu0 0.0
      %1449 = vmatpush.msra.mxu0 0.0
      %1450 = vmatpush.msra.mxu0 0.0
      %1451 = vmatpush.msra.mxu0 %v1028
      %1452 = vmatpush.msra.mxu0 %v921
      %1453 = vmatpush.msra.mxu0 %v889
      %1454 = vmatpush.msra.mxu0 %v857
      %1455 = vmatpush.msra.mxu0 %v825
      %1456 = vmatpush.msra.mxu0 %v793
      %1457 = vmatpush.msra.mxu0 %v761
      %1458 = vmatpush.msra.mxu0 %v729
      %1459 = vmatpush.msra.mxu0 %v697
      %1460 = vmatpush.msra.mxu0 %v665
      %1461 = vmatpush.msra.mxu0 %v633
      %1462 = vmatmul.f32.gmra.mxu0 %v970
      %v1463 = vpop.f32.mrf.mxu0
      %1464 = vmatmul.f32.gmra.mxu0 %v973
      %v1465 = vpop.f32.mrf.mxu0
      %v1466 = vadd.f32 0.0, %v1465
      %1467 = vdwg.mxu0
      %1468 = vmatpush.msra.mxu0 0.0
      %1469 = vmatpush.msra.mxu0 0.0
      %1470 = vmatpush.msra.mxu0 0.0
      %1471 = vmatpush.msra.mxu0 0.0
      %1472 = vmatpush.msra.mxu0 0.0
      %1473 = vmatpush.msra.mxu0 %v1031
      %1474 = vmatpush.msra.mxu0 %v922
      %1475 = vmatpush.msra.mxu0 %v890
      %1476 = vmatpush.msra.mxu0 %v858
      %1477 = vmatpush.msra.mxu0 %v826
      %1478 = vmatpush.msra.mxu0 %v794
      %1479 = vmatpush.msra.mxu0 %v762
      %1480 = vmatpush.msra.mxu0 %v730
      %1481 = vmatpush.msra.mxu0 %v698
      %1482 = vmatpush.msra.mxu0 %v666
      %1483 = vmatpush.msra.mxu0 %v634
      %1484 = vmatmul.f32.gmra.mxu0 %v970
      %v1485 = vpop.f32.mrf.mxu0
      %1486 = vmatmul.f32.gmra.mxu0 %v973
      %v1487 = vpop.f32.mrf.mxu0
      %v1488 = vadd.f32 0.0, %v1487
      %1489 = vdwg.mxu0
      %1490 = vmatpush.msra.mxu0 0.0
      %1491 = vmatpush.msra.mxu0 0.0
      %1492 = vmatpush.msra.mxu0 0.0
      %1493 = vmatpush.msra.mxu0 0.0
      %1494 = vmatpush.msra.mxu0 0.0
      %1495 = vmatpush.msra.mxu0 %v1034
      %1496 = vmatpush.msra.mxu0 %v923
      %1497 = vmatpush.msra.mxu0 %v891
      %1498 = vmatpush.msra.mxu0 %v859
      %1499 = vmatpush.msra.mxu0 %v827
      %1500 = vmatpush.msra.mxu0 %v795
      %1501 = vmatpush.msra.mxu0 %v763
      %1502 = vmatpush.msra.mxu0 %v731
      %1503 = vmatpush.msra.mxu0 %v699
      %1504 = vmatpush.msra.mxu0 %v667
      %1505 = vmatpush.msra.mxu0 %v635
      %1506 = vmatmul.f32.gmra.mxu0 %v970
      %v1507 = vpop.f32.mrf.mxu0
      %1508 = vmatmul.f32.gmra.mxu0 %v973
      %v1509 = vpop.f32.mrf.mxu0
      %v1510 = vadd.f32 0.0, %v1509
      %1511 = vdwg.mxu0
      %1512 = vmatpush.msra.mxu0 0.0
      %1513 = vmatpush.msra.mxu0 0.0
      %1514 = vmatpush.msra.mxu0 0.0
      %1515 = vmatpush.msra.mxu0 0.0
      %1516 = vmatpush.msra.mxu0 0.0
      %1517 = vmatpush.msra.mxu0 %v1037
      %1518 = vmatpush.msra.mxu0 %v924
      %1519 = vmatpush.msra.mxu0 %v892
      %1520 = vmatpush.msra.mxu0 %v860
      %1521 = vmatpush.msra.mxu0 %v828
      %1522 = vmatpush.msra.mxu0 %v796
      %1523 = vmatpush.msra.mxu0 %v764
      %1524 = vmatpush.msra.mxu0 %v732
      %1525 = vmatpush.msra.mxu0 %v700
      %1526 = vmatpush.msra.mxu0 %v668
      %1527 = vmatpush.msra.mxu0 %v636
      %1528 = vmatmul.f32.gmra.mxu0 %v970
      %v1529 = vpop.f32.mrf.mxu0
      %1530 = vmatmul.f32.gmra.mxu0 %v973
      %v1531 = vpop.f32.mrf.mxu0
      %v1532 = vadd.f32 0.0, %v1531
      %1533 = vdwg.mxu0
      %1534 = vmatpush.msra.mxu0 0.0
      %1535 = vmatpush.msra.mxu0 0.0
      %1536 = vmatpush.msra.mxu0 0.0
      %1537 = vmatpush.msra.mxu0 0.0
      %1538 = vmatpush.msra.mxu0 0.0
      %1539 = vmatpush.msra.mxu0 %v1040
      %1540 = vmatpush.msra.mxu0 %v925
      %1541 = vmatpush.msra.mxu0 %v893
      %1542 = vmatpush.msra.mxu0 %v861
      %1543 = vmatpush.msra.mxu0 %v829
      %1544 = vmatpush.msra.mxu0 %v797
      %1545 = vmatpush.msra.mxu0 %v765
      %1546 = vmatpush.msra.mxu0 %v733
      %1547 = vmatpush.msra.mxu0 %v701
      %1548 = vmatpush.msra.mxu0 %v669
      %1549 = vmatpush.msra.mxu0 %v637
      %1550 = vmatmul.f32.gmra.mxu0 %v970
      %v1551 = vpop.f32.mrf.mxu0
      %1552 = vmatmul.f32.gmra.mxu0 %v973
      %v1553 = vpop.f32.mrf.mxu0
      %v1554 = vadd.f32 0.0, %v1553
      %1555 = vdwg.mxu0
      %1556 = vmatpush.msra.mxu0 0.0
      %1557 = vmatpush.msra.mxu0 0.0
      %1558 = vmatpush.msra.mxu0 0.0
      %1559 = vmatpush.msra.mxu0 0.0
      %1560 = vmatpush.msra.mxu0 0.0
      %1561 = vmatpush.msra.mxu0 %v1043
      %1562 = vmatpush.msra.mxu0 %v926
      %1563 = vmatpush.msra.mxu0 %v894
      %1564 = vmatpush.msra.mxu0 %v862
      %1565 = vmatpush.msra.mxu0 %v830
      %1566 = vmatpush.msra.mxu0 %v798
      %1567 = vmatpush.msra.mxu0 %v766
      %1568 = vmatpush.msra.mxu0 %v734
      %1569 = vmatpush.msra.mxu0 %v702
      %1570 = vmatpush.msra.mxu0 %v670
      %1571 = vmatpush.msra.mxu0 %v638
      %1572 = vmatmul.f32.gmra.mxu0 %v970
      %v1573 = vpop.f32.mrf.mxu0
      %1574 = vmatmul.f32.gmra.mxu0 %v973
      %v1575 = vpop.f32.mrf.mxu0
      %v1576 = vadd.f32 0.0, %v1575
      %1577 = vdwg.mxu0
      %1578 = vmatpush.msra.mxu0 0.0
      %1579 = vmatpush.msra.mxu0 0.0
      %1580 = vmatpush.msra.mxu0 0.0
      %1581 = vmatpush.msra.mxu0 0.0
      %1582 = vmatpush.msra.mxu0 0.0
      %1583 = vmatpush.msra.mxu0 %v1046
      %1584 = vmatpush.msra.mxu0 %v927
      %1585 = vmatpush.msra.mxu0 %v895
      %1586 = vmatpush.msra.mxu0 %v863
      %1587 = vmatpush.msra.mxu0 %v831
      %1588 = vmatpush.msra.mxu0 %v799
      %1589 = vmatpush.msra.mxu0 %v767
      %1590 = vmatpush.msra.mxu0 %v735
      %1591 = vmatpush.msra.mxu0 %v703
      %1592 = vmatpush.msra.mxu0 %v671
      %1593 = vmatpush.msra.mxu0 %v639
      %1594 = vmatmul.f32.gmra.mxu0 %v970
      %v1595 = vpop.f32.mrf.mxu0
      %1596 = vmatmul.f32.gmra.mxu0 %v973
      %v1597 = vpop.f32.mrf.mxu0
      %v1598 = vadd.f32 0.0, %v1597
      %1599 = vdwg.mxu0
      %1600 = vmatpush.msra.mxu0 0.0
      %1601 = vmatpush.msra.mxu0 0.0
      %1602 = vmatpush.msra.mxu0 0.0
      %1603 = vmatpush.msra.mxu0 0.0
      %1604 = vmatpush.msra.mxu0 0.0
      %1605 = vmatpush.msra.mxu0 %v1049
      %1606 = vmatpush.msra.mxu0 %v928
      %1607 = vmatpush.msra.mxu0 %v896
      %1608 = vmatpush.msra.mxu0 %v864
      %1609 = vmatpush.msra.mxu0 %v832
      %1610 = vmatpush.msra.mxu0 %v800
      %1611 = vmatpush.msra.mxu0 %v768
      %1612 = vmatpush.msra.mxu0 %v736
      %1613 = vmatpush.msra.mxu0 %v704
      %1614 = vmatpush.msra.mxu0 %v672
      %1615 = vmatpush.msra.mxu0 %v640
      %1616 = vmatmul.f32.gmra.mxu0 %v970
      %v1617 = vpop.f32.mrf.mxu0
      %1618 = vmatmul.f32.gmra.mxu0 %v973
      %v1619 = vpop.f32.mrf.mxu0
      %v1620 = vadd.f32 0.0, %v1619
      %1621 = vdwg.mxu0
      %1622 = vmatpush.msra.mxu0 0.0
      %1623 = vmatpush.msra.mxu0 0.0
      %1624 = vmatpush.msra.mxu0 0.0
      %1625 = vmatpush.msra.mxu0 0.0
      %1626 = vmatpush.msra.mxu0 0.0
      %1627 = vmatpush.msra.mxu0 %v1052
      %1628 = vmatpush.msra.mxu0 %v929
      %1629 = vmatpush.msra.mxu0 %v897
      %1630 = vmatpush.msra.mxu0 %v865
      %1631 = vmatpush.msra.mxu0 %v833
      %1632 = vmatpush.msra.mxu0 %v801
      %1633 = vmatpush.msra.mxu0 %v769
      %1634 = vmatpush.msra.mxu0 %v737
      %1635 = vmatpush.msra.mxu0 %v705
      %1636 = vmatpush.msra.mxu0 %v673
      %1637 = vmatpush.msra.mxu0 %v641
      %1638 = vmatmul.f32.gmra.mxu0 %v970
      %v1639 = vpop.f32.mrf.mxu0
      %1640 = vmatmul.f32.gmra.mxu0 %v973
      %v1641 = vpop.f32.mrf.mxu0
      %v1642 = vadd.f32 0.0, %v1641
      %1643 = vdwg.mxu0
      %1644 = vmatpush.msra.mxu0 0.0
      %1645 = vmatpush.msra.mxu0 0.0
      %1646 = vmatpush.msra.mxu0 0.0
      %1647 = vmatpush.msra.mxu0 0.0
      %1648 = vmatpush.msra.mxu0 0.0
      %1649 = vmatpush.msra.mxu0 %v1055
      %1650 = vmatpush.msra.mxu0 %v930
      %1651 = vmatpush.msra.mxu0 %v898
      %1652 = vmatpush.msra.mxu0 %v866
      %1653 = vmatpush.msra.mxu0 %v834
      %1654 = vmatpush.msra.mxu0 %v802
      %1655 = vmatpush.msra.mxu0 %v770
      %1656 = vmatpush.msra.mxu0 %v738
      %1657 = vmatpush.msra.mxu0 %v706
      %1658 = vmatpush.msra.mxu0 %v674
      %1659 = vmatpush.msra.mxu0 %v642
      %1660 = vmatmul.f32.gmra.mxu0 %v970
      %v1661 = vpop.f32.mrf.mxu0
      %1662 = vmatmul.f32.gmra.mxu0 %v973
      %v1663 = vpop.f32.mrf.mxu0
      %v1664 = vadd.f32 0.0, %v1663
      %1665 = vdwg.mxu0
      %1666 = vmatpush.msra.mxu0 0.0
      %1667 = vmatpush.msra.mxu0 0.0
      %1668 = vmatpush.msra.mxu0 0.0
      %1669 = vmatpush.msra.mxu0 0.0
      %1670 = vmatpush.msra.mxu0 0.0
      %1671 = vmatpush.msra.mxu0 %v1058
      %1672 = vmatpush.msra.mxu0 %v931
      %1673 = vmatpush.msra.mxu0 %v899
      %1674 = vmatpush.msra.mxu0 %v867
      %1675 = vmatpush.msra.mxu0 %v835
      %1676 = vmatpush.msra.mxu0 %v803
      %1677 = vmatpush.msra.mxu0 %v771
      %1678 = vmatpush.msra.mxu0 %v739
      %1679 = vmatpush.msra.mxu0 %v707
      %1680 = vmatpush.msra.mxu0 %v675
      %1681 = vmatpush.msra.mxu0 %v643
      %1682 = vmatmul.f32.gmra.mxu0 %v970
      %v1683 = vpop.f32.mrf.mxu0
      %1684 = vmatmul.f32.gmra.mxu0 %v973
      %v1685 = vpop.f32.mrf.mxu0
      %v1686 = vadd.f32 0.0, %v1685
      %1687 = vdwg.mxu0
      %1688 = vmatpush.msra.mxu0 0.0
      %1689 = vmatpush.msra.mxu0 0.0
      %1690 = vmatpush.msra.mxu0 0.0
      %1691 = vmatpush.msra.mxu0 0.0
      %1692 = vmatpush.msra.mxu0 0.0
      %1693 = vmatpush.msra.mxu0 %v1061
      %1694 = vmatpush.msra.mxu0 %v932
      %1695 = vmatpush.msra.mxu0 %v900
      %1696 = vmatpush.msra.mxu0 %v868
      %1697 = vmatpush.msra.mxu0 %v836
      %1698 = vmatpush.msra.mxu0 %v804
      %1699 = vmatpush.msra.mxu0 %v772
      %1700 = vmatpush.msra.mxu0 %v740
      %1701 = vmatpush.msra.mxu0 %v708
      %1702 = vmatpush.msra.mxu0 %v676
      %1703 = vmatpush.msra.mxu0 %v644
      %1704 = vmatmul.f32.gmra.mxu0 %v970
      %v1705 = vpop.f32.mrf.mxu0
      %1706 = vmatmul.f32.gmra.mxu0 %v973
      %v1707 = vpop.f32.mrf.mxu0
      %v1708 = vadd.f32 0.0, %v1707
      %1709 = vdwg.mxu0
      %1710 = vmatpush.msra.mxu0 0.0
      %1711 = vmatpush.msra.mxu0 0.0
      %1712 = vmatpush.msra.mxu0 0.0
      %1713 = vmatpush.msra.mxu0 0.0
      %1714 = vmatpush.msra.mxu0 0.0
      %1715 = vmatpush.msra.mxu0 %v1064
      %1716 = vmatpush.msra.mxu0 %v933
      %1717 = vmatpush.msra.mxu0 %v901
      %1718 = vmatpush.msra.mxu0 %v869
      %1719 = vmatpush.msra.mxu0 %v837
      %1720 = vmatpush.msra.mxu0 %v805
      %1721 = vmatpush.msra.mxu0 %v773
      %1722 = vmatpush.msra.mxu0 %v741
      %1723 = vmatpush.msra.mxu0 %v709
      %1724 = vmatpush.msra.mxu0 %v677
      %1725 = vmatpush.msra.mxu0 %v645
      %1726 = vmatmul.f32.gmra.mxu0 %v970
      %v1727 = vpop.f32.mrf.mxu0
      %1728 = vmatmul.f32.gmra.mxu0 %v973
      %v1729 = vpop.f32.mrf.mxu0
      %v1730 = vadd.f32 0.0, %v1729
      %1731 = vdwg.mxu0
      %1732 = vmatpush.msra.mxu0 0.0
      %1733 = vmatpush.msra.mxu0 0.0
      %1734 = vmatpush.msra.mxu0 0.0
      %1735 = vmatpush.msra.mxu0 0.0
      %1736 = vmatpush.msra.mxu0 0.0
      %1737 = vmatpush.msra.mxu0 %v1067
      %1738 = vmatpush.msra.mxu0 %v934
      %1739 = vmatpush.msra.mxu0 %v902
      %1740 = vmatpush.msra.mxu0 %v870
      %1741 = vmatpush.msra.mxu0 %v838
      %1742 = vmatpush.msra.mxu0 %v806
      %1743 = vmatpush.msra.mxu0 %v774
      %1744 = vmatpush.msra.mxu0 %v742
      %1745 = vmatpush.msra.mxu0 %v710
      %1746 = vmatpush.msra.mxu0 %v678
      %1747 = vmatpush.msra.mxu0 %v646
      %1748 = vmatmul.f32.gmra.mxu0 %v970
      %v1749 = vpop.f32.mrf.mxu0
      %1750 = vmatmul.f32.gmra.mxu0 %v973
      %v1751 = vpop.f32.mrf.mxu0
      %v1752 = vadd.f32 0.0, %v1751
      %1753 = vdwg.mxu0
      %1754 = vmatpush.msra.mxu0 0.0
      %1755 = vmatpush.msra.mxu0 0.0
      %1756 = vmatpush.msra.mxu0 0.0
      %1757 = vmatpush.msra.mxu0 0.0
      %1758 = vmatpush.msra.mxu0 0.0
      %1759 = vmatpush.msra.mxu0 %v1070
      %1760 = vmatpush.msra.mxu0 %v935
      %1761 = vmatpush.msra.mxu0 %v903
      %1762 = vmatpush.msra.mxu0 %v871
      %1763 = vmatpush.msra.mxu0 %v839
      %1764 = vmatpush.msra.mxu0 %v807
      %1765 = vmatpush.msra.mxu0 %v775
      %1766 = vmatpush.msra.mxu0 %v743
      %1767 = vmatpush.msra.mxu0 %v711
      %1768 = vmatpush.msra.mxu0 %v679
      %1769 = vmatpush.msra.mxu0 %v647
      %1770 = vmatmul.f32.gmra.mxu0 %v970
      %v1771 = vpop.f32.mrf.mxu0
      %1772 = vmatmul.f32.gmra.mxu0 %v973
      %v1773 = vpop.f32.mrf.mxu0
      %v1774 = vadd.f32 0.0, %v1773
      %1775 = vdwg.mxu0
      %v1778 = vrot.slane %v1134, 1
      %v1779 = vrot.slane %v1156, 1
      %v1782 = vadd.f32 %v1090, %v1778
      %v1783 = vadd.f32 %v1112, %v1779
      %v1786 = vrot.slane %v1178, 2
      %v1787 = vrot.slane %v1200, 2
      %v1790 = vadd.f32 %v1782, %v1786
      %v1791 = vadd.f32 %v1783, %v1787
      %v1794 = vrot.slane %v1222, 3
      %v1795 = vrot.slane %v1244, 3
      %v1798 = vadd.f32 %v1790, %v1794
      %v1799 = vadd.f32 %v1791, %v1795
      %v1802 = vrot.slane %v1266, 4
      %v1803 = vrot.slane %v1288, 4
      %v1806 = vadd.f32 %v1798, %v1802
      %v1807 = vadd.f32 %v1799, %v1803
      %v1810 = vrot.slane %v1310, 5
      %v1811 = vrot.slane %v1332, 5
      %v1814 = vadd.f32 %v1806, %v1810
      %v1815 = vadd.f32 %v1807, %v1811
      %v1818 = vrot.slane %v1354, 6
      %v1819 = vrot.slane %v1376, 6
      %v1822 = vadd.f32 %v1814, %v1818
      %v1823 = vadd.f32 %v1815, %v1819
      %v1826 = vrot.slane %v1398, 7
      %v1827 = vrot.slane %v1420, 7
      %v1830 = vadd.f32 %v1822, %v1826
      %v1831 = vadd.f32 %v1823, %v1827
      %v1832 = vadd.f32 %v1830, %v1444
      %v1833 = vadd.f32 %v1831, %v1466
      %v1836 = vrot.slane %v1488, 1
      %v1837 = vrot.slane %v1510, 1
      %v1840 = vadd.f32 %v1832, %v1836
      %v1841 = vadd.f32 %v1833, %v1837
      %v1844 = vrot.slane %v1532, 2
      %v1845 = vrot.slane %v1554, 2
      %v1848 = vadd.f32 %v1840, %v1844
      %v1849 = vadd.f32 %v1841, %v1845
      %v1852 = vrot.slane %v1576, 3
      %v1853 = vrot.slane %v1598, 3
      %v1856 = vadd.f32 %v1848, %v1852
      %v1857 = vadd.f32 %v1849, %v1853
      %v1860 = vrot.slane %v1620, 4
      %v1861 = vrot.slane %v1642, 4
      %v1864 = vadd.f32 %v1856, %v1860
      %v1865 = vadd.f32 %v1857, %v1861
      %v1868 = vrot.slane %v1664, 5
      %v1869 = vrot.slane %v1686, 5
      %v1872 = vadd.f32 %v1864, %v1868
      %v1873 = vadd.f32 %v1865, %v1869
      %v1876 = vrot.slane %v1708, 6
      %v1877 = vrot.slane %v1730, 6
      %v1880 = vadd.f32 %v1872, %v1876
      %v1881 = vadd.f32 %v1873, %v1877
      %v1884 = vrot.slane %v1752, 7
      %v1885 = vrot.slane %v1774, 7
      %v1888 = vadd.f32 %v1880, %v1884
      %v1889 = vadd.f32 %v1881, %v1885
      %v1890 = vld [vmem:[%s7] sm:$0x3]
      %v1892 = vperm.slane %v1890, 0
      %v1893 = vperm.slane %v1890, 1
      %v1896 = vadd.f32 %v1888, %v1892
      %v1897 = vadd.f32 %v1889, %v1893
      %v1898 = vmax.f32 %v1896, 0.0
      %v1899 = vmax.f32 %v1897, 0.0
      %v1900 = vld [vmem:[%s6] sm:$0xff]
      %v1901 = vld [vmem:[%s6 + $0x8] sm:$0xff]
      %v1902 = vld [vmem:[%s6 + $0x10] sm:$0xff]
      %v1903 = vld [vmem:[%s6 + $0x18] sm:$0xff]
      %v1904 = vld [vmem:[%s6 + $0x20] sm:$0xff]
      %v1905 = vld [vmem:[%s6 + $0x28] sm:$0xff]
      %v1906 = vld [vmem:[%s6 + $0x30] sm:$0xff]
      %v1907 = vld [vmem:[%s6 + $0x38] sm:$0xff]
      %v1908 = vld [vmem:[%s6 + $0x40] sm:$0xff]
      %v1909 = vld [vmem:[%s6 + $0x48] sm:$0xff]
      %v1910 = vld [vmem:[%s6 + $0x50] sm:$0xff]
      %v1911 = vld [vmem:[%s6 + $0x58] sm:$0xff]
      %v1912 = vld [vmem:[%s6 + $0x60] sm:$0xff]
      %v1913 = vld [vmem:[%s6 + $0x68] sm:$0xff]
      %v1914 = vld [vmem:[%s6 + $0x70] sm:$0xff]
      %v1915 = vld [vmem:[%s6 + $0x78] sm:$0xff]
      %v1916 = vld [vmem:[%s6 + $0x80] sm:$0xff]
      %v1917 = vld [vmem:[%s6 + $0x88] sm:$0xff]
      %v1918 = vld [vmem:[%s6 + $0x90] sm:$0xff]
      %v1919 = vld [vmem:[%s6 + $0x98] sm:$0xff]
      %v1920 = vld [vmem:[%s6 + $0xa0] sm:$0xff]
      %v1921 = vld [vmem:[%s6 + $0xa8] sm:$0xff]
      %v1922 = vld [vmem:[%s6 + $0xb0] sm:$0xff]
      %v1923 = vld [vmem:[%s6 + $0xb8] sm:$0xff]
      %v1924 = vld [vmem:[%s6 + $0xc0] sm:$0xff]
      %v1925 = vld [vmem:[%s6 + $0xc8] sm:$0xff]
      %v1926 = vld [vmem:[%s6 + $0xd0] sm:$0xff]
      %v1927 = vld [vmem:[%s6 + $0xd8] sm:$0xff]
      %v1928 = vld [vmem:[%s6 + $0xe0] sm:$0xff]
      %v1929 = vld [vmem:[%s6 + $0xe8] sm:$0xff]
      %v1930 = vld [vmem:[%s6 + $0xf0] sm:$0xff]
      %v1931 = vld [vmem:[%s6 + $0xf8] sm:$0xff]
      %v1932 = vld [vmem:[%s6 + $0x100] sm:$0xff]
      %v1933 = vld [vmem:[%s6 + $0x108] sm:$0xff]
      %v1934 = vld [vmem:[%s6 + $0x110] sm:$0xff]
      %v1935 = vld [vmem:[%s6 + $0x118] sm:$0xff]
      %v1936 = vld [vmem:[%s6 + $0x120] sm:$0xff]
      %v1937 = vld [vmem:[%s6 + $0x128] sm:$0xff]
      %v1938 = vld [vmem:[%s6 + $0x130] sm:$0xff]
      %v1939 = vld [vmem:[%s6 + $0x138] sm:$0xff]
      %v1940 = vld [vmem:[%s6 + $0x140] sm:$0xff]
      %v1941 = vld [vmem:[%s6 + $0x148] sm:$0xff]
      %v1942 = vld [vmem:[%s6 + $0x150] sm:$0xff]
      %v1943 = vld [vmem:[%s6 + $0x158] sm:$0xff]
      %v1944 = vld [vmem:[%s6 + $0x160] sm:$0xff]
      %v1945 = vld [vmem:[%s6 + $0x168] sm:$0xff]
      %v1946 = vld [vmem:[%s6 + $0x170] sm:$0xff]
      %v1947 = vld [vmem:[%s6 + $0x178] sm:$0xff]
      %v1948 = vld [vmem:[%s6 + $0x180] sm:$0xff]
      %v1949 = vld [vmem:[%s6 + $0x188] sm:$0xff]
      %v1950 = vld [vmem:[%s6 + $0x190] sm:$0xff]
      %v1951 = vld [vmem:[%s6 + $0x198] sm:$0xff]
      %v1952 = vld [vmem:[%s6 + $0x1a0] sm:$0xff]
      %v1953 = vld [vmem:[%s6 + $0x1a8] sm:$0xff]
      %v1954 = vld [vmem:[%s6 + $0x1b0] sm:$0xff]
      %v1955 = vld [vmem:[%s6 + $0x1b8] sm:$0xff]
      %v1956 = vld [vmem:[%s6 + $0x1c0] sm:$0xff]
      %v1957 = vld [vmem:[%s6 + $0x1c8] sm:$0xff]
      %v1958 = vld [vmem:[%s6 + $0x1d0] sm:$0xff]
      %v1959 = vld [vmem:[%s6 + $0x1d8] sm:$0xff]
      %v1960 = vld [vmem:[%s6 + $0x1e0] sm:$0xff]
      %v1961 = vld [vmem:[%s6 + $0x1e8] sm:$0xff]
      %v1962 = vld [vmem:[%s6 + $0x1f0] sm:$0xff]
      %v1963 = vld [vmem:[%s6 + $0x1f8] sm:$0xff]
      %v1964 = vld [vmem:[%s6 + $0x200] sm:$0xff]
      %v1965 = vld [vmem:[%s6 + $0x208] sm:$0xff]
      %v1966 = vld [vmem:[%s6 + $0x210] sm:$0xff]
      %v1967 = vld [vmem:[%s6 + $0x218] sm:$0xff]
      %v1968 = vld [vmem:[%s6 + $0x220] sm:$0xff]
      %v1969 = vld [vmem:[%s6 + $0x228] sm:$0xff]
      %v1970 = vld [vmem:[%s6 + $0x230] sm:$0xff]
      %v1971 = vld [vmem:[%s6 + $0x238] sm:$0xff]
      %v1972 = vld [vmem:[%s6 + $0x240] sm:$0xff]
      %v1973 = vld [vmem:[%s6 + $0x248] sm:$0xff]
      %v1974 = vld [vmem:[%s6 + $0x250] sm:$0xff]
      %v1975 = vld [vmem:[%s6 + $0x258] sm:$0xff]
      %v1976 = vld [vmem:[%s6 + $0x260] sm:$0xff]
      %v1977 = vld [vmem:[%s6 + $0x268] sm:$0xff]
      %v1978 = vld [vmem:[%s6 + $0x270] sm:$0xff]
      %v1979 = vld [vmem:[%s6 + $0x278] sm:$0xff]
      %v1980 = vld [vmem:[%s6 + $0x280] sm:$0xff]
      %v1981 = vld [vmem:[%s6 + $0x288] sm:$0xff]
      %v1982 = vld [vmem:[%s6 + $0x290] sm:$0xff]
      %v1983 = vld [vmem:[%s6 + $0x298] sm:$0xff]
      %v1984 = vld [vmem:[%s6 + $0x2a0] sm:$0xff]
      %v1985 = vld [vmem:[%s6 + $0x2a8] sm:$0xff]
      %v1986 = vld [vmem:[%s6 + $0x2b0] sm:$0xff]
      %v1987 = vld [vmem:[%s6 + $0x2b8] sm:$0xff]
      %v1988 = vld [vmem:[%s6 + $0x2c0] sm:$0xff]
      %v1989 = vld [vmem:[%s6 + $0x2c8] sm:$0xff]
      %v1990 = vld [vmem:[%s6 + $0x2d0] sm:$0xff]
      %v1991 = vld [vmem:[%s6 + $0x2d8] sm:$0xff]
      %v1992 = vld [vmem:[%s6 + $0x2e0] sm:$0xff]
      %v1993 = vld [vmem:[%s6 + $0x2e8] sm:$0xff]
      %v1994 = vld [vmem:[%s6 + $0x2f0] sm:$0xff]
      %v1995 = vld [vmem:[%s6 + $0x2f8] sm:$0xff]
      %v1996 = vld [vmem:[%s6 + $0x300] sm:$0xff]
      %v1997 = vld [vmem:[%s6 + $0x308] sm:$0xff]
      %v1998 = vld [vmem:[%s6 + $0x310] sm:$0xff]
      %v1999 = vld [vmem:[%s6 + $0x318] sm:$0xff]
      %v2000 = vld [vmem:[%s6 + $0x320] sm:$0xff]
      %v2001 = vld [vmem:[%s6 + $0x328] sm:$0xff]
      %v2002 = vld [vmem:[%s6 + $0x330] sm:$0xff]
      %v2003 = vld [vmem:[%s6 + $0x338] sm:$0xff]
      %v2004 = vld [vmem:[%s6 + $0x340] sm:$0xff]
      %v2005 = vld [vmem:[%s6 + $0x348] sm:$0xff]
      %v2006 = vld [vmem:[%s6 + $0x350] sm:$0xff]
      %v2007 = vld [vmem:[%s6 + $0x358] sm:$0xff]
      %v2008 = vld [vmem:[%s6 + $0x360] sm:$0xff]
      %v2009 = vld [vmem:[%s6 + $0x368] sm:$0xff]
      %v2010 = vld [vmem:[%s6 + $0x370] sm:$0xff]
      %v2011 = vld [vmem:[%s6 + $0x378] sm:$0xff]
      %v2012 = vld [vmem:[%s6 + $0x380] sm:$0xff]
      %v2013 = vld [vmem:[%s6 + $0x388] sm:$0xff]
      %v2014 = vld [vmem:[%s6 + $0x390] sm:$0xff]
      %v2015 = vld [vmem:[%s6 + $0x398] sm:$0xff]
      %v2016 = vld [vmem:[%s6 + $0x3a0] sm:$0xff]
      %v2017 = vld [vmem:[%s6 + $0x3a8] sm:$0xff]
      %v2018 = vld [vmem:[%s6 + $0x3b0] sm:$0xff]
      %v2019 = vld [vmem:[%s6 + $0x3b8] sm:$0xff]
      %v2020 = vld [vmem:[%s6 + $0x3c0] sm:$0xff]
      %v2021 = vld [vmem:[%s6 + $0x3c8] sm:$0xff]
      %v2022 = vld [vmem:[%s6 + $0x3d0] sm:$0xff]
      %v2023 = vld [vmem:[%s6 + $0x3d8] sm:$0xff]
      %v2024 = vld [vmem:[%s6 + $0x3e0] sm:$0xff]
      %v2025 = vld [vmem:[%s6 + $0x3e8] sm:$0xff]
      %v2026 = vld [vmem:[%s6 + $0x3f0] sm:$0xff]
      %v2027 = vld [vmem:[%s6 + $0x3f8] sm:$0xff]
      %v2028 = vld [vmem:[%s6 + $0x400] sm:$0xff]
      %v2029 = vld [vmem:[%s6 + $0x408] sm:$0xff]
      %v2030 = vld [vmem:[%s6 + $0x410] sm:$0xff]
      %v2031 = vld [vmem:[%s6 + $0x418] sm:$0xff]
      %v2032 = vld [vmem:[%s6 + $0x420] sm:$0xff]
      %v2033 = vld [vmem:[%s6 + $0x428] sm:$0xff]
      %v2034 = vld [vmem:[%s6 + $0x430] sm:$0xff]
      %v2035 = vld [vmem:[%s6 + $0x438] sm:$0xff]
      %v2036 = vld [vmem:[%s6 + $0x440] sm:$0xff]
      %v2037 = vld [vmem:[%s6 + $0x448] sm:$0xff]
      %v2038 = vld [vmem:[%s6 + $0x450] sm:$0xff]
      %v2039 = vld [vmem:[%s6 + $0x458] sm:$0xff]
      %v2040 = vld [vmem:[%s6 + $0x460] sm:$0xff]
      %v2041 = vld [vmem:[%s6 + $0x468] sm:$0xff]
      %v2042 = vld [vmem:[%s6 + $0x470] sm:$0xff]
      %v2043 = vld [vmem:[%s6 + $0x478] sm:$0xff]
      %v2044 = vld [vmem:[%s6 + $0x480] sm:$0xff]
      %v2045 = vld [vmem:[%s6 + $0x488] sm:$0xff]
      %v2046 = vld [vmem:[%s6 + $0x490] sm:$0xff]
      %v2047 = vld [vmem:[%s6 + $0x498] sm:$0xff]
      %v2048 = vld [vmem:[%s6 + $0x4a0] sm:$0xff]
      %v2049 = vld [vmem:[%s6 + $0x4a8] sm:$0xff]
      %v2050 = vld [vmem:[%s6 + $0x4b0] sm:$0xff]
      %v2051 = vld [vmem:[%s6 + $0x4b8] sm:$0xff]
      %v2052 = vld [vmem:[%s6 + $0x4c0] sm:$0xff]
      %v2053 = vld [vmem:[%s6 + $0x4c8] sm:$0xff]
      %v2054 = vld [vmem:[%s6 + $0x4d0] sm:$0xff]
      %v2055 = vld [vmem:[%s6 + $0x4d8] sm:$0xff]
      %v2056 = vld [vmem:[%s6 + $0x4e0] sm:$0xff]
      %v2057 = vld [vmem:[%s6 + $0x4e8] sm:$0xff]
      %v2058 = vld [vmem:[%s6 + $0x4f0] sm:$0xff]
      %v2059 = vld [vmem:[%s6 + $0x4f8] sm:$0xff]
      %v2060 = vld [vmem:[%s6 + $0x500] sm:$0xff]
      %v2061 = vld [vmem:[%s6 + $0x508] sm:$0xff]
      %v2062 = vld [vmem:[%s6 + $0x510] sm:$0xff]
      %v2063 = vld [vmem:[%s6 + $0x518] sm:$0xff]
      %v2064 = vld [vmem:[%s6 + $0x520] sm:$0xff]
      %v2065 = vld [vmem:[%s6 + $0x528] sm:$0xff]
      %v2066 = vld [vmem:[%s6 + $0x530] sm:$0xff]
      %v2067 = vld [vmem:[%s6 + $0x538] sm:$0xff]
      %v2068 = vld [vmem:[%s6 + $0x540] sm:$0xff]
      %v2069 = vld [vmem:[%s6 + $0x548] sm:$0xff]
      %v2070 = vld [vmem:[%s6 + $0x550] sm:$0xff]
      %v2071 = vld [vmem:[%s6 + $0x558] sm:$0xff]
      %v2072 = vld [vmem:[%s6 + $0x560] sm:$0xff]
      %v2073 = vld [vmem:[%s6 + $0x568] sm:$0xff]
      %v2074 = vld [vmem:[%s6 + $0x570] sm:$0xff]
      %v2075 = vld [vmem:[%s6 + $0x578] sm:$0xff]
      %v2076 = vld [vmem:[%s6 + $0x580] sm:$0xff]
      %v2077 = vld [vmem:[%s6 + $0x588] sm:$0xff]
      %v2078 = vld [vmem:[%s6 + $0x590] sm:$0xff]
      %v2079 = vld [vmem:[%s6 + $0x598] sm:$0xff]
      %v2080 = vld [vmem:[%s6 + $0x5a0] sm:$0xff]
      %v2081 = vld [vmem:[%s6 + $0x5a8] sm:$0xff]
      %v2082 = vld [vmem:[%s6 + $0x5b0] sm:$0xff]
      %v2083 = vld [vmem:[%s6 + $0x5b8] sm:$0xff]
      %v2084 = vld [vmem:[%s6 + $0x5c0] sm:$0xff]
      %v2085 = vld [vmem:[%s6 + $0x5c8] sm:$0xff]
      %v2086 = vld [vmem:[%s6 + $0x5d0] sm:$0xff]
      %v2087 = vld [vmem:[%s6 + $0x5d8] sm:$0xff]
      %v2088 = vld [vmem:[%s6 + $0x5e0] sm:$0xff]
      %v2089 = vld [vmem:[%s6 + $0x5e8] sm:$0xff]
      %v2090 = vld [vmem:[%s6 + $0x5f0] sm:$0xff]
      %v2091 = vld [vmem:[%s6 + $0x5f8] sm:$0xff]
      %v2092 = vld [vmem:[%s6 + $0x600] sm:$0xff]
      %v2093 = vld [vmem:[%s6 + $0x608] sm:$0xff]
      %v2094 = vld [vmem:[%s6 + $0x610] sm:$0xff]
      %v2095 = vld [vmem:[%s6 + $0x618] sm:$0xff]
      %v2096 = vld [vmem:[%s6 + $0x620] sm:$0xff]
      %v2097 = vld [vmem:[%s6 + $0x628] sm:$0xff]
      %v2098 = vld [vmem:[%s6 + $0x630] sm:$0xff]
      %v2099 = vld [vmem:[%s6 + $0x638] sm:$0xff]
      %v2100 = vld [vmem:[%s6 + $0x640] sm:$0xff]
      %v2101 = vld [vmem:[%s6 + $0x648] sm:$0xff]
      %v2102 = vld [vmem:[%s6 + $0x650] sm:$0xff]
      %v2103 = vld [vmem:[%s6 + $0x658] sm:$0xff]
      %v2104 = vld [vmem:[%s6 + $0x660] sm:$0xff]
      %v2105 = vld [vmem:[%s6 + $0x668] sm:$0xff]
      %v2106 = vld [vmem:[%s6 + $0x670] sm:$0xff]
      %v2107 = vld [vmem:[%s6 + $0x678] sm:$0xff]
      %v2108 = vld [vmem:[%s6 + $0x680] sm:$0xff]
      %v2109 = vld [vmem:[%s6 + $0x688] sm:$0xff]
      %v2110 = vld [vmem:[%s6 + $0x690] sm:$0xff]
      %v2111 = vld [vmem:[%s6 + $0x698] sm:$0xff]
      %v2112 = vld [vmem:[%s6 + $0x6a0] sm:$0xff]
      %v2113 = vld [vmem:[%s6 + $0x6a8] sm:$0xff]
      %v2114 = vld [vmem:[%s6 + $0x6b0] sm:$0xff]
      %v2115 = vld [vmem:[%s6 + $0x6b8] sm:$0xff]
      %v2116 = vld [vmem:[%s6 + $0x6c0] sm:$0xff]
      %v2117 = vld [vmem:[%s6 + $0x6c8] sm:$0xff]
      %v2118 = vld [vmem:[%s6 + $0x6d0] sm:$0xff]
      %v2119 = vld [vmem:[%s6 + $0x6d8] sm:$0xff]
      %v2120 = vld [vmem:[%s6 + $0x6e0] sm:$0xff]
      %v2121 = vld [vmem:[%s6 + $0x6e8] sm:$0xff]
      %v2122 = vld [vmem:[%s6 + $0x6f0] sm:$0xff]
      %v2123 = vld [vmem:[%s6 + $0x6f8] sm:$0xff]
      %v2124 = vld [vmem:[%s6 + $0x700] sm:$0xff]
      %v2125 = vld [vmem:[%s6 + $0x708] sm:$0xff]
      %v2126 = vld [vmem:[%s6 + $0x710] sm:$0xff]
      %v2127 = vld [vmem:[%s6 + $0x718] sm:$0xff]
      %v2128 = vld [vmem:[%s6 + $0x720] sm:$0xff]
      %v2129 = vld [vmem:[%s6 + $0x728] sm:$0xff]
      %v2130 = vld [vmem:[%s6 + $0x730] sm:$0xff]
      %v2131 = vld [vmem:[%s6 + $0x738] sm:$0xff]
      %v2132 = vld [vmem:[%s6 + $0x740] sm:$0xff]
      %v2133 = vld [vmem:[%s6 + $0x748] sm:$0xff]
      %v2134 = vld [vmem:[%s6 + $0x750] sm:$0xff]
      %v2135 = vld [vmem:[%s6 + $0x758] sm:$0xff]
      %v2136 = vld [vmem:[%s6 + $0x760] sm:$0xff]
      %v2137 = vld [vmem:[%s6 + $0x768] sm:$0xff]
      %v2138 = vld [vmem:[%s6 + $0x770] sm:$0xff]
      %v2139 = vld [vmem:[%s6 + $0x778] sm:$0xff]
      %v2140 = vld [vmem:[%s6 + $0x780] sm:$0xff]
      %v2141 = vld [vmem:[%s6 + $0x788] sm:$0xff]
      %v2142 = vld [vmem:[%s6 + $0x790] sm:$0xff]
      %v2143 = vld [vmem:[%s6 + $0x798] sm:$0xff]
      %v2144 = vld [vmem:[%s6 + $0x7a0] sm:$0xff]
      %v2145 = vld [vmem:[%s6 + $0x7a8] sm:$0xff]
      %v2146 = vld [vmem:[%s6 + $0x7b0] sm:$0xff]
      %v2147 = vld [vmem:[%s6 + $0x7b8] sm:$0xff]
      %v2148 = vld [vmem:[%s6 + $0x7c0] sm:$0xff]
      %v2149 = vld [vmem:[%s6 + $0x7c8] sm:$0xff]
      %v2150 = vld [vmem:[%s6 + $0x7d0] sm:$0xff]
      %v2151 = vld [vmem:[%s6 + $0x7d8] sm:$0xff]
      %v2152 = vld [vmem:[%s6 + $0x7e0] sm:$0xff]
      %v2153 = vld [vmem:[%s6 + $0x7e8] sm:$0xff]
      %v2154 = vld [vmem:[%s6 + $0x7f0] sm:$0xff]
      %v2155 = vld [vmem:[%s6 + $0x7f8] sm:$0xff]
      %v2156 = vld [vmem:[%s6 + $0x800] sm:$0xff]
      %v2157 = vld [vmem:[%s6 + $0x808] sm:$0xff]
      %v2158 = vld [vmem:[%s6 + $0x810] sm:$0xff]
      %v2159 = vld [vmem:[%s6 + $0x818] sm:$0xff]
      %v2160 = vld [vmem:[%s6 + $0x820] sm:$0xff]
      %v2161 = vld [vmem:[%s6 + $0x828] sm:$0xff]
      %v2162 = vld [vmem:[%s6 + $0x830] sm:$0xff]
      %v2163 = vld [vmem:[%s6 + $0x838] sm:$0xff]
      %v2164 = vld [vmem:[%s6 + $0x840] sm:$0xff]
      %v2165 = vld [vmem:[%s6 + $0x848] sm:$0xff]
      %v2166 = vld [vmem:[%s6 + $0x850] sm:$0xff]
      %v2167 = vld [vmem:[%s6 + $0x858] sm:$0xff]
      %v2168 = vld [vmem:[%s6 + $0x860] sm:$0xff]
      %v2169 = vld [vmem:[%s6 + $0x868] sm:$0xff]
      %v2170 = vld [vmem:[%s6 + $0x870] sm:$0xff]
      %v2171 = vld [vmem:[%s6 + $0x878] sm:$0xff]
      %v2172 = vld [vmem:[%s6 + $0x880] sm:$0xff]
      %v2173 = vld [vmem:[%s6 + $0x888] sm:$0xff]
      %v2174 = vld [vmem:[%s6 + $0x890] sm:$0xff]
      %v2175 = vld [vmem:[%s6 + $0x898] sm:$0xff]
      %v2176 = vld [vmem:[%s6 + $0x8a0] sm:$0xff]
      %v2177 = vld [vmem:[%s6 + $0x8a8] sm:$0xff]
      %v2178 = vld [vmem:[%s6 + $0x8b0] sm:$0xff]
      %v2179 = vld [vmem:[%s6 + $0x8b8] sm:$0xff]
      %v2180 = vld [vmem:[%s6 + $0x8c0] sm:$0xff]
      %v2181 = vld [vmem:[%s6 + $0x8c8] sm:$0xff]
      %v2182 = vld [vmem:[%s6 + $0x8d0] sm:$0xff]
      %v2183 = vld [vmem:[%s6 + $0x8d8] sm:$0xff]
      %v2184 = vld [vmem:[%s6 + $0x8e0] sm:$0xff]
      %v2185 = vld [vmem:[%s6 + $0x8e8] sm:$0xff]
      %v2186 = vld [vmem:[%s6 + $0x8f0] sm:$0xff]
      %v2187 = vld [vmem:[%s6 + $0x8f8] sm:$0xff]
      %v2188 = vld [vmem:[%s6 + $0x900] sm:$0xff]
      %v2189 = vld [vmem:[%s6 + $0x908] sm:$0xff]
      %v2190 = vld [vmem:[%s6 + $0x910] sm:$0xff]
      %v2191 = vld [vmem:[%s6 + $0x918] sm:$0xff]
      %v2192 = vld [vmem:[%s6 + $0x920] sm:$0xff]
      %v2193 = vld [vmem:[%s6 + $0x928] sm:$0xff]
      %v2194 = vld [vmem:[%s6 + $0x930] sm:$0xff]
      %v2195 = vld [vmem:[%s6 + $0x938] sm:$0xff]
      %v2196 = vld [vmem:[%s6 + $0x940] sm:$0xff]
      %v2197 = vld [vmem:[%s6 + $0x948] sm:$0xff]
      %v2198 = vld [vmem:[%s6 + $0x950] sm:$0xff]
      %v2199 = vld [vmem:[%s6 + $0x958] sm:$0xff]
      %v2200 = vld [vmem:[%s6 + $0x960] sm:$0xff]
      %v2201 = vld [vmem:[%s6 + $0x968] sm:$0xff]
      %v2202 = vld [vmem:[%s6 + $0x970] sm:$0xff]
      %v2203 = vld [vmem:[%s6 + $0x978] sm:$0xff]
      %v2204 = vld [vmem:[%s6 + $0x980] sm:$0xff]
      %v2205 = vld [vmem:[%s6 + $0x988] sm:$0xff]
      %v2206 = vld [vmem:[%s6 + $0x990] sm:$0xff]
      %v2207 = vld [vmem:[%s6 + $0x998] sm:$0xff]
      %v2208 = vld [vmem:[%s6 + $0x9a0] sm:$0xff]
      %v2209 = vld [vmem:[%s6 + $0x9a8] sm:$0xff]
      %v2210 = vld [vmem:[%s6 + $0x9b0] sm:$0xff]
      %v2211 = vld [vmem:[%s6 + $0x9b8] sm:$0xff]
      %v2212 = vld [vmem:[%s6 + $0x9c0] sm:$0xff]
      %v2213 = vld [vmem:[%s6 + $0x9c8] sm:$0xff]
      %v2214 = vld [vmem:[%s6 + $0x9d0] sm:$0xff]
      %v2215 = vld [vmem:[%s6 + $0x9d8] sm:$0xff]
      %v2216 = vld [vmem:[%s6 + $0x9e0] sm:$0xff]
      %v2217 = vld [vmem:[%s6 + $0x9e8] sm:$0xff]
      %v2218 = vld [vmem:[%s6 + $0x9f0] sm:$0xff]
      %v2219 = vld [vmem:[%s6 + $0x9f8] sm:$0xff]
      %v2220 = vld [vmem:[%s6 + $0xa00] sm:$0x1]
      %v2221 = vld [vmem:[%s6 + $0xa08] sm:$0x1]
      %v2222 = vld [vmem:[%s6 + $0xa10] sm:$0x1]
      %v2223 = vld [vmem:[%s6 + $0xa18] sm:$0x1]
      %v2224 = vld [vmem:[%s6 + $0xa20] sm:$0x1]
      %v2225 = vld [vmem:[%s6 + $0xa28] sm:$0x1]
      %v2226 = vld [vmem:[%s6 + $0xa30] sm:$0x1]
      %v2227 = vld [vmem:[%s6 + $0xa38] sm:$0x1]
      %v2228 = vld [vmem:[%s6 + $0xa40] sm:$0x1]
      %v2229 = vld [vmem:[%s6 + $0xa48] sm:$0x1]
      %v2230 = vld [vmem:[%s6 + $0xa50] sm:$0x1]
      %v2231 = vld [vmem:[%s6 + $0xa58] sm:$0x1]
      %v2232 = vld [vmem:[%s6 + $0xa60] sm:$0x1]
      %v2233 = vld [vmem:[%s6 + $0xa68] sm:$0x1]
      %v2234 = vld [vmem:[%s6 + $0xa70] sm:$0x1]
      %v2235 = vld [vmem:[%s6 + $0xa78] sm:$0x1]
      %v2236 = vld [vmem:[%s6 + $0xa80] sm:$0x1]
      %v2237 = vld [vmem:[%s6 + $0xa88] sm:$0x1]
      %v2238 = vld [vmem:[%s6 + $0xa90] sm:$0x1]
      %v2239 = vld [vmem:[%s6 + $0xa98] sm:$0x1]
      %v2240 = vld [vmem:[%s6 + $0xaa0] sm:$0x1]
      %v2241 = vld [vmem:[%s6 + $0xaa8] sm:$0x1]
      %v2242 = vld [vmem:[%s6 + $0xab0] sm:$0x1]
      %v2243 = vld [vmem:[%s6 + $0xab8] sm:$0x1]
      %v2244 = vld [vmem:[%s6 + $0xac0] sm:$0x1]
      %v2245 = vld [vmem:[%s6 + $0xac8] sm:$0x1]
      %v2246 = vld [vmem:[%s6 + $0xad0] sm:$0x1]
      %v2247 = vld [vmem:[%s6 + $0xad8] sm:$0x1]
      %v2248 = vld [vmem:[%s6 + $0xae0] sm:$0x1]
      %v2249 = vld [vmem:[%s6 + $0xae8] sm:$0x1]
      %v2250 = vld [vmem:[%s6 + $0xaf0] sm:$0x1]
      %v2251 = vld [vmem:[%s6 + $0xaf8] sm:$0x1]
      %v2253 = vsel %vm968, %v614, 0
      %v2256 = vsel %vm968, %v615, 0
      %v2259 = vsel %vm975, %v2220, 0
      %v2262 = vsel %vm975, %v2221, 0
      %v2265 = vsel %vm975, %v2222, 0
      %v2268 = vsel %vm975, %v2223, 0
      %v2271 = vsel %vm975, %v2224, 0
      %v2274 = vsel %vm975, %v2225, 0
      %v2277 = vsel %vm975, %v2226, 0
      %v2280 = vsel %vm975, %v2227, 0
      %v2283 = vsel %vm975, %v2228, 0
      %v2286 = vsel %vm975, %v2229, 0
      %v2289 = vsel %vm975, %v2230, 0
      %v2292 = vsel %vm975, %v2231, 0
      %v2295 = vsel %vm975, %v2232, 0
      %v2298 = vsel %vm975, %v2233, 0
      %v2301 = vsel %vm975, %v2234, 0
      %v2304 = vsel %vm975, %v2235, 0
      %v2307 = vsel %vm975, %v2236, 0
      %v2310 = vsel %vm975, %v2237, 0
      %v2313 = vsel %vm975, %v2238, 0
      %v2316 = vsel %vm975, %v2239, 0
      %v2319 = vsel %vm975, %v2240, 0
      %v2322 = vsel %vm975, %v2241, 0
      %v2325 = vsel %vm975, %v2242, 0
      %v2328 = vsel %vm975, %v2243, 0
      %v2331 = vsel %vm975, %v2244, 0
      %v2334 = vsel %vm975, %v2245, 0
      %v2337 = vsel %vm975, %v2246, 0
      %v2340 = vsel %vm975, %v2247, 0
      %v2343 = vsel %vm975, %v2248, 0
      %v2346 = vsel %vm975, %v2249, 0
      %v2349 = vsel %vm975, %v2250, 0
      %v2352 = vsel %vm975, %v2251, 0
      %2354 = vmatpush.msra.mxu0 0.0
      %2355 = vmatpush.msra.mxu0 0.0
      %2356 = vmatpush.msra.mxu0 0.0
      %2357 = vmatpush.msra.mxu0 0.0
      %2358 = vmatpush.msra.mxu0 0.0
      %2359 = vmatpush.msra.mxu0 %v2259
      %2360 = vmatpush.msra.mxu0 %v2188
      %2361 = vmatpush.msra.mxu0 %v2156
      %2362 = vmatpush.msra.mxu0 %v2124
      %2363 = vmatpush.msra.mxu0 %v2092
      %2364 = vmatpush.msra.mxu0 %v2060
      %2365 = vmatpush.msra.mxu0 %v2028
      %2366 = vmatpush.msra.mxu0 %v1996
      %2367 = vmatpush.msra.mxu0 %v1964
      %2368 = vmatpush.msra.mxu0 %v1932
      %2369 = vmatpush.msra.mxu0 %v1900
      %2370 = vmatmul.f32.gmra.mxu0 %v2253
      %v2371 = vpop.f32.mrf.mxu0
      %v2372 = vadd.f32 0.0, %v2371
      %2373 = vmatmul.f32.gmra.mxu0 %v2256
      %v2374 = vpop.f32.mrf.mxu0
      %2375 = vdwg.mxu0
      %2376 = vmatpush.msra.mxu0 0.0
      %2377 = vmatpush.msra.mxu0 0.0
      %2378 = vmatpush.msra.mxu0 0.0
      %2379 = vmatpush.msra.mxu0 0.0
      %2380 = vmatpush.msra.mxu0 0.0
      %2381 = vmatpush.msra.mxu0 %v2262
      %2382 = vmatpush.msra.mxu0 %v2189
      %2383 = vmatpush.msra.mxu0 %v2157
      %2384 = vmatpush.msra.mxu0 %v2125
      %2385 = vmatpush.msra.mxu0 %v2093
      %2386 = vmatpush.msra.mxu0 %v2061
      %2387 = vmatpush.msra.mxu0 %v2029
      %2388 = vmatpush.msra.mxu0 %v1997
      %2389 = vmatpush.msra.mxu0 %v1965
      %2390 = vmatpush.msra.mxu0 %v1933
      %2391 = vmatpush.msra.mxu0 %v1901
      %2392 = vmatmul.f32.gmra.mxu0 %v2253
      %v2393 = vpop.f32.mrf.mxu0
      %v2394 = vadd.f32 0.0, %v2393
      %2395 = vmatmul.f32.gmra.mxu0 %v2256
      %v2396 = vpop.f32.mrf.mxu0
      %2397 = vdwg.mxu0
      %2398 = vmatpush.msra.mxu0 0.0
      %2399 = vmatpush.msra.mxu0 0.0
      %2400 = vmatpush.msra.mxu0 0.0
      %2401 = vmatpush.msra.mxu0 0.0
      %2402 = vmatpush.msra.mxu0 0.0
      %2403 = vmatpush.msra.mxu0 %v2265
      %2404 = vmatpush.msra.mxu0 %v2190
      %2405 = vmatpush.msra.mxu0 %v2158
      %2406 = vmatpush.msra.mxu0 %v2126
      %2407 = vmatpush.msra.mxu0 %v2094
      %2408 = vmatpush.msra.mxu0 %v2062
      %2409 = vmatpush.msra.mxu0 %v2030
      %2410 = vmatpush.msra.mxu0 %v1998
      %2411 = vmatpush.msra.mxu0 %v1966
      %2412 = vmatpush.msra.mxu0 %v1934
      %2413 = vmatpush.msra.mxu0 %v1902
      %2414 = vmatmul.f32.gmra.mxu0 %v2253
      %v2415 = vpop.f32.mrf.mxu0
      %v2416 = vadd.f32 0.0, %v2415
      %2417 = vmatmul.f32.gmra.mxu0 %v2256
      %v2418 = vpop.f32.mrf.mxu0
      %2419 = vdwg.mxu0
      %2420 = vmatpush.msra.mxu0 0.0
      %2421 = vmatpush.msra.mxu0 0.0
      %2422 = vmatpush.msra.mxu0 0.0
      %2423 = vmatpush.msra.mxu0 0.0
      %2424 = vmatpush.msra.mxu0 0.0
      %2425 = vmatpush.msra.mxu0 %v2268
      %2426 = vmatpush.msra.mxu0 %v2191
      %2427 = vmatpush.msra.mxu0 %v2159
      %2428 = vmatpush.msra.mxu0 %v2127
      %2429 = vmatpush.msra.mxu0 %v2095
      %2430 = vmatpush.msra.mxu0 %v2063
      %2431 = vmatpush.msra.mxu0 %v2031
      %2432 = vmatpush.msra.mxu0 %v1999
      %2433 = vmatpush.msra.mxu0 %v1967
      %2434 = vmatpush.msra.mxu0 %v1935
      %2435 = vmatpush.msra.mxu0 %v1903
      %2436 = vmatmul.f32.gmra.mxu0 %v2253
      %v2437 = vpop.f32.mrf.mxu0
      %v2438 = vadd.f32 0.0, %v2437
      %2439 = vmatmul.f32.gmra.mxu0 %v2256
      %v2440 = vpop.f32.mrf.mxu0
      %2441 = vdwg.mxu0
      %2442 = vmatpush.msra.mxu0 0.0
      %2443 = vmatpush.msra.mxu0 0.0
      %2444 = vmatpush.msra.mxu0 0.0
      %2445 = vmatpush.msra.mxu0 0.0
      %2446 = vmatpush.msra.mxu0 0.0
      %2447 = vmatpush.msra.mxu0 %v2271
      %2448 = vmatpush.msra.mxu0 %v2192
      %2449 = vmatpush.msra.mxu0 %v2160
      %2450 = vmatpush.msra.mxu0 %v2128
      %2451 = vmatpush.msra.mxu0 %v2096
      %2452 = vmatpush.msra.mxu0 %v2064
      %2453 = vmatpush.msra.mxu0 %v2032
      %2454 = vmatpush.msra.mxu0 %v2000
      %2455 = vmatpush.msra.mxu0 %v1968
      %2456 = vmatpush.msra.mxu0 %v1936
      %2457 = vmatpush.msra.mxu0 %v1904
      %2458 = vmatmul.f32.gmra.mxu0 %v2253
      %v2459 = vpop.f32.mrf.mxu0
      %v2460 = vadd.f32 0.0, %v2459
      %2461 = vmatmul.f32.gmra.mxu0 %v2256
      %v2462 = vpop.f32.mrf.mxu0
      %2463 = vdwg.mxu0
      %2464 = vmatpush.msra.mxu0 0.0
      %2465 = vmatpush.msra.mxu0 0.0
      %2466 = vmatpush.msra.mxu0 0.0
      %2467 = vmatpush.msra.mxu0 0.0
      %2468 = vmatpush.msra.mxu0 0.0
      %2469 = vmatpush.msra.mxu0 %v2274
      %2470 = vmatpush.msra.mxu0 %v2193
      %2471 = vmatpush.msra.mxu0 %v2161
      %2472 = vmatpush.msra.mxu0 %v2129
      %2473 = vmatpush.msra.mxu0 %v2097
      %2474 = vmatpush.msra.mxu0 %v2065
      %2475 = vmatpush.msra.mxu0 %v2033
      %2476 = vmatpush.msra.mxu0 %v2001
      %2477 = vmatpush.msra.mxu0 %v1969
      %2478 = vmatpush.msra.mxu0 %v1937
      %2479 = vmatpush.msra.mxu0 %v1905
      %2480 = vmatmul.f32.gmra.mxu0 %v2253
      %v2481 = vpop.f32.mrf.mxu0
      %v2482 = vadd.f32 0.0, %v2481
      %2483 = vmatmul.f32.gmra.mxu0 %v2256
      %v2484 = vpop.f32.mrf.mxu0
      %2485 = vdwg.mxu0
      %2486 = vmatpush.msra.mxu0 0.0
      %2487 = vmatpush.msra.mxu0 0.0
      %2488 = vmatpush.msra.mxu0 0.0
      %2489 = vmatpush.msra.mxu0 0.0
      %2490 = vmatpush.msra.mxu0 0.0
      %2491 = vmatpush.msra.mxu0 %v2277
      %2492 = vmatpush.msra.mxu0 %v2194
      %2493 = vmatpush.msra.mxu0 %v2162
      %2494 = vmatpush.msra.mxu0 %v2130
      %2495 = vmatpush.msra.mxu0 %v2098
      %2496 = vmatpush.msra.mxu0 %v2066
      %2497 = vmatpush.msra.mxu0 %v2034
      %2498 = vmatpush.msra.mxu0 %v2002
      %2499 = vmatpush.msra.mxu0 %v1970
      %2500 = vmatpush.msra.mxu0 %v1938
      %2501 = vmatpush.msra.mxu0 %v1906
      %2502 = vmatmul.f32.gmra.mxu0 %v2253
      %v2503 = vpop.f32.mrf.mxu0
      %v2504 = vadd.f32 0.0, %v2503
      %2505 = vmatmul.f32.gmra.mxu0 %v2256
      %v2506 = vpop.f32.mrf.mxu0
      %2507 = vdwg.mxu0
      %2508 = vmatpush.msra.mxu0 0.0
      %2509 = vmatpush.msra.mxu0 0.0
      %2510 = vmatpush.msra.mxu0 0.0
      %2511 = vmatpush.msra.mxu0 0.0
      %2512 = vmatpush.msra.mxu0 0.0
      %2513 = vmatpush.msra.mxu0 %v2280
      %2514 = vmatpush.msra.mxu0 %v2195
      %2515 = vmatpush.msra.mxu0 %v2163
      %2516 = vmatpush.msra.mxu0 %v2131
      %2517 = vmatpush.msra.mxu0 %v2099
      %2518 = vmatpush.msra.mxu0 %v2067
      %2519 = vmatpush.msra.mxu0 %v2035
      %2520 = vmatpush.msra.mxu0 %v2003
      %2521 = vmatpush.msra.mxu0 %v1971
      %2522 = vmatpush.msra.mxu0 %v1939
      %2523 = vmatpush.msra.mxu0 %v1907
      %2524 = vmatmul.f32.gmra.mxu0 %v2253
      %v2525 = vpop.f32.mrf.mxu0
      %v2526 = vadd.f32 0.0, %v2525
      %2527 = vmatmul.f32.gmra.mxu0 %v2256
      %v2528 = vpop.f32.mrf.mxu0
      %2529 = vdwg.mxu0
      %2530 = vmatpush.msra.mxu0 0.0
      %2531 = vmatpush.msra.mxu0 0.0
      %2532 = vmatpush.msra.mxu0 0.0
      %2533 = vmatpush.msra.mxu0 0.0
      %2534 = vmatpush.msra.mxu0 0.0
      %2535 = vmatpush.msra.mxu0 %v2283
      %2536 = vmatpush.msra.mxu0 %v2196
      %2537 = vmatpush.msra.mxu0 %v2164
      %2538 = vmatpush.msra.mxu0 %v2132
      %2539 = vmatpush.msra.mxu0 %v2100
      %2540 = vmatpush.msra.mxu0 %v2068
      %2541 = vmatpush.msra.mxu0 %v2036
      %2542 = vmatpush.msra.mxu0 %v2004
      %2543 = vmatpush.msra.mxu0 %v1972
      %2544 = vmatpush.msra.mxu0 %v1940
      %2545 = vmatpush.msra.mxu0 %v1908
      %2546 = vmatmul.f32.gmra.mxu0 %v2253
      %v2547 = vpop.f32.mrf.mxu0
      %v2548 = vadd.f32 0.0, %v2547
      %2549 = vmatmul.f32.gmra.mxu0 %v2256
      %v2550 = vpop.f32.mrf.mxu0
      %2551 = vdwg.mxu0
      %2552 = vmatpush.msra.mxu0 0.0
      %2553 = vmatpush.msra.mxu0 0.0
      %2554 = vmatpush.msra.mxu0 0.0
      %2555 = vmatpush.msra.mxu0 0.0
      %2556 = vmatpush.msra.mxu0 0.0
      %2557 = vmatpush.msra.mxu0 %v2286
      %2558 = vmatpush.msra.mxu0 %v2197
      %2559 = vmatpush.msra.mxu0 %v2165
      %2560 = vmatpush.msra.mxu0 %v2133
      %2561 = vmatpush.msra.mxu0 %v2101
      %2562 = vmatpush.msra.mxu0 %v2069
      %2563 = vmatpush.msra.mxu0 %v2037
      %2564 = vmatpush.msra.mxu0 %v2005
      %2565 = vmatpush.msra.mxu0 %v1973
      %2566 = vmatpush.msra.mxu0 %v1941
      %2567 = vmatpush.msra.mxu0 %v1909
      %2568 = vmatmul.f32.gmra.mxu0 %v2253
      %v2569 = vpop.f32.mrf.mxu0
      %v2570 = vadd.f32 0.0, %v2569
      %2571 = vmatmul.f32.gmra.mxu0 %v2256
      %v2572 = vpop.f32.mrf.mxu0
      %2573 = vdwg.mxu0
      %2574 = vmatpush.msra.mxu0 0.0
      %2575 = vmatpush.msra.mxu0 0.0
      %2576 = vmatpush.msra.mxu0 0.0
      %2577 = vmatpush.msra.mxu0 0.0
      %2578 = vmatpush.msra.mxu0 0.0
      %2579 = vmatpush.msra.mxu0 %v2289
      %2580 = vmatpush.msra.mxu0 %v2198
      %2581 = vmatpush.msra.mxu0 %v2166
      %2582 = vmatpush.msra.mxu0 %v2134
      %2583 = vmatpush.msra.mxu0 %v2102
      %2584 = vmatpush.msra.mxu0 %v2070
      %2585 = vmatpush.msra.mxu0 %v2038
      %2586 = vmatpush.msra.mxu0 %v2006
      %2587 = vmatpush.msra.mxu0 %v1974
      %2588 = vmatpush.msra.mxu0 %v1942
      %2589 = vmatpush.msra.mxu0 %v1910
      %2590 = vmatmul.f32.gmra.mxu0 %v2253
      %v2591 = vpop.f32.mrf.mxu0
      %v2592 = vadd.f32 0.0, %v2591
      %2593 = vmatmul.f32.gmra.mxu0 %v2256
      %v2594 = vpop.f32.mrf.mxu0
      %2595 = vdwg.mxu0
      %2596 = vmatpush.msra.mxu0 0.0
      %2597 = vmatpush.msra.mxu0 0.0
      %2598 = vmatpush.msra.mxu0 0.0
      %2599 = vmatpush.msra.mxu0 0.0
      %2600 = vmatpush.msra.mxu0 0.0
      %2601 = vmatpush.msra.mxu0 %v2292
      %2602 = vmatpush.msra.mxu0 %v2199
      %2603 = vmatpush.msra.mxu0 %v2167
      %2604 = vmatpush.msra.mxu0 %v2135
      %2605 = vmatpush.msra.mxu0 %v2103
      %2606 = vmatpush.msra.mxu0 %v2071
      %2607 = vmatpush.msra.mxu0 %v2039
      %2608 = vmatpush.msra.mxu0 %v2007
      %2609 = vmatpush.msra.mxu0 %v1975
      %2610 = vmatpush.msra.mxu0 %v1943
      %2611 = vmatpush.msra.mxu0 %v1911
      %2612 = vmatmul.f32.gmra.mxu0 %v2253
      %v2613 = vpop.f32.mrf.mxu0
      %v2614 = vadd.f32 0.0, %v2613
      %2615 = vmatmul.f32.gmra.mxu0 %v2256
      %v2616 = vpop.f32.mrf.mxu0
      %2617 = vdwg.mxu0
      %2618 = vmatpush.msra.mxu0 0.0
      %2619 = vmatpush.msra.mxu0 0.0
      %2620 = vmatpush.msra.mxu0 0.0
      %2621 = vmatpush.msra.mxu0 0.0
      %2622 = vmatpush.msra.mxu0 0.0
      %2623 = vmatpush.msra.mxu0 %v2295
      %2624 = vmatpush.msra.mxu0 %v2200
      %2625 = vmatpush.msra.mxu0 %v2168
      %2626 = vmatpush.msra.mxu0 %v2136
      %2627 = vmatpush.msra.mxu0 %v2104
      %2628 = vmatpush.msra.mxu0 %v2072
      %2629 = vmatpush.msra.mxu0 %v2040
      %2630 = vmatpush.msra.mxu0 %v2008
      %2631 = vmatpush.msra.mxu0 %v1976
      %2632 = vmatpush.msra.mxu0 %v1944
      %2633 = vmatpush.msra.mxu0 %v1912
      %2634 = vmatmul.f32.gmra.mxu0 %v2253
      %v2635 = vpop.f32.mrf.mxu0
      %v2636 = vadd.f32 0.0, %v2635
      %2637 = vmatmul.f32.gmra.mxu0 %v2256
      %v2638 = vpop.f32.mrf.mxu0
      %2639 = vdwg.mxu0
      %2640 = vmatpush.msra.mxu0 0.0
      %2641 = vmatpush.msra.mxu0 0.0
      %2642 = vmatpush.msra.mxu0 0.0
      %2643 = vmatpush.msra.mxu0 0.0
      %2644 = vmatpush.msra.mxu0 0.0
      %2645 = vmatpush.msra.mxu0 %v2298
      %2646 = vmatpush.msra.mxu0 %v2201
      %2647 = vmatpush.msra.mxu0 %v2169
      %2648 = vmatpush.msra.mxu0 %v2137
      %2649 = vmatpush.msra.mxu0 %v2105
      %2650 = vmatpush.msra.mxu0 %v2073
      %2651 = vmatpush.msra.mxu0 %v2041
      %2652 = vmatpush.msra.mxu0 %v2009
      %2653 = vmatpush.msra.mxu0 %v1977
      %2654 = vmatpush.msra.mxu0 %v1945
      %2655 = vmatpush.msra.mxu0 %v1913
      %2656 = vmatmul.f32.gmra.mxu0 %v2253
      %v2657 = vpop.f32.mrf.mxu0
      %v2658 = vadd.f32 0.0, %v2657
      %2659 = vmatmul.f32.gmra.mxu0 %v2256
      %v2660 = vpop.f32.mrf.mxu0
      %2661 = vdwg.mxu0
      %2662 = vmatpush.msra.mxu0 0.0
      %2663 = vmatpush.msra.mxu0 0.0
      %2664 = vmatpush.msra.mxu0 0.0
      %2665 = vmatpush.msra.mxu0 0.0
      %2666 = vmatpush.msra.mxu0 0.0
      %2667 = vmatpush.msra.mxu0 %v2301
      %2668 = vmatpush.msra.mxu0 %v2202
      %2669 = vmatpush.msra.mxu0 %v2170
      %2670 = vmatpush.msra.mxu0 %v2138
      %2671 = vmatpush.msra.mxu0 %v2106
      %2672 = vmatpush.msra.mxu0 %v2074
      %2673 = vmatpush.msra.mxu0 %v2042
      %2674 = vmatpush.msra.mxu0 %v2010
      %2675 = vmatpush.msra.mxu0 %v1978
      %2676 = vmatpush.msra.mxu0 %v1946
      %2677 = vmatpush.msra.mxu0 %v1914
      %2678 = vmatmul.f32.gmra.mxu0 %v2253
      %v2679 = vpop.f32.mrf.mxu0
      %v2680 = vadd.f32 0.0, %v2679
      %2681 = vmatmul.f32.gmra.mxu0 %v2256
      %v2682 = vpop.f32.mrf.mxu0
      %2683 = vdwg.mxu0
      %2684 = vmatpush.msra.mxu0 0.0
      %2685 = vmatpush.msra.mxu0 0.0
      %2686 = vmatpush.msra.mxu0 0.0
      %2687 = vmatpush.msra.mxu0 0.0
      %2688 = vmatpush.msra.mxu0 0.0
      %2689 = vmatpush.msra.mxu0 %v2304
      %2690 = vmatpush.msra.mxu0 %v2203
      %2691 = vmatpush.msra.mxu0 %v2171
      %2692 = vmatpush.msra.mxu0 %v2139
      %2693 = vmatpush.msra.mxu0 %v2107
      %2694 = vmatpush.msra.mxu0 %v2075
      %2695 = vmatpush.msra.mxu0 %v2043
      %2696 = vmatpush.msra.mxu0 %v2011
      %2697 = vmatpush.msra.mxu0 %v1979
      %2698 = vmatpush.msra.mxu0 %v1947
      %2699 = vmatpush.msra.mxu0 %v1915
      %2700 = vmatmul.f32.gmra.mxu0 %v2253
      %v2701 = vpop.f32.mrf.mxu0
      %v2702 = vadd.f32 0.0, %v2701
      %2703 = vmatmul.f32.gmra.mxu0 %v2256
      %v2704 = vpop.f32.mrf.mxu0
      %2705 = vdwg.mxu0
      %2706 = vmatpush.msra.mxu0 0.0
      %2707 = vmatpush.msra.mxu0 0.0
      %2708 = vmatpush.msra.mxu0 0.0
      %2709 = vmatpush.msra.mxu0 0.0
      %2710 = vmatpush.msra.mxu0 0.0
      %2711 = vmatpush.msra.mxu0 %v2307
      %2712 = vmatpush.msra.mxu0 %v2204
      %2713 = vmatpush.msra.mxu0 %v2172
      %2714 = vmatpush.msra.mxu0 %v2140
      %2715 = vmatpush.msra.mxu0 %v2108
      %2716 = vmatpush.msra.mxu0 %v2076
      %2717 = vmatpush.msra.mxu0 %v2044
      %2718 = vmatpush.msra.mxu0 %v2012
      %2719 = vmatpush.msra.mxu0 %v1980
      %2720 = vmatpush.msra.mxu0 %v1948
      %2721 = vmatpush.msra.mxu0 %v1916
      %2722 = vmatmul.f32.gmra.mxu0 %v2253
      %v2723 = vpop.f32.mrf.mxu0
      %2724 = vmatmul.f32.gmra.mxu0 %v2256
      %v2725 = vpop.f32.mrf.mxu0
      %v2726 = vadd.f32 0.0, %v2725
      %2727 = vdwg.mxu0
      %2728 = vmatpush.msra.mxu0 0.0
      %2729 = vmatpush.msra.mxu0 0.0
      %2730 = vmatpush.msra.mxu0 0.0
      %2731 = vmatpush.msra.mxu0 0.0
      %2732 = vmatpush.msra.mxu0 0.0
      %2733 = vmatpush.msra.mxu0 %v2310
      %2734 = vmatpush.msra.mxu0 %v2205
      %2735 = vmatpush.msra.mxu0 %v2173
      %2736 = vmatpush.msra.mxu0 %v2141
      %2737 = vmatpush.msra.mxu0 %v2109
      %2738 = vmatpush.msra.mxu0 %v2077
      %2739 = vmatpush.msra.mxu0 %v2045
      %2740 = vmatpush.msra.mxu0 %v2013
      %2741 = vmatpush.msra.mxu0 %v1981
      %2742 = vmatpush.msra.mxu0 %v1949
      %2743 = vmatpush.msra.mxu0 %v1917
      %2744 = vmatmul.f32.gmra.mxu0 %v2253
      %v2745 = vpop.f32.mrf.mxu0
      %2746 = vmatmul.f32.gmra.mxu0 %v2256
      %v2747 = vpop.f32.mrf.mxu0
      %v2748 = vadd.f32 0.0, %v2747
      %2749 = vdwg.mxu0
      %2750 = vmatpush.msra.mxu0 0.0
      %2751 = vmatpush.msra.mxu0 0.0
      %2752 = vmatpush.msra.mxu0 0.0
      %2753 = vmatpush.msra.mxu0 0.0
      %2754 = vmatpush.msra.mxu0 0.0
      %2755 = vmatpush.msra.mxu0 %v2313
      %2756 = vmatpush.msra.mxu0 %v2206
      %2757 = vmatpush.msra.mxu0 %v2174
      %2758 = vmatpush.msra.mxu0 %v2142
      %2759 = vmatpush.msra.mxu0 %v2110
      %2760 = vmatpush.msra.mxu0 %v2078
      %2761 = vmatpush.msra.mxu0 %v2046
      %2762 = vmatpush.msra.mxu0 %v2014
      %2763 = vmatpush.msra.mxu0 %v1982
      %2764 = vmatpush.msra.mxu0 %v1950
      %2765 = vmatpush.msra.mxu0 %v1918
      %2766 = vmatmul.f32.gmra.mxu0 %v2253
      %v2767 = vpop.f32.mrf.mxu0
      %2768 = vmatmul.f32.gmra.mxu0 %v2256
      %v2769 = vpop.f32.mrf.mxu0
      %v2770 = vadd.f32 0.0, %v2769
      %2771 = vdwg.mxu0
      %2772 = vmatpush.msra.mxu0 0.0
      %2773 = vmatpush.msra.mxu0 0.0
      %2774 = vmatpush.msra.mxu0 0.0
      %2775 = vmatpush.msra.mxu0 0.0
      %2776 = vmatpush.msra.mxu0 0.0
      %2777 = vmatpush.msra.mxu0 %v2316
      %2778 = vmatpush.msra.mxu0 %v2207
      %2779 = vmatpush.msra.mxu0 %v2175
      %2780 = vmatpush.msra.mxu0 %v2143
      %2781 = vmatpush.msra.mxu0 %v2111
      %2782 = vmatpush.msra.mxu0 %v2079
      %2783 = vmatpush.msra.mxu0 %v2047
      %2784 = vmatpush.msra.mxu0 %v2015
      %2785 = vmatpush.msra.mxu0 %v1983
      %2786 = vmatpush.msra.mxu0 %v1951
      %2787 = vmatpush.msra.mxu0 %v1919
      %2788 = vmatmul.f32.gmra.mxu0 %v2253
      %v2789 = vpop.f32.mrf.mxu0
      %2790 = vmatmul.f32.gmra.mxu0 %v2256
      %v2791 = vpop.f32.mrf.mxu0
      %v2792 = vadd.f32 0.0, %v2791
      %2793 = vdwg.mxu0
      %2794 = vmatpush.msra.mxu0 0.0
      %2795 = vmatpush.msra.mxu0 0.0
      %2796 = vmatpush.msra.mxu0 0.0
      %2797 = vmatpush.msra.mxu0 0.0
      %2798 = vmatpush.msra.mxu0 0.0
      %2799 = vmatpush.msra.mxu0 %v2319
      %2800 = vmatpush.msra.mxu0 %v2208
      %2801 = vmatpush.msra.mxu0 %v2176
      %2802 = vmatpush.msra.mxu0 %v2144
      %2803 = vmatpush.msra.mxu0 %v2112
      %2804 = vmatpush.msra.mxu0 %v2080
      %2805 = vmatpush.msra.mxu0 %v2048
      %2806 = vmatpush.msra.mxu0 %v2016
      %2807 = vmatpush.msra.mxu0 %v1984
      %2808 = vmatpush.msra.mxu0 %v1952
      %2809 = vmatpush.msra.mxu0 %v1920
      %2810 = vmatmul.f32.gmra.mxu0 %v2253
      %v2811 = vpop.f32.mrf.mxu0
      %2812 = vmatmul.f32.gmra.mxu0 %v2256
      %v2813 = vpop.f32.mrf.mxu0
      %v2814 = vadd.f32 0.0, %v2813
      %2815 = vdwg.mxu0
      %2816 = vmatpush.msra.mxu0 0.0
      %2817 = vmatpush.msra.mxu0 0.0
      %2818 = vmatpush.msra.mxu0 0.0
      %2819 = vmatpush.msra.mxu0 0.0
      %2820 = vmatpush.msra.mxu0 0.0
      %2821 = vmatpush.msra.mxu0 %v2322
      %2822 = vmatpush.msra.mxu0 %v2209
      %2823 = vmatpush.msra.mxu0 %v2177
      %2824 = vmatpush.msra.mxu0 %v2145
      %2825 = vmatpush.msra.mxu0 %v2113
      %2826 = vmatpush.msra.mxu0 %v2081
      %2827 = vmatpush.msra.mxu0 %v2049
      %2828 = vmatpush.msra.mxu0 %v2017
      %2829 = vmatpush.msra.mxu0 %v1985
      %2830 = vmatpush.msra.mxu0 %v1953
      %2831 = vmatpush.msra.mxu0 %v1921
      %2832 = vmatmul.f32.gmra.mxu0 %v2253
      %v2833 = vpop.f32.mrf.mxu0
      %2834 = vmatmul.f32.gmra.mxu0 %v2256
      %v2835 = vpop.f32.mrf.mxu0
      %v2836 = vadd.f32 0.0, %v2835
      %2837 = vdwg.mxu0
      %2838 = vmatpush.msra.mxu0 0.0
      %2839 = vmatpush.msra.mxu0 0.0
      %2840 = vmatpush.msra.mxu0 0.0
      %2841 = vmatpush.msra.mxu0 0.0
      %2842 = vmatpush.msra.mxu0 0.0
      %2843 = vmatpush.msra.mxu0 %v2325
      %2844 = vmatpush.msra.mxu0 %v2210
      %2845 = vmatpush.msra.mxu0 %v2178
      %2846 = vmatpush.msra.mxu0 %v2146
      %2847 = vmatpush.msra.mxu0 %v2114
      %2848 = vmatpush.msra.mxu0 %v2082
      %2849 = vmatpush.msra.mxu0 %v2050
      %2850 = vmatpush.msra.mxu0 %v2018
      %2851 = vmatpush.msra.mxu0 %v1986
      %2852 = vmatpush.msra.mxu0 %v1954
      %2853 = vmatpush.msra.mxu0 %v1922
      %2854 = vmatmul.f32.gmra.mxu0 %v2253
      %v2855 = vpop.f32.mrf.mxu0
      %2856 = vmatmul.f32.gmra.mxu0 %v2256
      %v2857 = vpop.f32.mrf.mxu0
      %v2858 = vadd.f32 0.0, %v2857
      %2859 = vdwg.mxu0
      %2860 = vmatpush.msra.mxu0 0.0
      %2861 = vmatpush.msra.mxu0 0.0
      %2862 = vmatpush.msra.mxu0 0.0
      %2863 = vmatpush.msra.mxu0 0.0
      %2864 = vmatpush.msra.mxu0 0.0
      %2865 = vmatpush.msra.mxu0 %v2328
      %2866 = vmatpush.msra.mxu0 %v2211
      %2867 = vmatpush.msra.mxu0 %v2179
      %2868 = vmatpush.msra.mxu0 %v2147
      %2869 = vmatpush.msra.mxu0 %v2115
      %2870 = vmatpush.msra.mxu0 %v2083
      %2871 = vmatpush.msra.mxu0 %v2051
      %2872 = vmatpush.msra.mxu0 %v2019
      %2873 = vmatpush.msra.mxu0 %v1987
      %2874 = vmatpush.msra.mxu0 %v1955
      %2875 = vmatpush.msra.mxu0 %v1923
      %2876 = vmatmul.f32.gmra.mxu0 %v2253
      %v2877 = vpop.f32.mrf.mxu0
      %2878 = vmatmul.f32.gmra.mxu0 %v2256
      %v2879 = vpop.f32.mrf.mxu0
      %v2880 = vadd.f32 0.0, %v2879
      %2881 = vdwg.mxu0
      %2882 = vmatpush.msra.mxu0 0.0
      %2883 = vmatpush.msra.mxu0 0.0
      %2884 = vmatpush.msra.mxu0 0.0
      %2885 = vmatpush.msra.mxu0 0.0
      %2886 = vmatpush.msra.mxu0 0.0
      %2887 = vmatpush.msra.mxu0 %v2331
      %2888 = vmatpush.msra.mxu0 %v2212
      %2889 = vmatpush.msra.mxu0 %v2180
      %2890 = vmatpush.msra.mxu0 %v2148
      %2891 = vmatpush.msra.mxu0 %v2116
      %2892 = vmatpush.msra.mxu0 %v2084
      %2893 = vmatpush.msra.mxu0 %v2052
      %2894 = vmatpush.msra.mxu0 %v2020
      %2895 = vmatpush.msra.mxu0 %v1988
      %2896 = vmatpush.msra.mxu0 %v1956
      %2897 = vmatpush.msra.mxu0 %v1924
      %2898 = vmatmul.f32.gmra.mxu0 %v2253
      %v2899 = vpop.f32.mrf.mxu0
      %2900 = vmatmul.f32.gmra.mxu0 %v2256
      %v2901 = vpop.f32.mrf.mxu0
      %v2902 = vadd.f32 0.0, %v2901
      %2903 = vdwg.mxu0
      %2904 = vmatpush.msra.mxu0 0.0
      %2905 = vmatpush.msra.mxu0 0.0
      %2906 = vmatpush.msra.mxu0 0.0
      %2907 = vmatpush.msra.mxu0 0.0
      %2908 = vmatpush.msra.mxu0 0.0
      %2909 = vmatpush.msra.mxu0 %v2334
      %2910 = vmatpush.msra.mxu0 %v2213
      %2911 = vmatpush.msra.mxu0 %v2181
      %2912 = vmatpush.msra.mxu0 %v2149
      %2913 = vmatpush.msra.mxu0 %v2117
      %2914 = vmatpush.msra.mxu0 %v2085
      %2915 = vmatpush.msra.mxu0 %v2053
      %2916 = vmatpush.msra.mxu0 %v2021
      %2917 = vmatpush.msra.mxu0 %v1989
      %2918 = vmatpush.msra.mxu0 %v1957
      %2919 = vmatpush.msra.mxu0 %v1925
      %2920 = vmatmul.f32.gmra.mxu0 %v2253
      %v2921 = vpop.f32.mrf.mxu0
      %2922 = vmatmul.f32.gmra.mxu0 %v2256
      %v2923 = vpop.f32.mrf.mxu0
      %v2924 = vadd.f32 0.0, %v2923
      %2925 = vdwg.mxu0
      %2926 = vmatpush.msra.mxu0 0.0
      %2927 = vmatpush.msra.mxu0 0.0
      %2928 = vmatpush.msra.mxu0 0.0
      %2929 = vmatpush.msra.mxu0 0.0
      %2930 = vmatpush.msra.mxu0 0.0
      %2931 = vmatpush.msra.mxu0 %v2337
      %2932 = vmatpush.msra.mxu0 %v2214
      %2933 = vmatpush.msra.mxu0 %v2182
      %2934 = vmatpush.msra.mxu0 %v2150
      %2935 = vmatpush.msra.mxu0 %v2118
      %2936 = vmatpush.msra.mxu0 %v2086
      %2937 = vmatpush.msra.mxu0 %v2054
      %2938 = vmatpush.msra.mxu0 %v2022
      %2939 = vmatpush.msra.mxu0 %v1990
      %2940 = vmatpush.msra.mxu0 %v1958
      %2941 = vmatpush.msra.mxu0 %v1926
      %2942 = vmatmul.f32.gmra.mxu0 %v2253
      %v2943 = vpop.f32.mrf.mxu0
      %2944 = vmatmul.f32.gmra.mxu0 %v2256
      %v2945 = vpop.f32.mrf.mxu0
      %v2946 = vadd.f32 0.0, %v2945
      %2947 = vdwg.mxu0
      %2948 = vmatpush.msra.mxu0 0.0
      %2949 = vmatpush.msra.mxu0 0.0
      %2950 = vmatpush.msra.mxu0 0.0
      %2951 = vmatpush.msra.mxu0 0.0
      %2952 = vmatpush.msra.mxu0 0.0
      %2953 = vmatpush.msra.mxu0 %v2340
      %2954 = vmatpush.msra.mxu0 %v2215
      %2955 = vmatpush.msra.mxu0 %v2183
      %2956 = vmatpush.msra.mxu0 %v2151
      %2957 = vmatpush.msra.mxu0 %v2119
      %2958 = vmatpush.msra.mxu0 %v2087
      %2959 = vmatpush.msra.mxu0 %v2055
      %2960 = vmatpush.msra.mxu0 %v2023
      %2961 = vmatpush.msra.mxu0 %v1991
      %2962 = vmatpush.msra.mxu0 %v1959
      %2963 = vmatpush.msra.mxu0 %v1927
      %2964 = vmatmul.f32.gmra.mxu0 %v2253
      %v2965 = vpop.f32.mrf.mxu0
      %2966 = vmatmul.f32.gmra.mxu0 %v2256
      %v2967 = vpop.f32.mrf.mxu0
      %v2968 = vadd.f32 0.0, %v2967
      %2969 = vdwg.mxu0
      %2970 = vmatpush.msra.mxu0 0.0
      %2971 = vmatpush.msra.mxu0 0.0
      %2972 = vmatpush.msra.mxu0 0.0
      %2973 = vmatpush.msra.mxu0 0.0
      %2974 = vmatpush.msra.mxu0 0.0
      %2975 = vmatpush.msra.mxu0 %v2343
      %2976 = vmatpush.msra.mxu0 %v2216
      %2977 = vmatpush.msra.mxu0 %v2184
      %2978 = vmatpush.msra.mxu0 %v2152
      %2979 = vmatpush.msra.mxu0 %v2120
      %2980 = vmatpush.msra.mxu0 %v2088
      %2981 = vmatpush.msra.mxu0 %v2056
      %2982 = vmatpush.msra.mxu0 %v2024
      %2983 = vmatpush.msra.mxu0 %v1992
      %2984 = vmatpush.msra.mxu0 %v1960
      %2985 = vmatpush.msra.mxu0 %v1928
      %2986 = vmatmul.f32.gmra.mxu0 %v2253
      %v2987 = vpop.f32.mrf.mxu0
      %2988 = vmatmul.f32.gmra.mxu0 %v2256
      %v2989 = vpop.f32.mrf.mxu0
      %v2990 = vadd.f32 0.0, %v2989
      %2991 = vdwg.mxu0
      %2992 = vmatpush.msra.mxu0 0.0
      %2993 = vmatpush.msra.mxu0 0.0
      %2994 = vmatpush.msra.mxu0 0.0
      %2995 = vmatpush.msra.mxu0 0.0
      %2996 = vmatpush.msra.mxu0 0.0
      %2997 = vmatpush.msra.mxu0 %v2346
      %2998 = vmatpush.msra.mxu0 %v2217
      %2999 = vmatpush.msra.mxu0 %v2185
      %3000 = vmatpush.msra.mxu0 %v2153
      %3001 = vmatpush.msra.mxu0 %v2121
      %3002 = vmatpush.msra.mxu0 %v2089
      %3003 = vmatpush.msra.mxu0 %v2057
      %3004 = vmatpush.msra.mxu0 %v2025
      %3005 = vmatpush.msra.mxu0 %v1993
      %3006 = vmatpush.msra.mxu0 %v1961
      %3007 = vmatpush.msra.mxu0 %v1929
      %3008 = vmatmul.f32.gmra.mxu0 %v2253
      %v3009 = vpop.f32.mrf.mxu0
      %3010 = vmatmul.f32.gmra.mxu0 %v2256
      %v3011 = vpop.f32.mrf.mxu0
      %v3012 = vadd.f32 0.0, %v3011
      %3013 = vdwg.mxu0
      %3014 = vmatpush.msra.mxu0 0.0
      %3015 = vmatpush.msra.mxu0 0.0
      %3016 = vmatpush.msra.mxu0 0.0
      %3017 = vmatpush.msra.mxu0 0.0
      %3018 = vmatpush.msra.mxu0 0.0
      %3019 = vmatpush.msra.mxu0 %v2349
      %3020 = vmatpush.msra.mxu0 %v2218
      %3021 = vmatpush.msra.mxu0 %v2186
      %3022 = vmatpush.msra.mxu0 %v2154
      %3023 = vmatpush.msra.mxu0 %v2122
      %3024 = vmatpush.msra.mxu0 %v2090
      %3025 = vmatpush.msra.mxu0 %v2058
      %3026 = vmatpush.msra.mxu0 %v2026
      %3027 = vmatpush.msra.mxu0 %v1994
      %3028 = vmatpush.msra.mxu0 %v1962
      %3029 = vmatpush.msra.mxu0 %v1930
      %3030 = vmatmul.f32.gmra.mxu0 %v2253
      %v3031 = vpop.f32.mrf.mxu0
      %3032 = vmatmul.f32.gmra.mxu0 %v2256
      %v3033 = vpop.f32.mrf.mxu0
      %v3034 = vadd.f32 0.0, %v3033
      %3035 = vdwg.mxu0
      %3036 = vmatpush.msra.mxu0 0.0
      %3037 = vmatpush.msra.mxu0 0.0
      %3038 = vmatpush.msra.mxu0 0.0
      %3039 = vmatpush.msra.mxu0 0.0
      %3040 = vmatpush.msra.mxu0 0.0
      %3041 = vmatpush.msra.mxu0 %v2352
      %3042 = vmatpush.msra.mxu0 %v2219
      %3043 = vmatpush.msra.mxu0 %v2187
      %3044 = vmatpush.msra.mxu0 %v2155
      %3045 = vmatpush.msra.mxu0 %v2123
      %3046 = vmatpush.msra.mxu0 %v2091
      %3047 = vmatpush.msra.mxu0 %v2059
      %3048 = vmatpush.msra.mxu0 %v2027
      %3049 = vmatpush.msra.mxu0 %v1995
      %3050 = vmatpush.msra.mxu0 %v1963
      %3051 = vmatpush.msra.mxu0 %v1931
      %3052 = vmatmul.f32.gmra.mxu0 %v2253
      %v3053 = vpop.f32.mrf.mxu0
      %3054 = vmatmul.f32.gmra.mxu0 %v2256
      %v3055 = vpop.f32.mrf.mxu0
      %v3056 = vadd.f32 0.0, %v3055
      %3057 = vdwg.mxu0
      %v3060 = vrot.slane %v2416, 1
      %v3061 = vrot.slane %v2438, 1
      %v3064 = vadd.f32 %v2372, %v3060
      %v3065 = vadd.f32 %v2394, %v3061
      %v3068 = vrot.slane %v2460, 2
      %v3069 = vrot.slane %v2482, 2
      %v3072 = vadd.f32 %v3064, %v3068
      %v3073 = vadd.f32 %v3065, %v3069
      %v3076 = vrot.slane %v2504, 3
      %v3077 = vrot.slane %v2526, 3
      %v3080 = vadd.f32 %v3072, %v3076
      %v3081 = vadd.f32 %v3073, %v3077
      %v3084 = vrot.slane %v2548, 4
      %v3085 = vrot.slane %v2570, 4
      %v3088 = vadd.f32 %v3080, %v3084
      %v3089 = vadd.f32 %v3081, %v3085
      %v3092 = vrot.slane %v2592, 5
      %v3093 = vrot.slane %v2614, 5
      %v3096 = vadd.f32 %v3088, %v3092
      %v3097 = vadd.f32 %v3089, %v3093
      %v3100 = vrot.slane %v2636, 6
      %v3101 = vrot.slane %v2658, 6
      %v3104 = vadd.f32 %v3096, %v3100
      %v3105 = vadd.f32 %v3097, %v3101
      %v3108 = vrot.slane %v2680, 7
      %v3109 = vrot.slane %v2702, 7
      %v3112 = vadd.f32 %v3104, %v3108
      %v3113 = vadd.f32 %v3105, %v3109
      %v3114 = vadd.f32 %v3112, %v2726
      %v3115 = vadd.f32 %v3113, %v2748
      %v3118 = vrot.slane %v2770, 1
      %v3119 = vrot.slane %v2792, 1
      %v3122 = vadd.f32 %v3114, %v3118
      %v3123 = vadd.f32 %v3115, %v3119
      %v3126 = vrot.slane %v2814, 2
      %v3127 = vrot.slane %v2836, 2
      %v3130 = vadd.f32 %v3122, %v3126
      %v3131 = vadd.f32 %v3123, %v3127
      %v3134 = vrot.slane %v2858, 3
      %v3135 = vrot.slane %v2880, 3
      %v3138 = vadd.f32 %v3130, %v3134
      %v3139 = vadd.f32 %v3131, %v3135
      %v3142 = vrot.slane %v2902, 4
      %v3143 = vrot.slane %v2924, 4
      %v3146 = vadd.f32 %v3138, %v3142
      %v3147 = vadd.f32 %v3139, %v3143
      %v3150 = vrot.slane %v2946, 5
      %v3151 = vrot.slane %v2968, 5
      %v3154 = vadd.f32 %v3146, %v3150
      %v3155 = vadd.f32 %v3147, %v3151
      %v3158 = vrot.slane %v2990, 6
      %v3159 = vrot.slane %v3012, 6
      %v3162 = vadd.f32 %v3154, %v3158
      %v3163 = vadd.f32 %v3155, %v3159
      %v3166 = vrot.slane %v3034, 7
      %v3167 = vrot.slane %v3056, 7
      %v3170 = vadd.f32 %v3162, %v3166
      %v3171 = vadd.f32 %v3163, %v3167
      %v3172 = vld [vmem:[%s8] sm:$0x3]
      %v3174 = vperm.slane %v3172, 0
      %v3175 = vperm.slane %v3172, 1
      %v3178 = vadd.f32 %v3170, %v3174
      %v3179 = vadd.f32 %v3171, %v3175
      %v3180 = vmax.f32 %v3178, 0.0
      %v3181 = vmax.f32 %v3179, 0.0
      %v3182 = vld [vmem:[%s9] sm:$0xff]
      %v3183 = vld [vmem:[%s9 + $0x8] sm:$0xff]
      %v3184 = vld [vmem:[%s9 + $0x10] sm:$0xff]
      %v3185 = vld [vmem:[%s9 + $0x18] sm:$0xff]
      %v3186 = vld [vmem:[%s9 + $0x20] sm:$0xff]
      %v3187 = vld [vmem:[%s9 + $0x28] sm:$0xff]
      %v3188 = vld [vmem:[%s9 + $0x30] sm:$0xff]
      %v3189 = vld [vmem:[%s9 + $0x38] sm:$0xff]
      %v3190 = vld [vmem:[%s9 + $0x40] sm:$0xff]
      %v3191 = vld [vmem:[%s9 + $0x48] sm:$0xff]
      %v3192 = vld [vmem:[%s9 + $0x50] sm:$0xff]
      %v3193 = vld [vmem:[%s9 + $0x58] sm:$0xff]
      %v3194 = vld [vmem:[%s9 + $0x60] sm:$0xff]
      %v3195 = vld [vmem:[%s9 + $0x68] sm:$0xff]
      %v3196 = vld [vmem:[%s9 + $0x70] sm:$0xff]
      %v3197 = vld [vmem:[%s9 + $0x78] sm:$0xff]
      %v3198 = vld [vmem:[%s9 + $0x80] sm:$0xff]
      %v3199 = vld [vmem:[%s9 + $0x88] sm:$0xff]
      %v3200 = vld [vmem:[%s9 + $0x90] sm:$0xff]
      %v3201 = vld [vmem:[%s9 + $0x98] sm:$0xff]
      %v3202 = vld [vmem:[%s9 + $0xa0] sm:$0xff]
      %v3203 = vld [vmem:[%s9 + $0xa8] sm:$0xff]
      %v3204 = vld [vmem:[%s9 + $0xb0] sm:$0xff]
      %v3205 = vld [vmem:[%s9 + $0xb8] sm:$0xff]
      %v3206 = vld [vmem:[%s9 + $0xc0] sm:$0xff]
      %v3207 = vld [vmem:[%s9 + $0xc8] sm:$0xff]
      %v3208 = vld [vmem:[%s9 + $0xd0] sm:$0xff]
      %v3209 = vld [vmem:[%s9 + $0xd8] sm:$0xff]
      %v3210 = vld [vmem:[%s9 + $0xe0] sm:$0xff]
      %v3211 = vld [vmem:[%s9 + $0xe8] sm:$0xff]
      %v3212 = vld [vmem:[%s9 + $0xf0] sm:$0xff]
      %v3213 = vld [vmem:[%s9 + $0xf8] sm:$0xff]
      %v3214 = vld [vmem:[%s10] sm:$0x1]
      %3215 = vmatpush.msra.mxu0 %v3197
      %3216 = vmatpush.msra.mxu0 %v3196
      %3217 = vmatpush.msra.mxu0 %v3195
      %3218 = vmatpush.msra.mxu0 %v3194
      %3219 = vmatpush.msra.mxu0 %v3193
      %3220 = vmatpush.msra.mxu0 %v3192
      %3221 = vmatpush.msra.mxu0 %v3191
      %3222 = vmatpush.msra.mxu0 %v3190
      %3223 = vmatpush.msra.mxu0 %v3189
      %3224 = vmatpush.msra.mxu0 %v3188
      %3225 = vmatpush.msra.mxu0 %v3187
      %3226 = vmatpush.msra.mxu0 %v3186
      %3227 = vmatpush.msra.mxu0 %v3185
      %3228 = vmatpush.msra.mxu0 %v3184
      %3229 = vmatpush.msra.mxu0 %v3183
      %3230 = vmatpush.msra.mxu0 %v3182
      %3231 = vmatmul.f32.gmra.mxu0 %v1898
      %v3232 = vpop.f32.mrf.mxu0
      %v3233 = vadd.f32 %v3214, %v3232
      %3234 = vdwg.mxu0
      %3235 = vmatpush.msra.mxu0 %v3213
      %3236 = vmatpush.msra.mxu0 %v3212
      %3237 = vmatpush.msra.mxu0 %v3211
      %3238 = vmatpush.msra.mxu0 %v3210
      %3239 = vmatpush.msra.mxu0 %v3209
      %3240 = vmatpush.msra.mxu0 %v3208
      %3241 = vmatpush.msra.mxu0 %v3207
      %3242 = vmatpush.msra.mxu0 %v3206
      %3243 = vmatpush.msra.mxu0 %v3205
      %3244 = vmatpush.msra.mxu0 %v3204
      %3245 = vmatpush.msra.mxu0 %v3203
      %3246 = vmatpush.msra.mxu0 %v3202
      %3247 = vmatpush.msra.mxu0 %v3201
      %3248 = vmatpush.msra.mxu0 %v3200
      %3249 = vmatpush.msra.mxu0 %v3199
      %3250 = vmatpush.msra.mxu0 %v3198
      %3251 = vmatmul.f32.gmra.mxu0 %v1899
      %v3252 = vpop.f32.mrf.mxu0
      %v3253 = vadd.f32 %v3233, %v3252
      %3254 = vdwg.mxu0
      %vm3255 = vcmask 24576
      %3256 = vst.msk [vmem:[%s438] sm:$0x1] %vm3255, %v3253
      %v3257 = vld [vmem:[%s11] sm:$0xff]
      %v3258 = vld [vmem:[%s11 + $0x8] sm:$0xff]
      %v3259 = vld [vmem:[%s11 + $0x10] sm:$0xff]
      %v3260 = vld [vmem:[%s11 + $0x18] sm:$0xff]
      %v3261 = vld [vmem:[%s11 + $0x20] sm:$0xff]
      %v3262 = vld [vmem:[%s11 + $0x28] sm:$0xff]
      %v3263 = vld [vmem:[%s11 + $0x30] sm:$0xff]
      %v3264 = vld [vmem:[%s11 + $0x38] sm:$0xff]
      %v3265 = vld [vmem:[%s11 + $0x40] sm:$0xff]
      %v3266 = vld [vmem:[%s11 + $0x48] sm:$0xff]
      %v3267 = vld [vmem:[%s11 + $0x50] sm:$0xff]
      %v3268 = vld [vmem:[%s11 + $0x58] sm:$0xff]
      %v3269 = vld [vmem:[%s11 + $0x60] sm:$0xff]
      %v3270 = vld [vmem:[%s11 + $0x68] sm:$0xff]
      %v3271 = vld [vmem:[%s11 + $0x70] sm:$0xff]
      %v3272 = vld [vmem:[%s11 + $0x78] sm:$0xff]
      %v3273 = vld [vmem:[%s11 + $0x80] sm:$0xff]
      %v3274 = vld [vmem:[%s11 + $0x88] sm:$0xff]
      %v3275 = vld [vmem:[%s11 + $0x90] sm:$0xff]
      %v3276 = vld [vmem:[%s11 + $0x98] sm:$0xff]
      %v3277 = vld [vmem:[%s11 + $0xa0] sm:$0xff]
      %v3278 = vld [vmem:[%s11 + $0xa8] sm:$0xff]
      %v3279 = vld [vmem:[%s11 + $0xb0] sm:$0xff]
      %v3280 = vld [vmem:[%s11 + $0xb8] sm:$0xff]
      %v3281 = vld [vmem:[%s11 + $0xc0] sm:$0xff]
      %v3282 = vld [vmem:[%s11 + $0xc8] sm:$0xff]
      %v3283 = vld [vmem:[%s11 + $0xd0] sm:$0xff]
      %v3284 = vld [vmem:[%s11 + $0xd8] sm:$0xff]
      %v3285 = vld [vmem:[%s11 + $0xe0] sm:$0xff]
      %v3286 = vld [vmem:[%s11 + $0xe8] sm:$0xff]
      %v3287 = vld [vmem:[%s11 + $0xf0] sm:$0xff]
      %v3288 = vld [vmem:[%s11 + $0xf8] sm:$0xff]
      %v3289 = vld [vmem:[#allocation2] sm:$0x1]
      %3290 = vmatpush.msra.mxu0 %v3272
      %3291 = vmatpush.msra.mxu0 %v3271
      %3292 = vmatpush.msra.mxu0 %v3270
      %3293 = vmatpush.msra.mxu0 %v3269
      %3294 = vmatpush.msra.mxu0 %v3268
      %3295 = vmatpush.msra.mxu0 %v3267
      %3296 = vmatpush.msra.mxu0 %v3266
      %3297 = vmatpush.msra.mxu0 %v3265
      %3298 = vmatpush.msra.mxu0 %v3264
      %3299 = vmatpush.msra.mxu0 %v3263
      %3300 = vmatpush.msra.mxu0 %v3262
      %3301 = vmatpush.msra.mxu0 %v3261
      %3302 = vmatpush.msra.mxu0 %v3260
      %3303 = vmatpush.msra.mxu0 %v3259
      %3304 = vmatpush.msra.mxu0 %v3258
      %3305 = vmatpush.msra.mxu0 %v3257
      %3306 = vmatmul.f32.gmra.mxu0 %v3180
      %v3307 = vpop.f32.mrf.mxu0
      %v3308 = vadd.f32 %v3289, %v3307
      %3309 = vdwg.mxu0
      %3310 = vmatpush.msra.mxu0 %v3288
      %3311 = vmatpush.msra.mxu0 %v3287
      %3312 = vmatpush.msra.mxu0 %v3286
      %3313 = vmatpush.msra.mxu0 %v3285
      %3314 = vmatpush.msra.mxu0 %v3284
      %3315 = vmatpush.msra.mxu0 %v3283
      %3316 = vmatpush.msra.mxu0 %v3282
      %3317 = vmatpush.msra.mxu0 %v3281
      %3318 = vmatpush.msra.mxu0 %v3280
      %3319 = vmatpush.msra.mxu0 %v3279
      %3320 = vmatpush.msra.mxu0 %v3278
      %3321 = vmatpush.msra.mxu0 %v3277
      %3322 = vmatpush.msra.mxu0 %v3276
      %3323 = vmatpush.msra.mxu0 %v3275
      %3324 = vmatpush.msra.mxu0 %v3274
      %3325 = vmatpush.msra.mxu0 %v3273
      %3326 = vmatmul.f32.gmra.mxu0 %v3181
      %v3327 = vpop.f32.mrf.mxu0
      %v3328 = vadd.f32 %v3308, %v3327
      %3329 = vdwg.mxu0
      %3331 = vrot.lane.b32.xlu0 %v3328, 4
      %v3332 = vpop.permute.xlu0 %3331
      %vm3334 = vcmask 32800
      %3335 = vst.msk [vmem:[%s438] sm:$0x1] %vm3334, %v3332
      %p3336 = scmp.lt.s32.totalorder %s26, 1
      %s3337 = scalar_select %p3336, %s26, 1
      %s3338 = scalar_lea.vmem %s13, %s3337
      // Predicated region
      $region73: #{network_forward.3} parent=71 // pred_check
        %p3339 = pneg %p322
      $region74: #{network_forward.3} parent=71 // pred_check_branch
        %3341 = sbr.rel (%p3339) target = $region76
      $region75: #{network_forward.3} parent=71 // pred_region
        _
      $region76: #{network_forward.3} parent=71 // pred_fallthru
        _
    $region72: #{network_forward.3} parent=5 // pred_fallthru
      _
    %p3342 = scmp.le.s32.totalorder 2, %s21
    // Predicated region
    $region77: #{network_forward.3} parent=5 // pred_check
      %p3343 = pneg %p3342
    $region78: #{network_forward.3} parent=5 // pred_check_branch
      %3345 = sbr.rel (%p3343) target = $region80
    $region79: #{network_forward.3} parent=5 // pred_region
      %s3346 = ssub.s32 %s21, 2
      // Predicated region
      $region81: #{network_forward.3} parent=79 // pred_check
        %p3347 = pneg %p328
      $region82: #{network_forward.3} parent=79 // pred_check_branch
        %3349 = sbr.rel (%p3347) target = $region84
      $region83: #{network_forward.3} parent=79 // pred_region
        %p3350 = scmp.lt.s32.totalorder %s27, 1
        %s3351 = scalar_select %p3350, %s27, 1
        %s3352 = scalar_lea.vmem %s13, %s3351
      $region84: #{network_forward.3} parent=79 // pred_fallthru
        _
    $region80: #{network_forward.3} parent=5 // pred_fallthru
      _
  $region6: #{network_forward.3} parent=0 // loop_footer
    %s25 = sadd.s32 1, %s21
  $region7: #{network_forward.3} parent=0 // loop_footer_branch
    %20 = sbr.rel target = $region3
  $region8: #{network_forward.3} parent=0 // loop_exit
    _

</llo_original>
